<compile_context>
chip_gen: v7x
topology: tpu7x:2x2x1
jax: 0.10.0
libtpu: 0.0.40
codegen_flags: <defaults>
</compile_context>

<pallas_src>
import functools
import math

import jax
import jax.numpy as jnp
from jax.experimental import pallas as pl
from jax.experimental.pallas import tpu as pltpu

# Logical dims of the torch module.
D_IN, D_H, D_LAT = 784, 400, 20
# Lane-padded dims (multiples of 128). Padding is numerically exact.
D_IN_P, D_H_P, D_LAT_P = 896, 512, 128
D_FUSE = 2 * D_LAT_P        # fused [mu | logvar] projection width


def _vae_kernel(x_ref, eps_ref,
                w1_ref, b1_ref, wf_ref, bf_ref, w3_ref, b3_ref, w4_ref, b4_ref,
                recon_ref, mu_ref, logvar_ref):
    # Encoder: h1 = relu(x @ W1 + b1)            (tb, 512); x arrives as bf16.
    h1 = jnp.dot(x_ref[...], w1_ref[...],
                 preferred_element_type=jnp.float32) + b1_ref[...]
    h1 = jnp.maximum(h1, 0.0)

    # Fused mu/logvar projection: one lane-dense (512, 256) matmul.
    # Columns [0:128) hold mu (real data in [0:20)), columns [128:256) hold logvar.
    fused = jnp.dot(h1.astype(jnp.bfloat16), wf_ref[...],
                    preferred_element_type=jnp.float32) + bf_ref[...]
    mu = fused[:, :D_LAT_P]                                        # (tb, 128)
    logvar = fused[:, D_LAT_P:]                                    # (tb, 128)

    # Reparameterize: z = mu + eps * exp(0.5 * logvar).
    # Padded lanes: logvar == 0 -> std == 1, eps == 0, mu == 0  =>  z == 0 exactly.
    z = mu + eps_ref[...] * jnp.exp(0.5 * logvar)                  # (tb, 128)

    # Decoder: recon = sigmoid(relu(z @ W3 + b3) @ W4 + b4)
    h3 = jnp.dot(z.astype(jnp.bfloat16), w3_ref[...],
                 preferred_element_type=jnp.float32) + b3_ref[...]
    h3 = jnp.maximum(h3, 0.0)                                      # (tb, 512)
    logits = jnp.dot(h3.astype(jnp.bfloat16), w4_ref[...],
                     preferred_element_type=jnp.float32) + b4_ref[...]

    # EUP-friendly sigmoid: exp and approx reciprocal both run off the VALU slots.
    recon = pl.reciprocal(1.0 + jnp.exp(-logits), approx=True)

    recon_ref[...] = recon.astype(recon_ref.dtype)                 # bf16 writeback
    mu_ref[...] = mu.astype(mu_ref.dtype)
    logvar_ref[...] = logvar.astype(logvar_ref.dtype)


def _round_up(x, m):
    return (x + m - 1) // m * m


def prepare_vae_params(params):
    """Lane-pad, bf16-cast the weights and fuse the mu/logvar projection.
    Run ONCE (outside the per-call path). All padding is with zeros -> exact."""
    w1, b1, w21, b21, w22, b22, w3, b3, w4, b4 = params

    w1p = jnp.zeros((D_IN_P, D_H_P), jnp.float32)
    w1p = w1p.at[:D_IN, :D_H].set(w1).astype(jnp.bfloat16)                    # (896, 512)
    b1p = jnp.zeros((1, D_H_P), jnp.float32).at[:, :D_H].set(b1)              # (1, 512)

    wf = jnp.zeros((D_H_P, D_FUSE), jnp.float32)
    wf = wf.at[:D_H, :D_LAT].set(w21).at[:D_H, D_LAT_P:D_LAT_P + D_LAT].set(w22)
    wfp = wf.astype(jnp.bfloat16)                                             # (512, 256)
    bf = jnp.zeros((1, D_FUSE), jnp.float32)
    bf = bf.at[:, :D_LAT].set(b21).at[:, D_LAT_P:D_LAT_P + D_LAT].set(b22)    # (1, 256)

    w3p = jnp.zeros((D_LAT_P, D_H_P), jnp.float32)
    w3p = w3p.at[:D_LAT, :D_H].set(w3).astype(jnp.bfloat16)                   # (128, 512)
    b3p = jnp.zeros((1, D_H_P), jnp.float32).at[:, :D_H].set(b3)              # (1, 512)

    w4p = jnp.zeros((D_H_P, D_IN_P), jnp.float32)
    w4p = w4p.at[:D_H, :D_IN].set(w4).astype(jnp.bfloat16)                    # (512, 896)
    b4p = jnp.zeros((1, D_IN_P), jnp.float32).at[:, :D_IN].set(b4)            # (1, 896)

    return (w1p, b1p, wfp, bf, w3p, b3p, w4p, b4p)


@functools.partial(jax.jit, static_argnames=("tb",))
def vae_forward(x, eps, padded_params, tb=512):
    """x: (B, 784) f32, eps: (B, 20) f32, padded_params from prepare_vae_params.
    Returns (recon (B, 784) f32, mu (B, 20) f32, logvar (B, 20) f32)."""
    B = x.shape[0]
    weights = tuple(padded_params)

    # One grid step per `tb` rows. Do NOT split small batches for "parallelism":
    # the batch grid is a sequential loop on single-TC chips (v5e/v6e), and on v7x
    # tiny tiles only lower MXU row occupancy and double per-step overhead.
    tb_eff = min(tb, _round_up(B, 8))
    B_pad = _round_up(B, tb_eff)
    grid = (B_pad // tb_eff,)

    # Stream x as bf16 (largest input stream halved); eps stays f32 (128 lanes, small).
    x_p = jnp.pad(x, ((0, B_pad - B), (0, D_IN_P - D_IN))).astype(jnp.bfloat16)
    eps_p = jnp.pad(eps, ((0, B_pad - B), (0, D_LAT_P - D_LAT)))

    def tiled(last):
        return pl.BlockSpec((tb_eff, last), lambda i: (i, 0))

    def resident(arr):
        # Same full block for every grid step -> weight stays resident in VMEM
        # (constant index_map: no re-DMA across the batch grid).
        return pl.BlockSpec(arr.shape, lambda i: (0,) * arr.ndim)

    in_specs = [tiled(D_IN_P), tiled(D_LAT_P)] + [resident(w) for w in weights]
    out_specs = [tiled(D_IN_P), tiled(D_LAT_P), tiled(D_LAT_P)]
    out_shape = (
        jax.ShapeDtypeStruct((B_pad, D_IN_P), jnp.bfloat16),   # recon: bf16 writeback
        jax.ShapeDtypeStruct((B_pad, D_LAT_P), jnp.float32),
        jax.ShapeDtypeStruct((B_pad, D_LAT_P), jnp.float32),
    )

    # Advisory cost estimate so XLA schedules the custom call sensibly.
    flops = 2 * B_pad * (D_IN_P * D_H_P + D_H_P * D_FUSE + D_LAT_P * D_H_P + D_H_P * D_IN_P)
    transcendentals = B_pad * (D_LAT_P + 2 * D_IN_P)
    w_bytes = sum(int(w.size) * w.dtype.itemsize for w in weights)
    io_bytes = (B_pad * D_IN_P * 2 + B_pad * D_LAT_P * 4          # x bf16, eps f32
                + B_pad * D_IN_P * 2 + 2 * B_pad * D_LAT_P * 4)   # recon bf16, mu/logvar f32
    cost = pl.CostEstimate(flops=flops, transcendentals=transcendentals,
                           bytes_accessed=w_bytes + io_bytes)

    recon_p, mu_p, logvar_p = pl.pallas_call(
        _vae_kernel,
        out_shape=out_shape,
        grid_spec=pltpu.PrefetchScalarGridSpec(
            num_scalar_prefetch=0,
            grid=grid,
            in_specs=in_specs,
            out_specs=out_specs,
        ),
        compiler_params=pltpu.CompilerParams(
            dimension_semantics=("parallel",),
            vmem_limit_bytes=32 * 1024 * 1024,
        ),
        cost_estimate=cost,
    )(x_p, eps_p, *weights)

    # Module interface: logical shapes, recon back to f32 (fuses with the slice
    # under jit; the kernel-side HBM stream stays bf16).
    recon = recon_p[:B, :D_IN].astype(jnp.float32)
    return recon, mu_p[:B, :D_LAT], logvar_p[:B, :D_LAT]


def init_vae_params(key):
    """Deterministic init mimicking torch.nn.Linear default (U(-1/sqrt(in), 1/sqrt(in))).
    Weights stored transposed to (in, out); biases as (1, out)."""
    dims = [(784, 400), (400, 20), (400, 20), (20, 400), (400, 784)]
    params = []
    for (fan_in, fan_out) in dims:
        key, kw, kb = jax.random.split(key, 3)
        bound = 1.0 / math.sqrt(fan_in)
        w = jax.random.uniform(kw, (fan_in, fan_out), jnp.float32, -bound, bound)
        b = jax.random.uniform(kb, (1, fan_out), jnp.float32, -bound, bound)
        params += [w, b]
    return tuple(params)


def vae_reference(x, eps, params):
    """Pure-JAX reference mirroring the kernel's bf16-operand / f32-accumulate matmuls."""
    w1, b1, w21, b21, w22, b22, w3, b3, w4, b4 = params

    def mm(a, w):
        return jnp.dot(a.astype(jnp.bfloat16), w.astype(jnp.bfloat16),
                       preferred_element_type=jnp.float32)

    h1 = jax.nn.relu(mm(x, w1) + b1)
    mu = mm(h1, w21) + b21
    logvar = mm(h1, w22) + b22
    z = mu + eps * jnp.exp(0.5 * logvar)
    h3 = jax.nn.relu(mm(z, w3) + b3)
    recon = jax.nn.sigmoid(mm(h3, w4) + b4)
    return recon, mu, logvar


if __name__ == "__main__":
    key = jax.random.PRNGKey(0)
    kp, kx, ke = jax.random.split(key, 3)

    params = init_vae_params(kp)
    padded_params = prepare_vae_params(params)          # pad/cast/fuse once

    # Small image batch consistent with the module: (B, 1, 28, 28) -> view(-1, 784).
    B = 16
    x_img = jax.random.uniform(kx, (B, 1, 28, 28), jnp.float32)
    x = x_img.reshape(-1, D_IN)
    # eps (torch.randn_like(std)) generated outside the kernel so the run is deterministic.
    # TODO(synk): optionally generate eps in-kernel with pltpu.prng_* if determinism
    # vs. an externally supplied eps is not required.
    eps = jax.random.normal(ke, (B, D_LAT), jnp.float32)

    recon, mu, logvar = vae_forward(x, eps, padded_params)
    jax.block_until_ready((recon, mu, logvar))

    r_ref, mu_ref, lv_ref = vae_reference(x, eps, params)
    assert recon.shape == (B, D_IN) and mu.shape == (B, D_LAT) and logvar.shape == (B, D_LAT)
    assert jnp.allclose(mu, mu_ref, atol=5e-3, rtol=5e-3)
    assert jnp.allclose(logvar, lv_ref, atol=5e-3, rtol=5e-3)
    # recon passes through bf16 storage + approx-reciprocal sigmoid -> slightly looser.
    assert jnp.allclose(recon, r_ref, atol=2e-2, rtol=2e-2)

    print("KERNEL_OK")
</pallas_src>

<mosaic_0001>
module attributes {stable_mosaic.version = 11 : i64} {
  func.func @_vae_kernel(%arg0: i32, %arg1: memref<16x896xbf16, #tpu.memory_space<vmem>>, %arg2: memref<16x128xf32, #tpu.memory_space<vmem>>, %arg3: memref<896x512xbf16, #tpu.memory_space<vmem>>, %arg4: memref<1x512xf32, #tpu.memory_space<vmem>>, %arg5: memref<512x256xbf16, #tpu.memory_space<vmem>>, %arg6: memref<1x256xf32, #tpu.memory_space<vmem>>, %arg7: memref<128x512xbf16, #tpu.memory_space<vmem>>, %arg8: memref<1x512xf32, #tpu.memory_space<vmem>>, %arg9: memref<512x896xbf16, #tpu.memory_space<vmem>>, %arg10: memref<1x896xf32, #tpu.memory_space<vmem>>, %arg11: memref<16x896xbf16, #tpu.memory_space<vmem>>, %arg12: memref<16x128xf32, #tpu.memory_space<vmem>>, %arg13: memref<16x128xf32, #tpu.memory_space<vmem>>) attributes {dimension_semantics = [#tpu.dimension_semantics<parallel>], iteration_bounds = array<i64: 1>, scalar_prefetch = 0 : i64, scratch_operands = 0 : i64, tpu.core_type = #tpu.core_type<tc>, window_params = [{transform_indices = @transform_0, window_bounds = array<i64: 16, 896>}, {transform_indices = @transform_1, window_bounds = array<i64: 16, 128>}, {pipeline_mode = #tpu.pipeline_mode<synchronous>, transform_indices = @transform_2, window_bounds = array<i64: 896, 512>}, {pipeline_mode = #tpu.pipeline_mode<synchronous>, transform_indices = @transform_3, window_bounds = array<i64: 1, 512>}, {pipeline_mode = #tpu.pipeline_mode<synchronous>, transform_indices = @transform_4, window_bounds = array<i64: 512, 256>}, {pipeline_mode = #tpu.pipeline_mode<synchronous>, transform_indices = @transform_5, window_bounds = array<i64: 1, 256>}, {pipeline_mode = #tpu.pipeline_mode<synchronous>, transform_indices = @transform_6, window_bounds = array<i64: 128, 512>}, {pipeline_mode = #tpu.pipeline_mode<synchronous>, transform_indices = @transform_7, window_bounds = array<i64: 1, 512>}, {pipeline_mode = #tpu.pipeline_mode<synchronous>, transform_indices = @transform_8, window_bounds = array<i64: 512, 896>}, {pipeline_mode = #tpu.pipeline_mode<synchronous>, transform_indices = @transform_9, window_bounds = array<i64: 1, 896>}, {transform_indices = @transform_10, window_bounds = array<i64: 16, 896>}, {transform_indices = @transform_11, window_bounds = array<i64: 16, 128>}, {transform_indices = @transform_12, window_bounds = array<i64: 16, 128>}]} {
    %c0 = arith.constant 0 : index
    %c0_0 = arith.constant 0 : index
    %0 = vector.load %arg1[%c0, %c0_0] : memref<16x896xbf16, #tpu.memory_space<vmem>>, vector<16x896xbf16>
    %c0_1 = arith.constant 0 : index
    %c0_2 = arith.constant 0 : index
    %1 = vector.load %arg3[%c0_1, %c0_2] : memref<896x512xbf16, #tpu.memory_space<vmem>>, vector<896x512xbf16>
    %cst = arith.constant dense<0.000000e+00> : vector<16x512xf32>
    %2 = tpu.matmul %0, %1, %cst {dimension_numbers = #tpu.dot_dimension_numbers<[1], [0], [0], [1], [0, 0, 1, 1], [], []>} : vector<16x896xbf16>, vector<896x512xbf16>, vector<16x512xf32> -> vector<16x512xf32>
    %c0_3 = arith.constant 0 : index
    %c0_4 = arith.constant 0 : index
    %3 = vector.load %arg4[%c0_3, %c0_4] : memref<1x512xf32, #tpu.memory_space<vmem>>, vector<1x512xf32>
    %4 = vector.broadcast %3 : vector<1x512xf32> to vector<16x512xf32>
    %5 = arith.addf %2, %4 : vector<16x512xf32>
    %cst_5 = arith.constant 0.000000e+00 : f32
    %6 = vector.broadcast %cst_5 : f32 to vector<16x512xf32>
    %7 = arith.maximumf %5, %6 : vector<16x512xf32>
    %8 = arith.truncf %7 : vector<16x512xf32> to vector<16x512xbf16>
    %c0_6 = arith.constant 0 : index
    %c0_7 = arith.constant 0 : index
    %9 = vector.load %arg5[%c0_6, %c0_7] : memref<512x256xbf16, #tpu.memory_space<vmem>>, vector<512x256xbf16>
    %cst_8 = arith.constant dense<0.000000e+00> : vector<16x256xf32>
    %10 = tpu.matmul %8, %9, %cst_8 {dimension_numbers = #tpu.dot_dimension_numbers<[1], [0], [0], [1], [0, 0, 1, 1], [], []>} : vector<16x512xbf16>, vector<512x256xbf16>, vector<16x256xf32> -> vector<16x256xf32>
    %c0_9 = arith.constant 0 : index
    %c0_10 = arith.constant 0 : index
    %11 = vector.load %arg6[%c0_9, %c0_10] : memref<1x256xf32, #tpu.memory_space<vmem>>, vector<1x256xf32>
    %12 = vector.broadcast %11 : vector<1x256xf32> to vector<16x256xf32>
    %13 = arith.addf %10, %12 : vector<16x256xf32>
    %14 = vector.extract_strided_slice %13 {offsets = [0, 0], sizes = [16, 128], strides = [1, 1]} : vector<16x256xf32> to vector<16x128xf32>
    %15 = vector.extract_strided_slice %13 {offsets = [0, 128], sizes = [16, 128], strides = [1, 1]} : vector<16x256xf32> to vector<16x128xf32>
    %c0_11 = arith.constant 0 : index
    %c0_12 = arith.constant 0 : index
    %16 = vector.load %arg2[%c0_11, %c0_12] : memref<16x128xf32, #tpu.memory_space<vmem>>, vector<16x128xf32>
    %cst_13 = arith.constant 5.000000e-01 : f32
    %17 = vector.broadcast %cst_13 : f32 to vector<16x128xf32>
    %18 = arith.mulf %17, %15 : vector<16x128xf32>
    %19 = math.exp %18 : vector<16x128xf32>
    %20 = arith.mulf %16, %19 : vector<16x128xf32>
    %21 = arith.addf %14, %20 : vector<16x128xf32>
    %22 = arith.truncf %21 : vector<16x128xf32> to vector<16x128xbf16>
    %c0_14 = arith.constant 0 : index
    %c0_15 = arith.constant 0 : index
    %23 = vector.load %arg7[%c0_14, %c0_15] : memref<128x512xbf16, #tpu.memory_space<vmem>>, vector<128x512xbf16>
    %cst_16 = arith.constant dense<0.000000e+00> : vector<16x512xf32>
    %24 = tpu.matmul %22, %23, %cst_16 {dimension_numbers = #tpu.dot_dimension_numbers<[1], [0], [0], [1], [0, 0, 1, 1], [], []>} : vector<16x128xbf16>, vector<128x512xbf16>, vector<16x512xf32> -> vector<16x512xf32>
    %c0_17 = arith.constant 0 : index
    %c0_18 = arith.constant 0 : index
    %25 = vector.load %arg8[%c0_17, %c0_18] : memref<1x512xf32, #tpu.memory_space<vmem>>, vector<1x512xf32>
    %26 = vector.broadcast %25 : vector<1x512xf32> to vector<16x512xf32>
    %27 = arith.addf %24, %26 : vector<16x512xf32>
    %cst_19 = arith.constant 0.000000e+00 : f32
    %28 = vector.broadcast %cst_19 : f32 to vector<16x512xf32>
    %29 = arith.maximumf %27, %28 : vector<16x512xf32>
    %30 = arith.truncf %29 : vector<16x512xf32> to vector<16x512xbf16>
    %c0_20 = arith.constant 0 : index
    %c0_21 = arith.constant 0 : index
    %31 = vector.load %arg9[%c0_20, %c0_21] : memref<512x896xbf16, #tpu.memory_space<vmem>>, vector<512x896xbf16>
    %cst_22 = arith.constant dense<0.000000e+00> : vector<16x896xf32>
    %32 = tpu.matmul %30, %31, %cst_22 {dimension_numbers = #tpu.dot_dimension_numbers<[1], [0], [0], [1], [0, 0, 1, 1], [], []>} : vector<16x512xbf16>, vector<512x896xbf16>, vector<16x896xf32> -> vector<16x896xf32>
    %c0_23 = arith.constant 0 : index
    %c0_24 = arith.constant 0 : index
    %33 = vector.load %arg10[%c0_23, %c0_24] : memref<1x896xf32, #tpu.memory_space<vmem>>, vector<1x896xf32>
    %34 = vector.broadcast %33 : vector<1x896xf32> to vector<16x896xf32>
    %35 = arith.addf %32, %34 : vector<16x896xf32>
    %cst_25 = arith.constant 0.000000e+00 : f32
    %36 = vector.broadcast %cst_25 : f32 to vector<16x896xf32>
    %37 = arith.subf %36, %35 : vector<16x896xf32>
    %38 = math.exp %37 : vector<16x896xf32>
    %cst_26 = arith.constant 1.000000e+00 : f32
    %39 = vector.broadcast %cst_26 : f32 to vector<16x896xf32>
    %40 = arith.addf %39, %38 : vector<16x896xf32>
    %41 = tpu.reciprocal %40 {approx = true} : vector<16x896xf32> -> vector<16x896xf32>
    %42 = arith.truncf %41 : vector<16x896xf32> to vector<16x896xbf16>
    %c0_27 = arith.constant 0 : index
    %c0_28 = arith.constant 0 : index
    %43 = vector.load %arg11[%c0_27, %c0_28] : memref<16x896xbf16, #tpu.memory_space<vmem>>, vector<16x896xbf16>
    tpu.vector_store %arg11[%c0_27, %c0_28], %42 {strides = array<i32>} : memref<16x896xbf16, #tpu.memory_space<vmem>>, vector<16x896xbf16>,
    %c0_29 = arith.constant 0 : index
    %c0_30 = arith.constant 0 : index
    %44 = vector.load %arg12[%c0_29, %c0_30] : memref<16x128xf32, #tpu.memory_space<vmem>>, vector<16x128xf32>
    tpu.vector_store %arg12[%c0_29, %c0_30], %14 {strides = array<i32>} : memref<16x128xf32, #tpu.memory_space<vmem>>, vector<16x128xf32>,
    %c0_31 = arith.constant 0 : index
    %c0_32 = arith.constant 0 : index
    %45 = vector.load %arg13[%c0_31, %c0_32] : memref<16x128xf32, #tpu.memory_space<vmem>>, vector<16x128xf32>
    tpu.vector_store %arg13[%c0_31, %c0_32], %15 {strides = array<i32>} : memref<16x128xf32, #tpu.memory_space<vmem>>, vector<16x128xf32>,
    return
  }
  func.func @transform_0(%arg0: i32) -> (i32, i32) {
    %c0_i32 = arith.constant 0 : i32
    %c0_i32_0 = arith.constant 0 : i32
    return %arg0, %c0_i32 : i32, i32
  }
  func.func @transform_1(%arg0: i32) -> (i32, i32) {
    %c0_i32 = arith.constant 0 : i32
    %c0_i32_0 = arith.constant 0 : i32
    return %arg0, %c0_i32 : i32, i32
  }
  func.func @transform_2(%arg0: i32) -> (i32, i32) {
    %c0_i32 = arith.constant 0 : i32
    %c0_i32_0 = arith.constant 0 : i32
    %c0_i32_1 = arith.constant 0 : i32
    return %c0_i32, %c0_i32_0 : i32, i32
  }
  func.func @transform_3(%arg0: i32) -> (i32, i32) {
    %c0_i32 = arith.constant 0 : i32
    %c0_i32_0 = arith.constant 0 : i32
    %c0_i32_1 = arith.constant 0 : i32
    return %c0_i32, %c0_i32_0 : i32, i32
  }
  func.func @transform_4(%arg0: i32) -> (i32, i32) {
    %c0_i32 = arith.constant 0 : i32
    %c0_i32_0 = arith.constant 0 : i32
    %c0_i32_1 = arith.constant 0 : i32
    return %c0_i32, %c0_i32_0 : i32, i32
  }
  func.func @transform_5(%arg0: i32) -> (i32, i32) {
    %c0_i32 = arith.constant 0 : i32
    %c0_i32_0 = arith.constant 0 : i32
    %c0_i32_1 = arith.constant 0 : i32
    return %c0_i32, %c0_i32_0 : i32, i32
  }
  func.func @transform_6(%arg0: i32) -> (i32, i32) {
    %c0_i32 = arith.constant 0 : i32
    %c0_i32_0 = arith.constant 0 : i32
    %c0_i32_1 = arith.constant 0 : i32
    return %c0_i32, %c0_i32_0 : i32, i32
  }
  func.func @transform_7(%arg0: i32) -> (i32, i32) {
    %c0_i32 = arith.constant 0 : i32
    %c0_i32_0 = arith.constant 0 : i32
    %c0_i32_1 = arith.constant 0 : i32
    return %c0_i32, %c0_i32_0 : i32, i32
  }
  func.func @transform_8(%arg0: i32) -> (i32, i32) {
    %c0_i32 = arith.constant 0 : i32
    %c0_i32_0 = arith.constant 0 : i32
    %c0_i32_1 = arith.constant 0 : i32
    return %c0_i32, %c0_i32_0 : i32, i32
  }
  func.func @transform_9(%arg0: i32) -> (i32, i32) {
    %c0_i32 = arith.constant 0 : i32
    %c0_i32_0 = arith.constant 0 : i32
    %c0_i32_1 = arith.constant 0 : i32
    return %c0_i32, %c0_i32_0 : i32, i32
  }
  func.func @transform_10(%arg0: i32) -> (i32, i32) {
    %c0_i32 = arith.constant 0 : i32
    %c0_i32_0 = arith.constant 0 : i32
    return %arg0, %c0_i32 : i32, i32
  }
  func.func @transform_11(%arg0: i32) -> (i32, i32) {
    %c0_i32 = arith.constant 0 : i32
    %c0_i32_0 = arith.constant 0 : i32
    return %arg0, %c0_i32 : i32, i32
  }
  func.func @transform_12(%arg0: i32) -> (i32, i32) {
    %c0_i32 = arith.constant 0 : i32
    %c0_i32_0 = arith.constant 0 : i32
    return %arg0, %c0_i32 : i32, i32
  }
}

</mosaic_0001>

<llo_original>
// kernel: vae_forward.1
$region0: #{vae_forward.1}
  #allocation0 [shape = 'u32[]', space=smem, size = 0x4, offset = 0x4, fixed_abs, tag = 'smem constant byte address 0x4 - core index']
  #allocation1 [shape = 'u32[144,128]{1,0:T(1,128)}', space=vmem, size = 0x12000, scoped, tag = 'internal scratch']
  %s0 = inlined_call_operand.vmem [shape: bf16[16,896], index: 0, kind: input, shape index: {}]
  %s1 = inlined_call_operand.vmem [shape: f32[16,128], index: 1, kind: input, shape index: {}]
  %s2 = inlined_call_operand.hbm [shape: bf16[896,512], index: 2, kind: input, shape index: {}]
  %s3 = inlined_call_operand.vmem [shape: f32[1,512], index: 3, kind: input, shape index: {}]
  %s4 = inlined_call_operand.hbm [shape: bf16[512,256], index: 4, kind: input, shape index: {}]
  %s5 = inlined_call_operand.vmem [shape: f32[1,256], index: 5, kind: input, shape index: {}]
  %s6 = inlined_call_operand.vmem [shape: bf16[128,512], index: 6, kind: input, shape index: {}]
  %s7 = inlined_call_operand.vmem [shape: f32[1,512], index: 7, kind: input, shape index: {}]
  %s8 = inlined_call_operand.hbm [shape: bf16[512,896], index: 8, kind: input, shape index: {}]
  %s9 = inlined_call_operand.vmem [shape: f32[1,896], index: 9, kind: input, shape index: {}]
  %s10 = inlined_call_operand.vmem [shape: bf16[16,896], index: 10, kind: output, shape index: {0}]
  %s11 = inlined_call_operand.hbm [shape: f32[16,128], index: 11, kind: output, shape index: {1}]
  %s12 = inlined_call_operand.hbm [shape: f32[16,128], index: 12, kind: output, shape index: {2}]
  %13 = xla_tuple %s10, %s11, %s12
  %s14 = sld [smem:[#allocation0]]
  $region78: #{vae_forward.1} parent=0
    _
  %s16 = ssub.s32 1, %s14
  %s17 = scalar_select 0, %s16, %s14
  $region1: #{vae_forward.1} parent=0
    #allocation2 [shape = 'u8[917504]{0}', space=vmem, size = 0xe0000, scoped, tag = 'input window, operand 2, single buffered']
    #allocation3 [shape = 's32[1]{0}', space=sflag, size = 0x4, scoped, tag = 'scoped memory for vae_forward.1']
    #allocation4 [shape = 's32[1]{0}', space=sflag, size = 0x4, scoped, tag = 'scoped memory for vae_forward.1']
    #allocation5 [shape = 'u8[262144]{0}', space=vmem, size = 0x40000, scoped, tag = 'input window, operand 4, single buffered']
    #allocation6 [shape = 's32[1]{0}', space=sflag, size = 0x4, scoped, tag = 'scoped memory for vae_forward.1']
    #allocation7 [shape = 'u8[917504]{0}', space=vmem, size = 0xe0000, scoped, tag = 'input window, operand 8, single buffered']
    #allocation8 [shape = 'u8[8192]{0}', space=vmem, size = 0x2000, scoped, tag = 'output window, operand 1, single buffered']
    #allocation9 [shape = 'u8[8192]{0}', space=vmem, size = 0x2000, scoped, tag = 'output window, operand 2, single buffered']
    #allocation10 [shape = 's32[1]{0}', space=sflag, size = 0x4, scoped, tag = 'scoped memory for vae_forward.1']
    %18 = vsyncpa [#allocation3], 0
    %19 = vsyncpa [#allocation6], 0
    %20 = vsyncpa [#allocation4], 0
    %21 = vsyncpa [#allocation10], 0
    // Predicated region
    $region2: #{vae_forward.1} parent=1 // pred_check
      _
    $region3: #{vae_forward.1} parent=1 // pred_check_branch
      %23 = sbr.rel (0) target = $region5
    $region4: #{vae_forward.1} parent=1 // pred_region
      _
    $region5: #{vae_forward.1} parent=1 // pred_fallthru
      _
    // Predicated region
    $region6: #{vae_forward.1} parent=1 // pred_check
      _
    $region7: #{vae_forward.1} parent=1 // pred_check_branch
      %25 = sbr.rel (0) target = $region9
    $region8: #{vae_forward.1} parent=1 // pred_region
      _
    $region9: #{vae_forward.1} parent=1 // pred_fallthru
      _
    // Predicated region
    $region10: #{vae_forward.1} parent=1 // pred_check
      _
    $region11: #{vae_forward.1} parent=1 // pred_check_branch
      %27 = sbr.rel (0) target = $region13
    $region12: #{vae_forward.1} parent=1 // pred_region
      %s29 = ssub.s32 28672, 28672
      %30 = vsyncadd [#allocation3], %s29
      %s31 = sshll.u32 [#allocation2], 4
      %s32 = int_to_ptr.vmem [resolvable:$true] %s31
      %37 = dma.hbm_to_vmem [thread:$0]  %s2, 28672, %s32, [#allocation3], 256, 256, 16
    $region13: #{vae_forward.1} parent=1 // pred_fallthru
      _
    // Predicated region
    $region14: #{vae_forward.1} parent=1 // pred_check
      _
    $region15: #{vae_forward.1} parent=1 // pred_check_branch
      %39 = sbr.rel (0) target = $region17
    $region16: #{vae_forward.1} parent=1 // pred_region
      _
    $region17: #{vae_forward.1} parent=1 // pred_fallthru
      _
    // Predicated region
    $region18: #{vae_forward.1} parent=1 // pred_check
      _
    $region19: #{vae_forward.1} parent=1 // pred_check_branch
      %41 = sbr.rel (0) target = $region21
    $region20: #{vae_forward.1} parent=1 // pred_region
      %s43 = ssub.s32 8192, 8192
      %44 = vsyncadd [#allocation6], %s43
      %s45 = sshll.u32 [#allocation5], 4
      %s46 = int_to_ptr.vmem [resolvable:$true] %s45
      %51 = dma.hbm_to_vmem [thread:$0]  %s4, 8192, %s46, [#allocation6], 128, 128, 8
    $region21: #{vae_forward.1} parent=1 // pred_fallthru
      _
    // Predicated region
    $region22: #{vae_forward.1} parent=1 // pred_check
      _
    $region23: #{vae_forward.1} parent=1 // pred_check_branch
      %53 = sbr.rel (0) target = $region25
    $region24: #{vae_forward.1} parent=1 // pred_region
      _
    $region25: #{vae_forward.1} parent=1 // pred_fallthru
      _
    // Predicated region
    $region26: #{vae_forward.1} parent=1 // pred_check
      _
    $region27: #{vae_forward.1} parent=1 // pred_check_branch
      %55 = sbr.rel (0) target = $region29
    $region28: #{vae_forward.1} parent=1 // pred_region
      _
    $region29: #{vae_forward.1} parent=1 // pred_fallthru
      _
    // Predicated region
    $region30: #{vae_forward.1} parent=1 // pred_check
      _
    $region31: #{vae_forward.1} parent=1 // pred_check_branch
      %57 = sbr.rel (0) target = $region33
    $region32: #{vae_forward.1} parent=1 // pred_region
      _
    $region33: #{vae_forward.1} parent=1 // pred_fallthru
      _
    // Predicated region
    $region34: #{vae_forward.1} parent=1 // pred_check
      _
    $region35: #{vae_forward.1} parent=1 // pred_check_branch
      %59 = sbr.rel (0) target = $region37
    $region36: #{vae_forward.1} parent=1 // pred_region
      %s61 = ssub.s32 28672, 28672
      %62 = vsyncadd [#allocation6], %s61
      %s63 = sshll.u32 [#allocation7], 4
      %s64 = int_to_ptr.vmem [resolvable:$true] %s63
      %69 = dma.hbm_to_vmem [thread:$0]  %s8, 28672, %s64, [#allocation6], 448, 448, 28
    $region37: #{vae_forward.1} parent=1 // pred_fallthru
      _
    // Predicated region
    $region38: #{vae_forward.1} parent=1 // pred_check
      _
    $region39: #{vae_forward.1} parent=1 // pred_check_branch
      %71 = sbr.rel (0) target = $region41
    $region40: #{vae_forward.1} parent=1 // pred_region
      _
    $region41: #{vae_forward.1} parent=1 // pred_fallthru
      _
    // Predicated region
    $region42: #{vae_forward.1} parent=1 // pred_check
      _
    $region43: #{vae_forward.1} parent=1 // pred_check_branch
      %73 = sbr.rel (0) target = $region45
    $region44: #{vae_forward.1} parent=1 // pred_region
      %74 = dma.done [#allocation3], 28672
    $region45: #{vae_forward.1} parent=1 // pred_fallthru
      _
    // Predicated region
    $region46: #{vae_forward.1} parent=1 // pred_check
      _
    $region47: #{vae_forward.1} parent=1 // pred_check_branch
      %76 = sbr.rel (0) target = $region49
    $region48: #{vae_forward.1} parent=1 // pred_region
      %77 = dma.done [#allocation6], 8192
    $region49: #{vae_forward.1} parent=1 // pred_fallthru
      _
    // Predicated region
    $region50: #{vae_forward.1} parent=1 // pred_check
      _
    $region51: #{vae_forward.1} parent=1 // pred_check_branch
      %79 = sbr.rel (0) target = $region53
    $region52: #{vae_forward.1} parent=1 // pred_region
      %80 = dma.done [#allocation6], 28672
    $region53: #{vae_forward.1} parent=1 // pred_fallthru
      _
    %v82 = vld [vmem:[%s0] sm:$0xff]
    %v83 = vld [vmem:[%s0 + $0x8] sm:$0xff]
    %v84 = vld [vmem:[%s0 + $0x10] sm:$0xff]
    %v85 = vld [vmem:[%s0 + $0x18] sm:$0xf]
    %v86 = vld [vmem:[%s0 + $0x1c] sm:$0xff]
    %v87 = vld [vmem:[%s0 + $0x24] sm:$0xff]
    %v88 = vld [vmem:[%s0 + $0x2c] sm:$0xff]
    %v89 = vld [vmem:[%s0 + $0x34] sm:$0xf]
    %v90 = vld [vmem:[#allocation2] sm:$0xff]
    %v91 = vld [vmem:[#allocation2 + $0x8] sm:$0xff]
    %v92 = vld [vmem:[#allocation2 + $0x10] sm:$0xff]
    %v93 = vld [vmem:[#allocation2 + $0x18] sm:$0xff]
    %v94 = vld [vmem:[#allocation2 + $0x20] sm:$0xff]
    %v95 = vld [vmem:[#allocation2 + $0x28] sm:$0xff]
    %v96 = vld [vmem:[#allocation2 + $0x30] sm:$0xff]
    %v97 = vld [vmem:[#allocation2 + $0x38] sm:$0xff]
    %v98 = vld [vmem:[#allocation2 + $0x40] sm:$0xff]
    %v99 = vld [vmem:[#allocation2 + $0x48] sm:$0xff]
    %v100 = vld [vmem:[#allocation2 + $0x50] sm:$0xff]
    %v101 = vld [vmem:[#allocation2 + $0x58] sm:$0xff]
    %v102 = vld [vmem:[#allocation2 + $0x60] sm:$0xff]
    %v103 = vld [vmem:[#allocation2 + $0x68] sm:$0xff]
    %v104 = vld [vmem:[#allocation2 + $0x70] sm:$0xff]
    %v105 = vld [vmem:[#allocation2 + $0x78] sm:$0xff]
    %v106 = vld [vmem:[#allocation2 + $0x80] sm:$0xff]
    %v107 = vld [vmem:[#allocation2 + $0x88] sm:$0xff]
    %v108 = vld [vmem:[#allocation2 + $0x90] sm:$0xff]
    %v109 = vld [vmem:[#allocation2 + $0x98] sm:$0xff]
    %v110 = vld [vmem:[#allocation2 + $0xa0] sm:$0xff]
    %v111 = vld [vmem:[#allocation2 + $0xa8] sm:$0xff]
    %v112 = vld [vmem:[#allocation2 + $0xb0] sm:$0xff]
    %v113 = vld [vmem:[#allocation2 + $0xb8] sm:$0xff]
    %v114 = vld [vmem:[#allocation2 + $0xc0] sm:$0xff]
    %v115 = vld [vmem:[#allocation2 + $0xc8] sm:$0xff]
    %v116 = vld [vmem:[#allocation2 + $0xd0] sm:$0xff]
    %v117 = vld [vmem:[#allocation2 + $0xd8] sm:$0xff]
    %v118 = vld [vmem:[#allocation2 + $0xe0] sm:$0xff]
    %v119 = vld [vmem:[#allocation2 + $0xe8] sm:$0xff]
    %v120 = vld [vmem:[#allocation2 + $0xf0] sm:$0xff]
    %v121 = vld [vmem:[#allocation2 + $0xf8] sm:$0xff]
    %v122 = vld [vmem:[#allocation2 + $0x100] sm:$0xff]
    %v123 = vld [vmem:[#allocation2 + $0x108] sm:$0xff]
    %v124 = vld [vmem:[#allocation2 + $0x110] sm:$0xff]
    %v125 = vld [vmem:[#allocation2 + $0x118] sm:$0xff]
    %v126 = vld [vmem:[#allocation2 + $0x120] sm:$0xff]
    %v127 = vld [vmem:[#allocation2 + $0x128] sm:$0xff]
    %v128 = vld [vmem:[#allocation2 + $0x130] sm:$0xff]
    %v129 = vld [vmem:[#allocation2 + $0x138] sm:$0xff]
    %v130 = vld [vmem:[#allocation2 + $0x140] sm:$0xff]
    %v131 = vld [vmem:[#allocation2 + $0x148] sm:$0xff]
    %v132 = vld [vmem:[#allocation2 + $0x150] sm:$0xff]
    %v133 = vld [vmem:[#allocation2 + $0x158] sm:$0xff]
    %v134 = vld [vmem:[#allocation2 + $0x160] sm:$0xff]
    %v135 = vld [vmem:[#allocation2 + $0x168] sm:$0xff]
    %v136 = vld [vmem:[#allocation2 + $0x170] sm:$0xff]
    %v137 = vld [vmem:[#allocation2 + $0x178] sm:$0xff]
    %v138 = vld [vmem:[#allocation2 + $0x180] sm:$0xff]
    %v139 = vld [vmem:[#allocation2 + $0x188] sm:$0xff]
    %v140 = vld [vmem:[#allocation2 + $0x190] sm:$0xff]
    %v141 = vld [vmem:[#allocation2 + $0x198] sm:$0xff]
    %v142 = vld [vmem:[#allocation2 + $0x1a0] sm:$0xff]
    %v143 = vld [vmem:[#allocation2 + $0x1a8] sm:$0xff]
    %v144 = vld [vmem:[#allocation2 + $0x1b0] sm:$0xff]
    %v145 = vld [vmem:[#allocation2 + $0x1b8] sm:$0xff]
    %v146 = vld [vmem:[#allocation2 + $0x1c0] sm:$0xff]
    %v147 = vld [vmem:[#allocation2 + $0x1c8] sm:$0xff]
    %v148 = vld [vmem:[#allocation2 + $0x1d0] sm:$0xff]
    %v149 = vld [vmem:[#allocation2 + $0x1d8] sm:$0xff]
    %v150 = vld [vmem:[#allocation2 + $0x1e0] sm:$0xff]
    %v151 = vld [vmem:[#allocation2 + $0x1e8] sm:$0xff]
    %v152 = vld [vmem:[#allocation2 + $0x1f0] sm:$0xff]
    %v153 = vld [vmem:[#allocation2 + $0x1f8] sm:$0xff]
    %v154 = vld [vmem:[#allocation2 + $0x200] sm:$0xff]
    %v155 = vld [vmem:[#allocation2 + $0x208] sm:$0xff]
    %v156 = vld [vmem:[#allocation2 + $0x210] sm:$0xff]
    %v157 = vld [vmem:[#allocation2 + $0x218] sm:$0xff]
    %v158 = vld [vmem:[#allocation2 + $0x220] sm:$0xff]
    %v159 = vld [vmem:[#allocation2 + $0x228] sm:$0xff]
    %v160 = vld [vmem:[#allocation2 + $0x230] sm:$0xff]
    %v161 = vld [vmem:[#allocation2 + $0x238] sm:$0xff]
    %v162 = vld [vmem:[#allocation2 + $0x240] sm:$0xff]
    %v163 = vld [vmem:[#allocation2 + $0x248] sm:$0xff]
    %v164 = vld [vmem:[#allocation2 + $0x250] sm:$0xff]
    %v165 = vld [vmem:[#allocation2 + $0x258] sm:$0xff]
    %v166 = vld [vmem:[#allocation2 + $0x260] sm:$0xff]
    %v167 = vld [vmem:[#allocation2 + $0x268] sm:$0xff]
    %v168 = vld [vmem:[#allocation2 + $0x270] sm:$0xff]
    %v169 = vld [vmem:[#allocation2 + $0x278] sm:$0xff]
    %v170 = vld [vmem:[#allocation2 + $0x280] sm:$0xff]
    %v171 = vld [vmem:[#allocation2 + $0x288] sm:$0xff]
    %v172 = vld [vmem:[#allocation2 + $0x290] sm:$0xff]
    %v173 = vld [vmem:[#allocation2 + $0x298] sm:$0xff]
    %v174 = vld [vmem:[#allocation2 + $0x2a0] sm:$0xff]
    %v175 = vld [vmem:[#allocation2 + $0x2a8] sm:$0xff]
    %v176 = vld [vmem:[#allocation2 + $0x2b0] sm:$0xff]
    %v177 = vld [vmem:[#allocation2 + $0x2b8] sm:$0xff]
    %v178 = vld [vmem:[#allocation2 + $0x2c0] sm:$0xff]
    %v179 = vld [vmem:[#allocation2 + $0x2c8] sm:$0xff]
    %v180 = vld [vmem:[#allocation2 + $0x2d0] sm:$0xff]
    %v181 = vld [vmem:[#allocation2 + $0x2d8] sm:$0xff]
    %v182 = vld [vmem:[#allocation2 + $0x2e0] sm:$0xff]
    %v183 = vld [vmem:[#allocation2 + $0x2e8] sm:$0xff]
    %v184 = vld [vmem:[#allocation2 + $0x2f0] sm:$0xff]
    %v185 = vld [vmem:[#allocation2 + $0x2f8] sm:$0xff]
    %v186 = vld [vmem:[#allocation2 + $0x300] sm:$0xff]
    %v187 = vld [vmem:[#allocation2 + $0x308] sm:$0xff]
    %v188 = vld [vmem:[#allocation2 + $0x310] sm:$0xff]
    %v189 = vld [vmem:[#allocation2 + $0x318] sm:$0xff]
    %v190 = vld [vmem:[#allocation2 + $0x320] sm:$0xff]
    %v191 = vld [vmem:[#allocation2 + $0x328] sm:$0xff]
    %v192 = vld [vmem:[#allocation2 + $0x330] sm:$0xff]
    %v193 = vld [vmem:[#allocation2 + $0x338] sm:$0xff]
    %v194 = vld [vmem:[#allocation2 + $0x340] sm:$0xff]
    %v195 = vld [vmem:[#allocation2 + $0x348] sm:$0xff]
    %v196 = vld [vmem:[#allocation2 + $0x350] sm:$0xff]
    %v197 = vld [vmem:[#allocation2 + $0x358] sm:$0xff]
    %v198 = vld [vmem:[#allocation2 + $0x360] sm:$0xff]
    %v199 = vld [vmem:[#allocation2 + $0x368] sm:$0xff]
    %v200 = vld [vmem:[#allocation2 + $0x370] sm:$0xff]
    %v201 = vld [vmem:[#allocation2 + $0x378] sm:$0xff]
    %v202 = vld [vmem:[#allocation2 + $0x380] sm:$0xff]
    %v203 = vld [vmem:[#allocation2 + $0x388] sm:$0xff]
    %v204 = vld [vmem:[#allocation2 + $0x390] sm:$0xff]
    %v205 = vld [vmem:[#allocation2 + $0x398] sm:$0xff]
    %v206 = vld [vmem:[#allocation2 + $0x3a0] sm:$0xff]
    %v207 = vld [vmem:[#allocation2 + $0x3a8] sm:$0xff]
    %v208 = vld [vmem:[#allocation2 + $0x3b0] sm:$0xff]
    %v209 = vld [vmem:[#allocation2 + $0x3b8] sm:$0xff]
    %v210 = vld [vmem:[#allocation2 + $0x3c0] sm:$0xff]
    %v211 = vld [vmem:[#allocation2 + $0x3c8] sm:$0xff]
    %v212 = vld [vmem:[#allocation2 + $0x3d0] sm:$0xff]
    %v213 = vld [vmem:[#allocation2 + $0x3d8] sm:$0xff]
    %v214 = vld [vmem:[#allocation2 + $0x3e0] sm:$0xff]
    %v215 = vld [vmem:[#allocation2 + $0x3e8] sm:$0xff]
    %v216 = vld [vmem:[#allocation2 + $0x3f0] sm:$0xff]
    %v217 = vld [vmem:[#allocation2 + $0x3f8] sm:$0xff]
    %v218 = vld [vmem:[#allocation2 + $0x400] sm:$0xff]
    %v219 = vld [vmem:[#allocation2 + $0x408] sm:$0xff]
    %v220 = vld [vmem:[#allocation2 + $0x410] sm:$0xff]
    %v221 = vld [vmem:[#allocation2 + $0x418] sm:$0xff]
    %v222 = vld [vmem:[#allocation2 + $0x420] sm:$0xff]
    %v223 = vld [vmem:[#allocation2 + $0x428] sm:$0xff]
    %v224 = vld [vmem:[#allocation2 + $0x430] sm:$0xff]
    %v225 = vld [vmem:[#allocation2 + $0x438] sm:$0xff]
    %v226 = vld [vmem:[#allocation2 + $0x440] sm:$0xff]
    %v227 = vld [vmem:[#allocation2 + $0x448] sm:$0xff]
    %v228 = vld [vmem:[#allocation2 + $0x450] sm:$0xff]
    %v229 = vld [vmem:[#allocation2 + $0x458] sm:$0xff]
    %v230 = vld [vmem:[#allocation2 + $0x460] sm:$0xff]
    %v231 = vld [vmem:[#allocation2 + $0x468] sm:$0xff]
    %v232 = vld [vmem:[#allocation2 + $0x470] sm:$0xff]
    %v233 = vld [vmem:[#allocation2 + $0x478] sm:$0xff]
    %v234 = vld [vmem:[#allocation2 + $0x480] sm:$0xff]
    %v235 = vld [vmem:[#allocation2 + $0x488] sm:$0xff]
    %v236 = vld [vmem:[#allocation2 + $0x490] sm:$0xff]
    %v237 = vld [vmem:[#allocation2 + $0x498] sm:$0xff]
    %v238 = vld [vmem:[#allocation2 + $0x4a0] sm:$0xff]
    %v239 = vld [vmem:[#allocation2 + $0x4a8] sm:$0xff]
    %v240 = vld [vmem:[#allocation2 + $0x4b0] sm:$0xff]
    %v241 = vld [vmem:[#allocation2 + $0x4b8] sm:$0xff]
    %v242 = vld [vmem:[#allocation2 + $0x4c0] sm:$0xff]
    %v243 = vld [vmem:[#allocation2 + $0x4c8] sm:$0xff]
    %v244 = vld [vmem:[#allocation2 + $0x4d0] sm:$0xff]
    %v245 = vld [vmem:[#allocation2 + $0x4d8] sm:$0xff]
    %v246 = vld [vmem:[#allocation2 + $0x4e0] sm:$0xff]
    %v247 = vld [vmem:[#allocation2 + $0x4e8] sm:$0xff]
    %v248 = vld [vmem:[#allocation2 + $0x4f0] sm:$0xff]
    %v249 = vld [vmem:[#allocation2 + $0x4f8] sm:$0xff]
    %v250 = vld [vmem:[#allocation2 + $0x500] sm:$0xff]
    %v251 = vld [vmem:[#allocation2 + $0x508] sm:$0xff]
    %v252 = vld [vmem:[#allocation2 + $0x510] sm:$0xff]
    %v253 = vld [vmem:[#allocation2 + $0x518] sm:$0xff]
    %v254 = vld [vmem:[#allocation2 + $0x520] sm:$0xff]
    %v255 = vld [vmem:[#allocation2 + $0x528] sm:$0xff]
    %v256 = vld [vmem:[#allocation2 + $0x530] sm:$0xff]
    %v257 = vld [vmem:[#allocation2 + $0x538] sm:$0xff]
    %v258 = vld [vmem:[#allocation2 + $0x540] sm:$0xff]
    %v259 = vld [vmem:[#allocation2 + $0x548] sm:$0xff]
    %v260 = vld [vmem:[#allocation2 + $0x550] sm:$0xff]
    %v261 = vld [vmem:[#allocation2 + $0x558] sm:$0xff]
    %v262 = vld [vmem:[#allocation2 + $0x560] sm:$0xff]
    %v263 = vld [vmem:[#allocation2 + $0x568] sm:$0xff]
    %v264 = vld [vmem:[#allocation2 + $0x570] sm:$0xff]
    %v265 = vld [vmem:[#allocation2 + $0x578] sm:$0xff]
    %v266 = vld [vmem:[#allocation2 + $0x580] sm:$0xff]
    %v267 = vld [vmem:[#allocation2 + $0x588] sm:$0xff]
    %v268 = vld [vmem:[#allocation2 + $0x590] sm:$0xff]
    %v269 = vld [vmem:[#allocation2 + $0x598] sm:$0xff]
    %v270 = vld [vmem:[#allocation2 + $0x5a0] sm:$0xff]
    %v271 = vld [vmem:[#allocation2 + $0x5a8] sm:$0xff]
    %v272 = vld [vmem:[#allocation2 + $0x5b0] sm:$0xff]
    %v273 = vld [vmem:[#allocation2 + $0x5b8] sm:$0xff]
    %v274 = vld [vmem:[#allocation2 + $0x5c0] sm:$0xff]
    %v275 = vld [vmem:[#allocation2 + $0x5c8] sm:$0xff]
    %v276 = vld [vmem:[#allocation2 + $0x5d0] sm:$0xff]
    %v277 = vld [vmem:[#allocation2 + $0x5d8] sm:$0xff]
    %v278 = vld [vmem:[#allocation2 + $0x5e0] sm:$0xff]
    %v279 = vld [vmem:[#allocation2 + $0x5e8] sm:$0xff]
    %v280 = vld [vmem:[#allocation2 + $0x5f0] sm:$0xff]
    %v281 = vld [vmem:[#allocation2 + $0x5f8] sm:$0xff]
    %v282 = vld [vmem:[#allocation2 + $0x600] sm:$0xff]
    %v283 = vld [vmem:[#allocation2 + $0x608] sm:$0xff]
    %v284 = vld [vmem:[#allocation2 + $0x610] sm:$0xff]
    %v285 = vld [vmem:[#allocation2 + $0x618] sm:$0xff]
    %v286 = vld [vmem:[#allocation2 + $0x620] sm:$0xff]
    %v287 = vld [vmem:[#allocation2 + $0x628] sm:$0xff]
    %v288 = vld [vmem:[#allocation2 + $0x630] sm:$0xff]
    %v289 = vld [vmem:[#allocation2 + $0x638] sm:$0xff]
    %v290 = vld [vmem:[#allocation2 + $0x640] sm:$0xff]
    %v291 = vld [vmem:[#allocation2 + $0x648] sm:$0xff]
    %v292 = vld [vmem:[#allocation2 + $0x650] sm:$0xff]
    %v293 = vld [vmem:[#allocation2 + $0x658] sm:$0xff]
    %v294 = vld [vmem:[#allocation2 + $0x660] sm:$0xff]
    %v295 = vld [vmem:[#allocation2 + $0x668] sm:$0xff]
    %v296 = vld [vmem:[#allocation2 + $0x670] sm:$0xff]
    %v297 = vld [vmem:[#allocation2 + $0x678] sm:$0xff]
    %v298 = vld [vmem:[#allocation2 + $0x680] sm:$0xff]
    %v299 = vld [vmem:[#allocation2 + $0x688] sm:$0xff]
    %v300 = vld [vmem:[#allocation2 + $0x690] sm:$0xff]
    %v301 = vld [vmem:[#allocation2 + $0x698] sm:$0xff]
    %v302 = vld [vmem:[#allocation2 + $0x6a0] sm:$0xff]
    %v303 = vld [vmem:[#allocation2 + $0x6a8] sm:$0xff]
    %v304 = vld [vmem:[#allocation2 + $0x6b0] sm:$0xff]
    %v305 = vld [vmem:[#allocation2 + $0x6b8] sm:$0xff]
    %v306 = vld [vmem:[#allocation2 + $0x6c0] sm:$0xff]
    %v307 = vld [vmem:[#allocation2 + $0x6c8] sm:$0xff]
    %v308 = vld [vmem:[#allocation2 + $0x6d0] sm:$0xff]
    %v309 = vld [vmem:[#allocation2 + $0x6d8] sm:$0xff]
    %v310 = vld [vmem:[#allocation2 + $0x6e0] sm:$0xff]
    %v311 = vld [vmem:[#allocation2 + $0x6e8] sm:$0xff]
    %v312 = vld [vmem:[#allocation2 + $0x6f0] sm:$0xff]
    %v313 = vld [vmem:[#allocation2 + $0x6f8] sm:$0xff]
    %v314 = vld [vmem:[%s3] sm:$0xf]
    %v316 = vlaneseq
    %v317 = vshrl.u32 %v316, 7
    %v318 = vsub.s32 0, %v317
    %v319 = vrot.slane %v314, %v318
    %v320 = vlaneseq
    %v321 = vshrl.u32 %v320, 7
    %v322 = vsub.s32 1, %v321
    %v323 = vrot.slane %v314, %v322
    %v324 = vlaneseq
    %v325 = vshrl.u32 %v324, 7
    %v326 = vsub.s32 2, %v325
    %v327 = vrot.slane %v314, %v326
    %v328 = vlaneseq
    %v329 = vshrl.u32 %v328, 7
    %v330 = vsub.s32 3, %v329
    %v331 = vrot.slane %v314, %v330
    %v344 = vunpack.c.l.b16 %v82
    %v345 = vunpack.c.h.b16 %v82
    %v346 = vunpack.c.l.b16 %v83
    %v347 = vunpack.c.h.b16 %v83
    %v348 = vunpack.c.l.b16 %v84
    %v349 = vunpack.c.h.b16 %v84
    %v350 = vunpack.c.l.b16 %v85
    %v351 = vunpack.c.l.b16 %v86
    %v352 = vunpack.c.h.b16 %v86
    %v353 = vunpack.c.l.b16 %v87
    %v354 = vunpack.c.h.b16 %v87
    %v355 = vunpack.c.l.b16 %v88
    %v356 = vunpack.c.h.b16 %v88
    %v357 = vunpack.c.l.b16 %v89
    %v358 = vpack.c.b16 %v351, %v344
    %v359 = vpack.c.b16 %v352, %v345
    %v360 = vpack.c.b16 %v353, %v346
    %v361 = vpack.c.b16 %v354, %v347
    %v362 = vpack.c.b16 %v355, %v348
    %v363 = vpack.c.b16 %v356, %v349
    %v364 = vpack.c.b16 %v357, %v350
    %v596 = vunpack.c.l.b16 %v90
    %v597 = vunpack.c.h.b16 %v90
    %v598 = vunpack.c.l.b16 %v91
    %v599 = vunpack.c.h.b16 %v91
    %v600 = vunpack.c.l.b16 %v92
    %v601 = vunpack.c.h.b16 %v92
    %v602 = vunpack.c.l.b16 %v93
    %v603 = vunpack.c.h.b16 %v93
    %v604 = vunpack.c.l.b16 %v94
    %v605 = vunpack.c.h.b16 %v94
    %v606 = vunpack.c.l.b16 %v95
    %v607 = vunpack.c.h.b16 %v95
    %v608 = vunpack.c.l.b16 %v96
    %v609 = vunpack.c.h.b16 %v96
    %v610 = vunpack.c.l.b16 %v97
    %v611 = vunpack.c.h.b16 %v97
    %v612 = vunpack.c.l.b16 %v98
    %v613 = vunpack.c.h.b16 %v98
    %v614 = vunpack.c.l.b16 %v99
    %v615 = vunpack.c.h.b16 %v99
    %v616 = vunpack.c.l.b16 %v100
    %v617 = vunpack.c.h.b16 %v100
    %v618 = vunpack.c.l.b16 %v101
    %v619 = vunpack.c.h.b16 %v101
    %v620 = vunpack.c.l.b16 %v102
    %v621 = vunpack.c.h.b16 %v102
    %v622 = vunpack.c.l.b16 %v103
    %v623 = vunpack.c.h.b16 %v103
    %v624 = vunpack.c.l.b16 %v104
    %v625 = vunpack.c.h.b16 %v104
    %v626 = vunpack.c.l.b16 %v105
    %v627 = vunpack.c.h.b16 %v105
    %v628 = vunpack.c.l.b16 %v106
    %v629 = vunpack.c.h.b16 %v106
    %v630 = vunpack.c.l.b16 %v107
    %v631 = vunpack.c.h.b16 %v107
    %v632 = vunpack.c.l.b16 %v108
    %v633 = vunpack.c.h.b16 %v108
    %v634 = vunpack.c.l.b16 %v109
    %v635 = vunpack.c.h.b16 %v109
    %v636 = vunpack.c.l.b16 %v110
    %v637 = vunpack.c.h.b16 %v110
    %v638 = vunpack.c.l.b16 %v111
    %v639 = vunpack.c.h.b16 %v111
    %v640 = vunpack.c.l.b16 %v112
    %v641 = vunpack.c.h.b16 %v112
    %v642 = vunpack.c.l.b16 %v113
    %v643 = vunpack.c.h.b16 %v113
    %v644 = vunpack.c.l.b16 %v114
    %v645 = vunpack.c.h.b16 %v114
    %v646 = vunpack.c.l.b16 %v115
    %v647 = vunpack.c.h.b16 %v115
    %v648 = vunpack.c.l.b16 %v116
    %v649 = vunpack.c.h.b16 %v116
    %v650 = vunpack.c.l.b16 %v117
    %v651 = vunpack.c.h.b16 %v117
    %v652 = vunpack.c.l.b16 %v118
    %v653 = vunpack.c.h.b16 %v118
    %v654 = vunpack.c.l.b16 %v119
    %v655 = vunpack.c.h.b16 %v119
    %v656 = vunpack.c.l.b16 %v120
    %v657 = vunpack.c.h.b16 %v120
    %v658 = vunpack.c.l.b16 %v121
    %v659 = vunpack.c.h.b16 %v121
    %v660 = vunpack.c.l.b16 %v122
    %v661 = vunpack.c.h.b16 %v122
    %v662 = vunpack.c.l.b16 %v123
    %v663 = vunpack.c.h.b16 %v123
    %v664 = vunpack.c.l.b16 %v124
    %v665 = vunpack.c.h.b16 %v124
    %v666 = vunpack.c.l.b16 %v125
    %v667 = vunpack.c.h.b16 %v125
    %v668 = vunpack.c.l.b16 %v126
    %v669 = vunpack.c.h.b16 %v126
    %v670 = vunpack.c.l.b16 %v127
    %v671 = vunpack.c.h.b16 %v127
    %v672 = vunpack.c.l.b16 %v128
    %v673 = vunpack.c.h.b16 %v128
    %v674 = vunpack.c.l.b16 %v129
    %v675 = vunpack.c.h.b16 %v129
    %v676 = vunpack.c.l.b16 %v130
    %v677 = vunpack.c.h.b16 %v130
    %v678 = vunpack.c.l.b16 %v131
    %v679 = vunpack.c.h.b16 %v131
    %v680 = vunpack.c.l.b16 %v132
    %v681 = vunpack.c.h.b16 %v132
    %v682 = vunpack.c.l.b16 %v133
    %v683 = vunpack.c.h.b16 %v133
    %v684 = vunpack.c.l.b16 %v134
    %v685 = vunpack.c.h.b16 %v134
    %v686 = vunpack.c.l.b16 %v135
    %v687 = vunpack.c.h.b16 %v135
    %v688 = vunpack.c.l.b16 %v136
    %v689 = vunpack.c.h.b16 %v136
    %v690 = vunpack.c.l.b16 %v137
    %v691 = vunpack.c.h.b16 %v137
    %v692 = vunpack.c.l.b16 %v138
    %v693 = vunpack.c.h.b16 %v138
    %v694 = vunpack.c.l.b16 %v139
    %v695 = vunpack.c.h.b16 %v139
    %v696 = vunpack.c.l.b16 %v140
    %v697 = vunpack.c.h.b16 %v140
    %v698 = vunpack.c.l.b16 %v141
    %v699 = vunpack.c.h.b16 %v141
    %v700 = vunpack.c.l.b16 %v142
    %v701 = vunpack.c.h.b16 %v142
    %v702 = vunpack.c.l.b16 %v143
    %v703 = vunpack.c.h.b16 %v143
    %v704 = vunpack.c.l.b16 %v144
    %v705 = vunpack.c.h.b16 %v144
    %v706 = vunpack.c.l.b16 %v145
    %v707 = vunpack.c.h.b16 %v145
    %v708 = vunpack.c.l.b16 %v146
    %v709 = vunpack.c.h.b16 %v146
    %v710 = vunpack.c.l.b16 %v147
    %v711 = vunpack.c.h.b16 %v147
    %v712 = vunpack.c.l.b16 %v148
    %v713 = vunpack.c.h.b16 %v148
    %v714 = vunpack.c.l.b16 %v149
    %v715 = vunpack.c.h.b16 %v149
    %v716 = vunpack.c.l.b16 %v150
    %v717 = vunpack.c.h.b16 %v150
    %v718 = vunpack.c.l.b16 %v151
    %v719 = vunpack.c.h.b16 %v151
    %v720 = vunpack.c.l.b16 %v152
    %v721 = vunpack.c.h.b16 %v152
    %v722 = vunpack.c.l.b16 %v153
    %v723 = vunpack.c.h.b16 %v153
    %v724 = vunpack.c.l.b16 %v154
    %v725 = vunpack.c.h.b16 %v154
    %v726 = vunpack.c.l.b16 %v155
    %v727 = vunpack.c.h.b16 %v155
    %v728 = vunpack.c.l.b16 %v156
    %v729 = vunpack.c.h.b16 %v156
    %v730 = vunpack.c.l.b16 %v157
    %v731 = vunpack.c.h.b16 %v157
    %v732 = vunpack.c.l.b16 %v158
    %v733 = vunpack.c.h.b16 %v158
    %v734 = vunpack.c.l.b16 %v159
    %v735 = vunpack.c.h.b16 %v159
    %v736 = vunpack.c.l.b16 %v160
    %v737 = vunpack.c.h.b16 %v160
    %v738 = vunpack.c.l.b16 %v161
    %v739 = vunpack.c.h.b16 %v161
    %v740 = vunpack.c.l.b16 %v162
    %v741 = vunpack.c.h.b16 %v162
    %v742 = vunpack.c.l.b16 %v163
    %v743 = vunpack.c.h.b16 %v163
    %v744 = vunpack.c.l.b16 %v164
    %v745 = vunpack.c.h.b16 %v164
    %v746 = vunpack.c.l.b16 %v165
    %v747 = vunpack.c.h.b16 %v165
    %v748 = vunpack.c.l.b16 %v166
    %v749 = vunpack.c.h.b16 %v166
    %v750 = vunpack.c.l.b16 %v167
    %v751 = vunpack.c.h.b16 %v167
    %v752 = vunpack.c.l.b16 %v168
    %v753 = vunpack.c.h.b16 %v168
    %v754 = vunpack.c.l.b16 %v169
    %v755 = vunpack.c.h.b16 %v169
    %v756 = vunpack.c.l.b16 %v170
    %v757 = vunpack.c.h.b16 %v170
    %v758 = vunpack.c.l.b16 %v171
    %v759 = vunpack.c.h.b16 %v171
    %v760 = vunpack.c.l.b16 %v172
    %v761 = vunpack.c.h.b16 %v172
    %v762 = vunpack.c.l.b16 %v173
    %v763 = vunpack.c.h.b16 %v173
    %v764 = vunpack.c.l.b16 %v174
    %v765 = vunpack.c.h.b16 %v174
    %v766 = vunpack.c.l.b16 %v175
    %v767 = vunpack.c.h.b16 %v175
    %v768 = vunpack.c.l.b16 %v176
    %v769 = vunpack.c.h.b16 %v176
    %v770 = vunpack.c.l.b16 %v177
    %v771 = vunpack.c.h.b16 %v177
    %v772 = vunpack.c.l.b16 %v178
    %v773 = vunpack.c.h.b16 %v178
    %v774 = vunpack.c.l.b16 %v179
    %v775 = vunpack.c.h.b16 %v179
    %v776 = vunpack.c.l.b16 %v180
    %v777 = vunpack.c.h.b16 %v180
    %v778 = vunpack.c.l.b16 %v181
    %v779 = vunpack.c.h.b16 %v181
    %v780 = vunpack.c.l.b16 %v182
    %v781 = vunpack.c.h.b16 %v182
    %v782 = vunpack.c.l.b16 %v183
    %v783 = vunpack.c.h.b16 %v183
    %v784 = vunpack.c.l.b16 %v184
    %v785 = vunpack.c.h.b16 %v184
    %v786 = vunpack.c.l.b16 %v185
    %v787 = vunpack.c.h.b16 %v185
    %v788 = vunpack.c.l.b16 %v186
    %v789 = vunpack.c.h.b16 %v186
    %v790 = vunpack.c.l.b16 %v187
    %v791 = vunpack.c.h.b16 %v187
    %v792 = vunpack.c.l.b16 %v188
    %v793 = vunpack.c.h.b16 %v188
    %v794 = vunpack.c.l.b16 %v189
    %v795 = vunpack.c.h.b16 %v189
    %v796 = vunpack.c.l.b16 %v190
    %v797 = vunpack.c.h.b16 %v190
    %v798 = vunpack.c.l.b16 %v191
    %v799 = vunpack.c.h.b16 %v191
    %v800 = vunpack.c.l.b16 %v192
    %v801 = vunpack.c.h.b16 %v192
    %v802 = vunpack.c.l.b16 %v193
    %v803 = vunpack.c.h.b16 %v193
    %v804 = vunpack.c.l.b16 %v194
    %v805 = vunpack.c.h.b16 %v194
    %v806 = vunpack.c.l.b16 %v195
    %v807 = vunpack.c.h.b16 %v195
    %v808 = vunpack.c.l.b16 %v196
    %v809 = vunpack.c.h.b16 %v196
    %v810 = vunpack.c.l.b16 %v197
    %v811 = vunpack.c.h.b16 %v197
    %v812 = vunpack.c.l.b16 %v198
    %v813 = vunpack.c.h.b16 %v198
    %v814 = vunpack.c.l.b16 %v199
    %v815 = vunpack.c.h.b16 %v199
    %v816 = vunpack.c.l.b16 %v200
    %v817 = vunpack.c.h.b16 %v200
    %v818 = vunpack.c.l.b16 %v201
    %v819 = vunpack.c.h.b16 %v201
    %v820 = vunpack.c.l.b16 %v202
    %v821 = vunpack.c.h.b16 %v202
    %v822 = vunpack.c.l.b16 %v203
    %v823 = vunpack.c.h.b16 %v203
    %v824 = vunpack.c.l.b16 %v204
    %v825 = vunpack.c.h.b16 %v204
    %v826 = vunpack.c.l.b16 %v205
    %v827 = vunpack.c.h.b16 %v205
    %v828 = vunpack.c.l.b16 %v206
    %v829 = vunpack.c.h.b16 %v206
    %v830 = vunpack.c.l.b16 %v207
    %v831 = vunpack.c.h.b16 %v207
    %v832 = vunpack.c.l.b16 %v208
    %v833 = vunpack.c.h.b16 %v208
    %v834 = vunpack.c.l.b16 %v209
    %v835 = vunpack.c.h.b16 %v209
    %v836 = vunpack.c.l.b16 %v210
    %v837 = vunpack.c.h.b16 %v210
    %v838 = vunpack.c.l.b16 %v211
    %v839 = vunpack.c.h.b16 %v211
    %v840 = vunpack.c.l.b16 %v212
    %v841 = vunpack.c.h.b16 %v212
    %v842 = vunpack.c.l.b16 %v213
    %v843 = vunpack.c.h.b16 %v213
    %v844 = vunpack.c.l.b16 %v214
    %v845 = vunpack.c.h.b16 %v214
    %v846 = vunpack.c.l.b16 %v215
    %v847 = vunpack.c.h.b16 %v215
    %v848 = vunpack.c.l.b16 %v216
    %v849 = vunpack.c.h.b16 %v216
    %v850 = vunpack.c.l.b16 %v217
    %v851 = vunpack.c.h.b16 %v217
    %v852 = vunpack.c.l.b16 %v218
    %v853 = vunpack.c.h.b16 %v218
    %v854 = vunpack.c.l.b16 %v219
    %v855 = vunpack.c.h.b16 %v219
    %v856 = vunpack.c.l.b16 %v220
    %v857 = vunpack.c.h.b16 %v220
    %v858 = vunpack.c.l.b16 %v221
    %v859 = vunpack.c.h.b16 %v221
    %v860 = vunpack.c.l.b16 %v222
    %v861 = vunpack.c.h.b16 %v222
    %v862 = vunpack.c.l.b16 %v223
    %v863 = vunpack.c.h.b16 %v223
    %v864 = vunpack.c.l.b16 %v224
    %v865 = vunpack.c.h.b16 %v224
    %v866 = vunpack.c.l.b16 %v225
    %v867 = vunpack.c.h.b16 %v225
    %v868 = vunpack.c.l.b16 %v226
    %v869 = vunpack.c.h.b16 %v226
    %v870 = vunpack.c.l.b16 %v227
    %v871 = vunpack.c.h.b16 %v227
    %v872 = vunpack.c.l.b16 %v228
    %v873 = vunpack.c.h.b16 %v228
    %v874 = vunpack.c.l.b16 %v229
    %v875 = vunpack.c.h.b16 %v229
    %v876 = vunpack.c.l.b16 %v230
    %v877 = vunpack.c.h.b16 %v230
    %v878 = vunpack.c.l.b16 %v231
    %v879 = vunpack.c.h.b16 %v231
    %v880 = vunpack.c.l.b16 %v232
    %v881 = vunpack.c.h.b16 %v232
    %v882 = vunpack.c.l.b16 %v233
    %v883 = vunpack.c.h.b16 %v233
    %v884 = vunpack.c.l.b16 %v234
    %v885 = vunpack.c.h.b16 %v234
    %v886 = vunpack.c.l.b16 %v235
    %v887 = vunpack.c.h.b16 %v235
    %v888 = vunpack.c.l.b16 %v236
    %v889 = vunpack.c.h.b16 %v236
    %v890 = vunpack.c.l.b16 %v237
    %v891 = vunpack.c.h.b16 %v237
    %v892 = vunpack.c.l.b16 %v238
    %v893 = vunpack.c.h.b16 %v238
    %v894 = vunpack.c.l.b16 %v239
    %v895 = vunpack.c.h.b16 %v239
    %v896 = vunpack.c.l.b16 %v240
    %v897 = vunpack.c.h.b16 %v240
    %v898 = vunpack.c.l.b16 %v241
    %v899 = vunpack.c.h.b16 %v241
    %v900 = vunpack.c.l.b16 %v242
    %v901 = vunpack.c.h.b16 %v242
    %v902 = vunpack.c.l.b16 %v243
    %v903 = vunpack.c.h.b16 %v243
    %v904 = vunpack.c.l.b16 %v244
    %v905 = vunpack.c.h.b16 %v244
    %v906 = vunpack.c.l.b16 %v245
    %v907 = vunpack.c.h.b16 %v245
    %v908 = vunpack.c.l.b16 %v246
    %v909 = vunpack.c.h.b16 %v246
    %v910 = vunpack.c.l.b16 %v247
    %v911 = vunpack.c.h.b16 %v247
    %v912 = vunpack.c.l.b16 %v248
    %v913 = vunpack.c.h.b16 %v248
    %v914 = vunpack.c.l.b16 %v249
    %v915 = vunpack.c.h.b16 %v249
    %v916 = vunpack.c.l.b16 %v250
    %v917 = vunpack.c.h.b16 %v250
    %v918 = vunpack.c.l.b16 %v251
    %v919 = vunpack.c.h.b16 %v251
    %v920 = vunpack.c.l.b16 %v252
    %v921 = vunpack.c.h.b16 %v252
    %v922 = vunpack.c.l.b16 %v253
    %v923 = vunpack.c.h.b16 %v253
    %v924 = vunpack.c.l.b16 %v254
    %v925 = vunpack.c.h.b16 %v254
    %v926 = vunpack.c.l.b16 %v255
    %v927 = vunpack.c.h.b16 %v255
    %v928 = vunpack.c.l.b16 %v256
    %v929 = vunpack.c.h.b16 %v256
    %v930 = vunpack.c.l.b16 %v257
    %v931 = vunpack.c.h.b16 %v257
    %v932 = vunpack.c.l.b16 %v258
    %v933 = vunpack.c.h.b16 %v258
    %v934 = vunpack.c.l.b16 %v259
    %v935 = vunpack.c.h.b16 %v259
    %v936 = vunpack.c.l.b16 %v260
    %v937 = vunpack.c.h.b16 %v260
    %v938 = vunpack.c.l.b16 %v261
    %v939 = vunpack.c.h.b16 %v261
    %v940 = vunpack.c.l.b16 %v262
    %v941 = vunpack.c.h.b16 %v262
    %v942 = vunpack.c.l.b16 %v263
    %v943 = vunpack.c.h.b16 %v263
    %v944 = vunpack.c.l.b16 %v264
    %v945 = vunpack.c.h.b16 %v264
    %v946 = vunpack.c.l.b16 %v265
    %v947 = vunpack.c.h.b16 %v265
    %v948 = vunpack.c.l.b16 %v266
    %v949 = vunpack.c.h.b16 %v266
    %v950 = vunpack.c.l.b16 %v267
    %v951 = vunpack.c.h.b16 %v267
    %v952 = vunpack.c.l.b16 %v268
    %v953 = vunpack.c.h.b16 %v268
    %v954 = vunpack.c.l.b16 %v269
    %v955 = vunpack.c.h.b16 %v269
    %v956 = vunpack.c.l.b16 %v270
    %v957 = vunpack.c.h.b16 %v270
    %v958 = vunpack.c.l.b16 %v271
    %v959 = vunpack.c.h.b16 %v271
    %v960 = vunpack.c.l.b16 %v272
    %v961 = vunpack.c.h.b16 %v272
    %v962 = vunpack.c.l.b16 %v273
    %v963 = vunpack.c.h.b16 %v273
    %v964 = vunpack.c.l.b16 %v274
    %v965 = vunpack.c.h.b16 %v274
    %v966 = vunpack.c.l.b16 %v275
    %v967 = vunpack.c.h.b16 %v275
    %v968 = vunpack.c.l.b16 %v276
    %v969 = vunpack.c.h.b16 %v276
    %v970 = vunpack.c.l.b16 %v277
    %v971 = vunpack.c.h.b16 %v277
    %v972 = vunpack.c.l.b16 %v278
    %v973 = vunpack.c.h.b16 %v278
    %v974 = vunpack.c.l.b16 %v279
    %v975 = vunpack.c.h.b16 %v279
    %v976 = vunpack.c.l.b16 %v280
    %v977 = vunpack.c.h.b16 %v280
    %v978 = vunpack.c.l.b16 %v281
    %v979 = vunpack.c.h.b16 %v281
    %v980 = vunpack.c.l.b16 %v282
    %v981 = vunpack.c.h.b16 %v282
    %v982 = vunpack.c.l.b16 %v283
    %v983 = vunpack.c.h.b16 %v283
    %v984 = vunpack.c.l.b16 %v284
    %v985 = vunpack.c.h.b16 %v284
    %v986 = vunpack.c.l.b16 %v285
    %v987 = vunpack.c.h.b16 %v285
    %v988 = vunpack.c.l.b16 %v286
    %v989 = vunpack.c.h.b16 %v286
    %v990 = vunpack.c.l.b16 %v287
    %v991 = vunpack.c.h.b16 %v287
    %v992 = vunpack.c.l.b16 %v288
    %v993 = vunpack.c.h.b16 %v288
    %v994 = vunpack.c.l.b16 %v289
    %v995 = vunpack.c.h.b16 %v289
    %v996 = vunpack.c.l.b16 %v290
    %v997 = vunpack.c.h.b16 %v290
    %v998 = vunpack.c.l.b16 %v291
    %v999 = vunpack.c.h.b16 %v291
    %v1000 = vunpack.c.l.b16 %v292
    %v1001 = vunpack.c.h.b16 %v292
    %v1002 = vunpack.c.l.b16 %v293
    %v1003 = vunpack.c.h.b16 %v293
    %v1004 = vunpack.c.l.b16 %v294
    %v1005 = vunpack.c.h.b16 %v294
    %v1006 = vunpack.c.l.b16 %v295
    %v1007 = vunpack.c.h.b16 %v295
    %v1008 = vunpack.c.l.b16 %v296
    %v1009 = vunpack.c.h.b16 %v296
    %v1010 = vunpack.c.l.b16 %v297
    %v1011 = vunpack.c.h.b16 %v297
    %v1012 = vunpack.c.l.b16 %v298
    %v1013 = vunpack.c.h.b16 %v298
    %v1014 = vunpack.c.l.b16 %v299
    %v1015 = vunpack.c.h.b16 %v299
    %v1016 = vunpack.c.l.b16 %v300
    %v1017 = vunpack.c.h.b16 %v300
    %v1018 = vunpack.c.l.b16 %v301
    %v1019 = vunpack.c.h.b16 %v301
    %v1020 = vunpack.c.l.b16 %v302
    %v1021 = vunpack.c.h.b16 %v302
    %v1022 = vunpack.c.l.b16 %v303
    %v1023 = vunpack.c.h.b16 %v303
    %v1024 = vunpack.c.l.b16 %v304
    %v1025 = vunpack.c.h.b16 %v304
    %v1026 = vunpack.c.l.b16 %v305
    %v1027 = vunpack.c.h.b16 %v305
    %v1028 = vunpack.c.l.b16 %v306
    %v1029 = vunpack.c.h.b16 %v306
    %v1030 = vunpack.c.l.b16 %v307
    %v1031 = vunpack.c.h.b16 %v307
    %v1032 = vunpack.c.l.b16 %v308
    %v1033 = vunpack.c.h.b16 %v308
    %v1034 = vunpack.c.l.b16 %v309
    %v1035 = vunpack.c.h.b16 %v309
    %v1036 = vunpack.c.l.b16 %v310
    %v1037 = vunpack.c.h.b16 %v310
    %v1038 = vunpack.c.l.b16 %v311
    %v1039 = vunpack.c.h.b16 %v311
    %v1040 = vunpack.c.l.b16 %v312
    %v1041 = vunpack.c.h.b16 %v312
    %v1042 = vunpack.c.l.b16 %v313
    %v1043 = vunpack.c.h.b16 %v313
    %v1044 = vpack.c.b16 %v600, %v596
    %v1045 = vpack.c.b16 %v601, %v597
    %v1046 = vpack.c.b16 %v602, %v598
    %v1047 = vpack.c.b16 %v603, %v599
    %v1048 = vpack.c.b16 %v608, %v604
    %v1049 = vpack.c.b16 %v609, %v605
    %v1050 = vpack.c.b16 %v610, %v606
    %v1051 = vpack.c.b16 %v611, %v607
    %v1052 = vpack.c.b16 %v616, %v612
    %v1053 = vpack.c.b16 %v617, %v613
    %v1054 = vpack.c.b16 %v618, %v614
    %v1055 = vpack.c.b16 %v619, %v615
    %v1056 = vpack.c.b16 %v624, %v620
    %v1057 = vpack.c.b16 %v625, %v621
    %v1058 = vpack.c.b16 %v626, %v622
    %v1059 = vpack.c.b16 %v627, %v623
    %v1060 = vpack.c.b16 %v632, %v628
    %v1061 = vpack.c.b16 %v633, %v629
    %v1062 = vpack.c.b16 %v634, %v630
    %v1063 = vpack.c.b16 %v635, %v631
    %v1064 = vpack.c.b16 %v640, %v636
    %v1065 = vpack.c.b16 %v641, %v637
    %v1066 = vpack.c.b16 %v642, %v638
    %v1067 = vpack.c.b16 %v643, %v639
    %v1068 = vpack.c.b16 %v648, %v644
    %v1069 = vpack.c.b16 %v649, %v645
    %v1070 = vpack.c.b16 %v650, %v646
    %v1071 = vpack.c.b16 %v651, %v647
    %v1072 = vpack.c.b16 %v656, %v652
    %v1073 = vpack.c.b16 %v657, %v653
    %v1074 = vpack.c.b16 %v658, %v654
    %v1075 = vpack.c.b16 %v659, %v655
    %v1076 = vpack.c.b16 %v664, %v660
    %v1077 = vpack.c.b16 %v665, %v661
    %v1078 = vpack.c.b16 %v666, %v662
    %v1079 = vpack.c.b16 %v667, %v663
    %v1080 = vpack.c.b16 %v672, %v668
    %v1081 = vpack.c.b16 %v673, %v669
    %v1082 = vpack.c.b16 %v674, %v670
    %v1083 = vpack.c.b16 %v675, %v671
    %v1084 = vpack.c.b16 %v680, %v676
    %v1085 = vpack.c.b16 %v681, %v677
    %v1086 = vpack.c.b16 %v682, %v678
    %v1087 = vpack.c.b16 %v683, %v679
    %v1088 = vpack.c.b16 %v688, %v684
    %v1089 = vpack.c.b16 %v689, %v685
    %v1090 = vpack.c.b16 %v690, %v686
    %v1091 = vpack.c.b16 %v691, %v687
    %v1092 = vpack.c.b16 %v696, %v692
    %v1093 = vpack.c.b16 %v697, %v693
    %v1094 = vpack.c.b16 %v698, %v694
    %v1095 = vpack.c.b16 %v699, %v695
    %v1096 = vpack.c.b16 %v704, %v700
    %v1097 = vpack.c.b16 %v705, %v701
    %v1098 = vpack.c.b16 %v706, %v702
    %v1099 = vpack.c.b16 %v707, %v703
    %v1100 = vpack.c.b16 %v712, %v708
    %v1101 = vpack.c.b16 %v713, %v709
    %v1102 = vpack.c.b16 %v714, %v710
    %v1103 = vpack.c.b16 %v715, %v711
    %v1104 = vpack.c.b16 %v720, %v716
    %v1105 = vpack.c.b16 %v721, %v717
    %v1106 = vpack.c.b16 %v722, %v718
    %v1107 = vpack.c.b16 %v723, %v719
    %v1108 = vpack.c.b16 %v728, %v724
    %v1109 = vpack.c.b16 %v729, %v725
    %v1110 = vpack.c.b16 %v730, %v726
    %v1111 = vpack.c.b16 %v731, %v727
    %v1112 = vpack.c.b16 %v736, %v732
    %v1113 = vpack.c.b16 %v737, %v733
    %v1114 = vpack.c.b16 %v738, %v734
    %v1115 = vpack.c.b16 %v739, %v735
    %v1116 = vpack.c.b16 %v744, %v740
    %v1117 = vpack.c.b16 %v745, %v741
    %v1118 = vpack.c.b16 %v746, %v742
    %v1119 = vpack.c.b16 %v747, %v743
    %v1120 = vpack.c.b16 %v752, %v748
    %v1121 = vpack.c.b16 %v753, %v749
    %v1122 = vpack.c.b16 %v754, %v750
    %v1123 = vpack.c.b16 %v755, %v751
    %v1124 = vpack.c.b16 %v760, %v756
    %v1125 = vpack.c.b16 %v761, %v757
    %v1126 = vpack.c.b16 %v762, %v758
    %v1127 = vpack.c.b16 %v763, %v759
    %v1128 = vpack.c.b16 %v768, %v764
    %v1129 = vpack.c.b16 %v769, %v765
    %v1130 = vpack.c.b16 %v770, %v766
    %v1131 = vpack.c.b16 %v771, %v767
    %v1132 = vpack.c.b16 %v776, %v772
    %v1133 = vpack.c.b16 %v777, %v773
    %v1134 = vpack.c.b16 %v778, %v774
    %v1135 = vpack.c.b16 %v779, %v775
    %v1136 = vpack.c.b16 %v784, %v780
    %v1137 = vpack.c.b16 %v785, %v781
    %v1138 = vpack.c.b16 %v786, %v782
    %v1139 = vpack.c.b16 %v787, %v783
    %v1140 = vpack.c.b16 %v792, %v788
    %v1141 = vpack.c.b16 %v793, %v789
    %v1142 = vpack.c.b16 %v794, %v790
    %v1143 = vpack.c.b16 %v795, %v791
    %v1144 = vpack.c.b16 %v800, %v796
    %v1145 = vpack.c.b16 %v801, %v797
    %v1146 = vpack.c.b16 %v802, %v798
    %v1147 = vpack.c.b16 %v803, %v799
    %v1148 = vpack.c.b16 %v808, %v804
    %v1149 = vpack.c.b16 %v809, %v805
    %v1150 = vpack.c.b16 %v810, %v806
    %v1151 = vpack.c.b16 %v811, %v807
    %v1152 = vpack.c.b16 %v816, %v812
    %v1153 = vpack.c.b16 %v817, %v813
    %v1154 = vpack.c.b16 %v818, %v814
    %v1155 = vpack.c.b16 %v819, %v815
    %v1156 = vpack.c.b16 %v824, %v820
    %v1157 = vpack.c.b16 %v825, %v821
    %v1158 = vpack.c.b16 %v826, %v822
    %v1159 = vpack.c.b16 %v827, %v823
    %v1160 = vpack.c.b16 %v832, %v828
    %v1161 = vpack.c.b16 %v833, %v829
    %v1162 = vpack.c.b16 %v834, %v830
    %v1163 = vpack.c.b16 %v835, %v831
    %v1164 = vpack.c.b16 %v840, %v836
    %v1165 = vpack.c.b16 %v841, %v837
    %v1166 = vpack.c.b16 %v842, %v838
    %v1167 = vpack.c.b16 %v843, %v839
    %v1168 = vpack.c.b16 %v848, %v844
    %v1169 = vpack.c.b16 %v849, %v845
    %v1170 = vpack.c.b16 %v850, %v846
    %v1171 = vpack.c.b16 %v851, %v847
    %v1172 = vpack.c.b16 %v856, %v852
    %v1173 = vpack.c.b16 %v857, %v853
    %v1174 = vpack.c.b16 %v858, %v854
    %v1175 = vpack.c.b16 %v859, %v855
    %v1176 = vpack.c.b16 %v864, %v860
    %v1177 = vpack.c.b16 %v865, %v861
    %v1178 = vpack.c.b16 %v866, %v862
    %v1179 = vpack.c.b16 %v867, %v863
    %v1180 = vpack.c.b16 %v872, %v868
    %v1181 = vpack.c.b16 %v873, %v869
    %v1182 = vpack.c.b16 %v874, %v870
    %v1183 = vpack.c.b16 %v875, %v871
    %v1184 = vpack.c.b16 %v880, %v876
    %v1185 = vpack.c.b16 %v881, %v877
    %v1186 = vpack.c.b16 %v882, %v878
    %v1187 = vpack.c.b16 %v883, %v879
    %v1188 = vpack.c.b16 %v888, %v884
    %v1189 = vpack.c.b16 %v889, %v885
    %v1190 = vpack.c.b16 %v890, %v886
    %v1191 = vpack.c.b16 %v891, %v887
    %v1192 = vpack.c.b16 %v896, %v892
    %v1193 = vpack.c.b16 %v897, %v893
    %v1194 = vpack.c.b16 %v898, %v894
    %v1195 = vpack.c.b16 %v899, %v895
    %v1196 = vpack.c.b16 %v904, %v900
    %v1197 = vpack.c.b16 %v905, %v901
    %v1198 = vpack.c.b16 %v906, %v902
    %v1199 = vpack.c.b16 %v907, %v903
    %v1200 = vpack.c.b16 %v912, %v908
    %v1201 = vpack.c.b16 %v913, %v909
    %v1202 = vpack.c.b16 %v914, %v910
    %v1203 = vpack.c.b16 %v915, %v911
    %v1204 = vpack.c.b16 %v920, %v916
    %v1205 = vpack.c.b16 %v921, %v917
    %v1206 = vpack.c.b16 %v922, %v918
    %v1207 = vpack.c.b16 %v923, %v919
    %v1208 = vpack.c.b16 %v928, %v924
    %v1209 = vpack.c.b16 %v929, %v925
    %v1210 = vpack.c.b16 %v930, %v926
    %v1211 = vpack.c.b16 %v931, %v927
    %v1212 = vpack.c.b16 %v936, %v932
    %v1213 = vpack.c.b16 %v937, %v933
    %v1214 = vpack.c.b16 %v938, %v934
    %v1215 = vpack.c.b16 %v939, %v935
    %v1216 = vpack.c.b16 %v944, %v940
    %v1217 = vpack.c.b16 %v945, %v941
    %v1218 = vpack.c.b16 %v946, %v942
    %v1219 = vpack.c.b16 %v947, %v943
    %v1220 = vpack.c.b16 %v952, %v948
    %v1221 = vpack.c.b16 %v953, %v949
    %v1222 = vpack.c.b16 %v954, %v950
    %v1223 = vpack.c.b16 %v955, %v951
    %v1224 = vpack.c.b16 %v960, %v956
    %v1225 = vpack.c.b16 %v961, %v957
    %v1226 = vpack.c.b16 %v962, %v958
    %v1227 = vpack.c.b16 %v963, %v959
    %v1228 = vpack.c.b16 %v968, %v964
    %v1229 = vpack.c.b16 %v969, %v965
    %v1230 = vpack.c.b16 %v970, %v966
    %v1231 = vpack.c.b16 %v971, %v967
    %v1232 = vpack.c.b16 %v976, %v972
    %v1233 = vpack.c.b16 %v977, %v973
    %v1234 = vpack.c.b16 %v978, %v974
    %v1235 = vpack.c.b16 %v979, %v975
    %v1236 = vpack.c.b16 %v984, %v980
    %v1237 = vpack.c.b16 %v985, %v981
    %v1238 = vpack.c.b16 %v986, %v982
    %v1239 = vpack.c.b16 %v987, %v983
    %v1240 = vpack.c.b16 %v992, %v988
    %v1241 = vpack.c.b16 %v993, %v989
    %v1242 = vpack.c.b16 %v994, %v990
    %v1243 = vpack.c.b16 %v995, %v991
    %v1244 = vpack.c.b16 %v1000, %v996
    %v1245 = vpack.c.b16 %v1001, %v997
    %v1246 = vpack.c.b16 %v1002, %v998
    %v1247 = vpack.c.b16 %v1003, %v999
    %v1248 = vpack.c.b16 %v1008, %v1004
    %v1249 = vpack.c.b16 %v1009, %v1005
    %v1250 = vpack.c.b16 %v1010, %v1006
    %v1251 = vpack.c.b16 %v1011, %v1007
    %v1252 = vpack.c.b16 %v1016, %v1012
    %v1253 = vpack.c.b16 %v1017, %v1013
    %v1254 = vpack.c.b16 %v1018, %v1014
    %v1255 = vpack.c.b16 %v1019, %v1015
    %v1256 = vpack.c.b16 %v1024, %v1020
    %v1257 = vpack.c.b16 %v1025, %v1021
    %v1258 = vpack.c.b16 %v1026, %v1022
    %v1259 = vpack.c.b16 %v1027, %v1023
    %v1260 = vpack.c.b16 %v1032, %v1028
    %v1261 = vpack.c.b16 %v1033, %v1029
    %v1262 = vpack.c.b16 %v1034, %v1030
    %v1263 = vpack.c.b16 %v1035, %v1031
    %v1264 = vpack.c.b16 %v1040, %v1036
    %v1265 = vpack.c.b16 %v1041, %v1037
    %v1266 = vpack.c.b16 %v1042, %v1038
    %v1267 = vpack.c.b16 %v1043, %v1039
    %1492 = vmatprep.subr.bf16.mxu0 %v1045
    %1493 = vmatpush1.bf16.msra.mxu0 %v1044
    %1494 = vmatprep.subr.bf16.mxu0 %v1049
    %1495 = vmatpush1.bf16.msra.mxu0 %v1048
    %1496 = vmatprep.subr.bf16.mxu0 %v1053
    %1497 = vmatpush1.bf16.msra.mxu0 %v1052
    %1498 = vmatprep.subr.bf16.mxu0 %v1057
    %1499 = vmatpush1.bf16.msra.mxu0 %v1056
    %1500 = vmatprep.subr.bf16.mxu0 %v1061
    %1501 = vmatpush1.bf16.msra.mxu0 %v1060
    %1502 = vmatprep.subr.bf16.mxu0 %v1065
    %1503 = vmatpush1.bf16.msra.mxu0 %v1064
    %1504 = vmatprep.subr.bf16.mxu0 %v1069
    %1505 = vmatpush1.bf16.msra.mxu0 %v1068
    %1506 = vmatprep.subr.bf16.mxu0 %v1073
    %1507 = vmatpush1.bf16.msra.mxu0 %v1072
    %1508 = vmatprep.subr.bf16.mxu0 %v1077
    %1509 = vmatpush1.bf16.msra.mxu0 %v1076
    %1510 = vmatprep.subr.bf16.mxu0 %v1081
    %1511 = vmatpush1.bf16.msra.mxu0 %v1080
    %1512 = vmatprep.subr.bf16.mxu0 %v1085
    %1513 = vmatpush1.bf16.msra.mxu0 %v1084
    %1514 = vmatprep.subr.bf16.mxu0 %v1089
    %1515 = vmatpush1.bf16.msra.mxu0 %v1088
    %1516 = vmatprep.subr.bf16.mxu0 %v1093
    %1517 = vmatpush1.bf16.msra.mxu0 %v1092
    %1518 = vmatprep.subr.bf16.mxu0 %v1097
    %1519 = vmatpush1.bf16.msra.mxu0 %v1096
    %1520 = vmatprep.subr.bf16.mxu0 %v1101
    %1521 = vmatpush1.bf16.msra.mxu0 %v1100
    %1522 = vmatprep.subr.bf16.mxu0 %v1105
    %1523 = vmatpush1.bf16.msra.mxu0 %v1104
    %1524 = vmatprep.mubr.bf16.mxu0 %v359
    %1525 = vmatmul.mubr.bf16.gmra.mrb[0].mxu0 %v358
    %v1526 = vpop.f32.mrb[0].mxu0
    %v1527 = vadd.f32 %v319, %v1526
    %v1528 = vpop.f32.mrb[0].mxu0
    %v1529 = vadd.f32 %v323, %v1528
    %v1530 = vpop.f32.mrb[0].mxu0
    %v1531 = vadd.f32 %v319, %v1530
    %v1532 = vpop.f32.mrb[0].mxu0
    %v1533 = vadd.f32 %v323, %v1532
    %1534 = vdwg.mxu0
    %1535 = vmatprep.subr.bf16.mxu0 %v1109
    %1536 = vmatpush1.bf16.msra.mxu0 %v1108
    %1537 = vmatprep.subr.bf16.mxu0 %v1113
    %1538 = vmatpush1.bf16.msra.mxu0 %v1112
    %1539 = vmatprep.subr.bf16.mxu0 %v1117
    %1540 = vmatpush1.bf16.msra.mxu0 %v1116
    %1541 = vmatprep.subr.bf16.mxu0 %v1121
    %1542 = vmatpush1.bf16.msra.mxu0 %v1120
    %1543 = vmatprep.subr.bf16.mxu0 %v1125
    %1544 = vmatpush1.bf16.msra.mxu0 %v1124
    %1545 = vmatprep.subr.bf16.mxu0 %v1129
    %1546 = vmatpush1.bf16.msra.mxu0 %v1128
    %1547 = vmatprep.subr.bf16.mxu0 %v1133
    %1548 = vmatpush1.bf16.msra.mxu0 %v1132
    %1549 = vmatprep.subr.bf16.mxu0 %v1137
    %1550 = vmatpush1.bf16.msra.mxu0 %v1136
    %1551 = vmatprep.subr.bf16.mxu0 %v1141
    %1552 = vmatpush1.bf16.msra.mxu0 %v1140
    %1553 = vmatprep.subr.bf16.mxu0 %v1145
    %1554 = vmatpush1.bf16.msra.mxu0 %v1144
    %1555 = vmatprep.subr.bf16.mxu0 %v1149
    %1556 = vmatpush1.bf16.msra.mxu0 %v1148
    %1557 = vmatprep.subr.bf16.mxu0 %v1153
    %1558 = vmatpush1.bf16.msra.mxu0 %v1152
    %1559 = vmatprep.subr.bf16.mxu0 %v1157
    %1560 = vmatpush1.bf16.msra.mxu0 %v1156
    %1561 = vmatprep.subr.bf16.mxu0 %v1161
    %1562 = vmatpush1.bf16.msra.mxu0 %v1160
    %1563 = vmatprep.subr.bf16.mxu0 %v1165
    %1564 = vmatpush1.bf16.msra.mxu0 %v1164
    %1565 = vmatprep.subr.bf16.mxu0 %v1169
    %1566 = vmatpush1.bf16.msra.mxu0 %v1168
    %1567 = vmatprep.mubr.bf16.mxu0 %v361
    %1568 = vmatmul.mubr.bf16.gmra.mrb[0].mxu0 %v360
    %v1569 = vpop.f32.mrb[0].mxu0
    %v1570 = vadd.f32 %v1527, %v1569
    %v1571 = vpop.f32.mrb[0].mxu0
    %v1572 = vadd.f32 %v1529, %v1571
    %v1573 = vpop.f32.mrb[0].mxu0
    %v1574 = vadd.f32 %v1531, %v1573
    %v1575 = vpop.f32.mrb[0].mxu0
    %v1576 = vadd.f32 %v1533, %v1575
    %1577 = vdwg.mxu0
    %1578 = vmatprep.subr.bf16.mxu0 %v1173
    %1579 = vmatpush1.bf16.msra.mxu0 %v1172
    %1580 = vmatprep.subr.bf16.mxu0 %v1177
    %1581 = vmatpush1.bf16.msra.mxu0 %v1176
    %1582 = vmatprep.subr.bf16.mxu0 %v1181
    %1583 = vmatpush1.bf16.msra.mxu0 %v1180
    %1584 = vmatprep.subr.bf16.mxu0 %v1185
    %1585 = vmatpush1.bf16.msra.mxu0 %v1184
    %1586 = vmatprep.subr.bf16.mxu0 %v1189
    %1587 = vmatpush1.bf16.msra.mxu0 %v1188
    %1588 = vmatprep.subr.bf16.mxu0 %v1193
    %1589 = vmatpush1.bf16.msra.mxu0 %v1192
    %1590 = vmatprep.subr.bf16.mxu0 %v1197
    %1591 = vmatpush1.bf16.msra.mxu0 %v1196
    %1592 = vmatprep.subr.bf16.mxu0 %v1201
    %1593 = vmatpush1.bf16.msra.mxu0 %v1200
    %1594 = vmatprep.subr.bf16.mxu0 %v1205
    %1595 = vmatpush1.bf16.msra.mxu0 %v1204
    %1596 = vmatprep.subr.bf16.mxu0 %v1209
    %1597 = vmatpush1.bf16.msra.mxu0 %v1208
    %1598 = vmatprep.subr.bf16.mxu0 %v1213
    %1599 = vmatpush1.bf16.msra.mxu0 %v1212
    %1600 = vmatprep.subr.bf16.mxu0 %v1217
    %1601 = vmatpush1.bf16.msra.mxu0 %v1216
    %1602 = vmatprep.subr.bf16.mxu0 %v1221
    %1603 = vmatpush1.bf16.msra.mxu0 %v1220
    %1604 = vmatprep.subr.bf16.mxu0 %v1225
    %1605 = vmatpush1.bf16.msra.mxu0 %v1224
    %1606 = vmatprep.subr.bf16.mxu0 %v1229
    %1607 = vmatpush1.bf16.msra.mxu0 %v1228
    %1608 = vmatprep.subr.bf16.mxu0 %v1233
    %1609 = vmatpush1.bf16.msra.mxu0 %v1232
    %1610 = vmatprep.mubr.bf16.mxu0 %v363
    %1611 = vmatmul.mubr.bf16.gmra.mrb[0].mxu0 %v362
    %v1612 = vpop.f32.mrb[0].mxu0
    %v1613 = vadd.f32 %v1570, %v1612
    %v1614 = vpop.f32.mrb[0].mxu0
    %v1615 = vadd.f32 %v1572, %v1614
    %v1616 = vpop.f32.mrb[0].mxu0
    %v1617 = vadd.f32 %v1574, %v1616
    %v1618 = vpop.f32.mrb[0].mxu0
    %v1619 = vadd.f32 %v1576, %v1618
    %1620 = vdwg.mxu0
    %1621 = vmatprep.subr.bf16.mxu0 %v1237
    %1622 = vmatpush1.bf16.msra.mxu0 %v1236
    %1623 = vmatprep.subr.bf16.mxu0 %v1241
    %1624 = vmatpush1.bf16.msra.mxu0 %v1240
    %1625 = vmatprep.subr.bf16.mxu0 %v1245
    %1626 = vmatpush1.bf16.msra.mxu0 %v1244
    %1627 = vmatprep.subr.bf16.mxu0 %v1249
    %1628 = vmatpush1.bf16.msra.mxu0 %v1248
    %1629 = vmatprep.subr.bf16.mxu0 %v1253
    %1630 = vmatpush1.bf16.msra.mxu0 %v1252
    %1631 = vmatprep.subr.bf16.mxu0 %v1257
    %1632 = vmatpush1.bf16.msra.mxu0 %v1256
    %1633 = vmatprep.subr.bf16.mxu0 %v1261
    %1634 = vmatpush1.bf16.msra.mxu0 %v1260
    %1635 = vmatprep.subr.bf16.mxu0 %v1265
    %1636 = vmatpush1.bf16.msra.mxu0 %v1264
    %1637 = vmatprep.subr.bf16.mxu0 0
    %1638 = vmatpush1.bf16.msra.mxu0 0
    %1639 = vmatprep.subr.bf16.mxu0 0
    %1640 = vmatpush1.bf16.msra.mxu0 0
    %1641 = vmatprep.subr.bf16.mxu0 0
    %1642 = vmatpush1.bf16.msra.mxu0 0
    %1643 = vmatprep.subr.bf16.mxu0 0
    %1644 = vmatpush1.bf16.msra.mxu0 0
    %1645 = vmatprep.subr.bf16.mxu0 0
    %1646 = vmatpush1.bf16.msra.mxu0 0
    %1647 = vmatprep.subr.bf16.mxu0 0
    %1648 = vmatpush1.bf16.msra.mxu0 0
    %1649 = vmatprep.subr.bf16.mxu0 0
    %1650 = vmatpush1.bf16.msra.mxu0 0
    %1651 = vmatprep.subr.bf16.mxu0 0
    %1652 = vmatpush1.bf16.msra.mxu0 0
    %1653 = vmatprep.mubr.bf16.mxu0 0
    %1654 = vmatmul.mubr.bf16.gmra.mrb[0].mxu0 %v364
    %v1655 = vpop.f32.mrb[0].mxu0
    %v1656 = vadd.f32 %v1613, %v1655
    %v1657 = vpop.f32.mrb[0].mxu0
    %v1658 = vadd.f32 %v1615, %v1657
    %v1659 = vpop.f32.mrb[0].mxu0
    %v1660 = vadd.f32 %v1617, %v1659
    %v1661 = vpop.f32.mrb[0].mxu0
    %v1662 = vadd.f32 %v1619, %v1661
    %1663 = vdwg.mxu0
    %1664 = vmatprep.subr.bf16.mxu0 %v1047
    %1665 = vmatpush1.bf16.msra.mxu0 %v1046
    %1666 = vmatprep.subr.bf16.mxu0 %v1051
    %1667 = vmatpush1.bf16.msra.mxu0 %v1050
    %1668 = vmatprep.subr.bf16.mxu0 %v1055
    %1669 = vmatpush1.bf16.msra.mxu0 %v1054
    %1670 = vmatprep.subr.bf16.mxu0 %v1059
    %1671 = vmatpush1.bf16.msra.mxu0 %v1058
    %1672 = vmatprep.subr.bf16.mxu0 %v1063
    %1673 = vmatpush1.bf16.msra.mxu0 %v1062
    %1674 = vmatprep.subr.bf16.mxu0 %v1067
    %1675 = vmatpush1.bf16.msra.mxu0 %v1066
    %1676 = vmatprep.subr.bf16.mxu0 %v1071
    %1677 = vmatpush1.bf16.msra.mxu0 %v1070
    %1678 = vmatprep.subr.bf16.mxu0 %v1075
    %1679 = vmatpush1.bf16.msra.mxu0 %v1074
    %1680 = vmatprep.subr.bf16.mxu0 %v1079
    %1681 = vmatpush1.bf16.msra.mxu0 %v1078
    %1682 = vmatprep.subr.bf16.mxu0 %v1083
    %1683 = vmatpush1.bf16.msra.mxu0 %v1082
    %1684 = vmatprep.subr.bf16.mxu0 %v1087
    %1685 = vmatpush1.bf16.msra.mxu0 %v1086
    %1686 = vmatprep.subr.bf16.mxu0 %v1091
    %1687 = vmatpush1.bf16.msra.mxu0 %v1090
    %1688 = vmatprep.subr.bf16.mxu0 %v1095
    %1689 = vmatpush1.bf16.msra.mxu0 %v1094
    %1690 = vmatprep.subr.bf16.mxu0 %v1099
    %1691 = vmatpush1.bf16.msra.mxu0 %v1098
    %1692 = vmatprep.subr.bf16.mxu0 %v1103
    %1693 = vmatpush1.bf16.msra.mxu0 %v1102
    %1694 = vmatprep.subr.bf16.mxu0 %v1107
    %1695 = vmatpush1.bf16.msra.mxu0 %v1106
    %1696 = vmatprep.mubr.bf16.mxu0 %v359
    %1697 = vmatmul.mubr.bf16.gmra.mrb[0].mxu0 %v358
    %v1698 = vpop.f32.mrb[0].mxu0
    %v1699 = vadd.f32 %v327, %v1698
    %v1700 = vpop.f32.mrb[0].mxu0
    %v1701 = vadd.f32 %v331, %v1700
    %v1702 = vpop.f32.mrb[0].mxu0
    %v1703 = vadd.f32 %v327, %v1702
    %v1704 = vpop.f32.mrb[0].mxu0
    %v1705 = vadd.f32 %v331, %v1704
    %1706 = vdwg.mxu0
    %1707 = vmatprep.subr.bf16.mxu0 %v1111
    %1708 = vmatpush1.bf16.msra.mxu0 %v1110
    %1709 = vmatprep.subr.bf16.mxu0 %v1115
    %1710 = vmatpush1.bf16.msra.mxu0 %v1114
    %1711 = vmatprep.subr.bf16.mxu0 %v1119
    %1712 = vmatpush1.bf16.msra.mxu0 %v1118
    %1713 = vmatprep.subr.bf16.mxu0 %v1123
    %1714 = vmatpush1.bf16.msra.mxu0 %v1122
    %1715 = vmatprep.subr.bf16.mxu0 %v1127
    %1716 = vmatpush1.bf16.msra.mxu0 %v1126
    %1717 = vmatprep.subr.bf16.mxu0 %v1131
    %1718 = vmatpush1.bf16.msra.mxu0 %v1130
    %1719 = vmatprep.subr.bf16.mxu0 %v1135
    %1720 = vmatpush1.bf16.msra.mxu0 %v1134
    %1721 = vmatprep.subr.bf16.mxu0 %v1139
    %1722 = vmatpush1.bf16.msra.mxu0 %v1138
    %1723 = vmatprep.subr.bf16.mxu0 %v1143
    %1724 = vmatpush1.bf16.msra.mxu0 %v1142
    %1725 = vmatprep.subr.bf16.mxu0 %v1147
    %1726 = vmatpush1.bf16.msra.mxu0 %v1146
    %1727 = vmatprep.subr.bf16.mxu0 %v1151
    %1728 = vmatpush1.bf16.msra.mxu0 %v1150
    %1729 = vmatprep.subr.bf16.mxu0 %v1155
    %1730 = vmatpush1.bf16.msra.mxu0 %v1154
    %1731 = vmatprep.subr.bf16.mxu0 %v1159
    %1732 = vmatpush1.bf16.msra.mxu0 %v1158
    %1733 = vmatprep.subr.bf16.mxu0 %v1163
    %1734 = vmatpush1.bf16.msra.mxu0 %v1162
    %1735 = vmatprep.subr.bf16.mxu0 %v1167
    %1736 = vmatpush1.bf16.msra.mxu0 %v1166
    %1737 = vmatprep.subr.bf16.mxu0 %v1171
    %1738 = vmatpush1.bf16.msra.mxu0 %v1170
    %1739 = vmatprep.mubr.bf16.mxu0 %v361
    %1740 = vmatmul.mubr.bf16.gmra.mrb[0].mxu0 %v360
    %v1741 = vpop.f32.mrb[0].mxu0
    %v1742 = vadd.f32 %v1699, %v1741
    %v1743 = vpop.f32.mrb[0].mxu0
    %v1744 = vadd.f32 %v1701, %v1743
    %v1745 = vpop.f32.mrb[0].mxu0
    %v1746 = vadd.f32 %v1703, %v1745
    %v1747 = vpop.f32.mrb[0].mxu0
    %v1748 = vadd.f32 %v1705, %v1747
    %1749 = vdwg.mxu0
    %1750 = vmatprep.subr.bf16.mxu0 %v1175
    %1751 = vmatpush1.bf16.msra.mxu0 %v1174
    %1752 = vmatprep.subr.bf16.mxu0 %v1179
    %1753 = vmatpush1.bf16.msra.mxu0 %v1178
    %1754 = vmatprep.subr.bf16.mxu0 %v1183
    %1755 = vmatpush1.bf16.msra.mxu0 %v1182
    %1756 = vmatprep.subr.bf16.mxu0 %v1187
    %1757 = vmatpush1.bf16.msra.mxu0 %v1186
    %1758 = vmatprep.subr.bf16.mxu0 %v1191
    %1759 = vmatpush1.bf16.msra.mxu0 %v1190
    %1760 = vmatprep.subr.bf16.mxu0 %v1195
    %1761 = vmatpush1.bf16.msra.mxu0 %v1194
    %1762 = vmatprep.subr.bf16.mxu0 %v1199
    %1763 = vmatpush1.bf16.msra.mxu0 %v1198
    %1764 = vmatprep.subr.bf16.mxu0 %v1203
    %1765 = vmatpush1.bf16.msra.mxu0 %v1202
    %1766 = vmatprep.subr.bf16.mxu0 %v1207
    %1767 = vmatpush1.bf16.msra.mxu0 %v1206
    %1768 = vmatprep.subr.bf16.mxu0 %v1211
    %1769 = vmatpush1.bf16.msra.mxu0 %v1210
    %1770 = vmatprep.subr.bf16.mxu0 %v1215
    %1771 = vmatpush1.bf16.msra.mxu0 %v1214
    %1772 = vmatprep.subr.bf16.mxu0 %v1219
    %1773 = vmatpush1.bf16.msra.mxu0 %v1218
    %1774 = vmatprep.subr.bf16.mxu0 %v1223
    %1775 = vmatpush1.bf16.msra.mxu0 %v1222
    %1776 = vmatprep.subr.bf16.mxu0 %v1227
    %1777 = vmatpush1.bf16.msra.mxu0 %v1226
    %1778 = vmatprep.subr.bf16.mxu0 %v1231
    %1779 = vmatpush1.bf16.msra.mxu0 %v1230
    %1780 = vmatprep.subr.bf16.mxu0 %v1235
    %1781 = vmatpush1.bf16.msra.mxu0 %v1234
    %1782 = vmatprep.mubr.bf16.mxu0 %v363
    %1783 = vmatmul.mubr.bf16.gmra.mrb[0].mxu0 %v362
    %v1784 = vpop.f32.mrb[0].mxu0
    %v1785 = vadd.f32 %v1742, %v1784
    %v1786 = vpop.f32.mrb[0].mxu0
    %v1787 = vadd.f32 %v1744, %v1786
    %v1788 = vpop.f32.mrb[0].mxu0
    %v1789 = vadd.f32 %v1746, %v1788
    %v1790 = vpop.f32.mrb[0].mxu0
    %v1791 = vadd.f32 %v1748, %v1790
    %1792 = vdwg.mxu0
    %1793 = vmatprep.subr.bf16.mxu0 %v1239
    %1794 = vmatpush1.bf16.msra.mxu0 %v1238
    %1795 = vmatprep.subr.bf16.mxu0 %v1243
    %1796 = vmatpush1.bf16.msra.mxu0 %v1242
    %1797 = vmatprep.subr.bf16.mxu0 %v1247
    %1798 = vmatpush1.bf16.msra.mxu0 %v1246
    %1799 = vmatprep.subr.bf16.mxu0 %v1251
    %1800 = vmatpush1.bf16.msra.mxu0 %v1250
    %1801 = vmatprep.subr.bf16.mxu0 %v1255
    %1802 = vmatpush1.bf16.msra.mxu0 %v1254
    %1803 = vmatprep.subr.bf16.mxu0 %v1259
    %1804 = vmatpush1.bf16.msra.mxu0 %v1258
    %1805 = vmatprep.subr.bf16.mxu0 %v1263
    %1806 = vmatpush1.bf16.msra.mxu0 %v1262
    %1807 = vmatprep.subr.bf16.mxu0 %v1267
    %1808 = vmatpush1.bf16.msra.mxu0 %v1266
    %1809 = vmatprep.subr.bf16.mxu0 0
    %1810 = vmatpush1.bf16.msra.mxu0 0
    %1811 = vmatprep.subr.bf16.mxu0 0
    %1812 = vmatpush1.bf16.msra.mxu0 0
    %1813 = vmatprep.subr.bf16.mxu0 0
    %1814 = vmatpush1.bf16.msra.mxu0 0
    %1815 = vmatprep.subr.bf16.mxu0 0
    %1816 = vmatpush1.bf16.msra.mxu0 0
    %1817 = vmatprep.subr.bf16.mxu0 0
    %1818 = vmatpush1.bf16.msra.mxu0 0
    %1819 = vmatprep.subr.bf16.mxu0 0
    %1820 = vmatpush1.bf16.msra.mxu0 0
    %1821 = vmatprep.subr.bf16.mxu0 0
    %1822 = vmatpush1.bf16.msra.mxu0 0
    %1823 = vmatprep.subr.bf16.mxu0 0
    %1824 = vmatpush1.bf16.msra.mxu0 0
    %1825 = vmatprep.mubr.bf16.mxu0 0
    %1826 = vmatmul.mubr.bf16.gmra.mrb[0].mxu0 %v364
    %v1827 = vpop.f32.mrb[0].mxu0
    %v1828 = vadd.f32 %v1785, %v1827
    %v1829 = vpop.f32.mrb[0].mxu0
    %v1830 = vadd.f32 %v1787, %v1829
    %v1831 = vpop.f32.mrb[0].mxu0
    %v1832 = vadd.f32 %v1789, %v1831
    %v1833 = vpop.f32.mrb[0].mxu0
    %v1834 = vadd.f32 %v1791, %v1833
    %1835 = vdwg.mxu0
    %v1836 = vmax.f32 %v1656, 0.0
    %v1837 = vmax.f32 %v1658, 0.0
    %v1838 = vmax.f32 %v1828, 0.0
    %v1839 = vmax.f32 %v1830, 0.0
    %v1840 = vmax.f32 %v1660, 0.0
    %v1841 = vmax.f32 %v1662, 0.0
    %v1842 = vmax.f32 %v1832, 0.0
    %v1843 = vmax.f32 %v1834, 0.0
    %v1844 = vpack.c.bf16 %v1840, %v1836
    %v1845 = vpack.c.bf16 %v1841, %v1837
    %v1846 = vpack.c.bf16 %v1842, %v1838
    %v1847 = vpack.c.bf16 %v1843, %v1839
    %v1848 = vld [vmem:[#allocation5] sm:$0xff]
    %v1849 = vld [vmem:[#allocation5 + $0x8] sm:$0xff]
    %v1850 = vld [vmem:[#allocation5 + $0x10] sm:$0xff]
    %v1851 = vld [vmem:[#allocation5 + $0x18] sm:$0xff]
    %v1852 = vld [vmem:[#allocation5 + $0x20] sm:$0xff]
    %v1853 = vld [vmem:[#allocation5 + $0x28] sm:$0xff]
    %v1854 = vld [vmem:[#allocation5 + $0x30] sm:$0xff]
    %v1855 = vld [vmem:[#allocation5 + $0x38] sm:$0xff]
    %v1856 = vld [vmem:[#allocation5 + $0x40] sm:$0xff]
    %v1857 = vld [vmem:[#allocation5 + $0x48] sm:$0xff]
    %v1858 = vld [vmem:[#allocation5 + $0x50] sm:$0xff]
    %v1859 = vld [vmem:[#allocation5 + $0x58] sm:$0xff]
    %v1860 = vld [vmem:[#allocation5 + $0x60] sm:$0xff]
    %v1861 = vld [vmem:[#allocation5 + $0x68] sm:$0xff]
    %v1862 = vld [vmem:[#allocation5 + $0x70] sm:$0xff]
    %v1863 = vld [vmem:[#allocation5 + $0x78] sm:$0xff]
    %v1864 = vld [vmem:[#allocation5 + $0x80] sm:$0xff]
    %v1865 = vld [vmem:[#allocation5 + $0x88] sm:$0xff]
    %v1866 = vld [vmem:[#allocation5 + $0x90] sm:$0xff]
    %v1867 = vld [vmem:[#allocation5 + $0x98] sm:$0xff]
    %v1868 = vld [vmem:[#allocation5 + $0xa0] sm:$0xff]
    %v1869 = vld [vmem:[#allocation5 + $0xa8] sm:$0xff]
    %v1870 = vld [vmem:[#allocation5 + $0xb0] sm:$0xff]
    %v1871 = vld [vmem:[#allocation5 + $0xb8] sm:$0xff]
    %v1872 = vld [vmem:[#allocation5 + $0xc0] sm:$0xff]
    %v1873 = vld [vmem:[#allocation5 + $0xc8] sm:$0xff]
    %v1874 = vld [vmem:[#allocation5 + $0xd0] sm:$0xff]
    %v1875 = vld [vmem:[#allocation5 + $0xd8] sm:$0xff]
    %v1876 = vld [vmem:[#allocation5 + $0xe0] sm:$0xff]
    %v1877 = vld [vmem:[#allocation5 + $0xe8] sm:$0xff]
    %v1878 = vld [vmem:[#allocation5 + $0xf0] sm:$0xff]
    %v1879 = vld [vmem:[#allocation5 + $0xf8] sm:$0xff]
    %v1880 = vld [vmem:[#allocation5 + $0x100] sm:$0xff]
    %v1881 = vld [vmem:[#allocation5 + $0x108] sm:$0xff]
    %v1882 = vld [vmem:[#allocation5 + $0x110] sm:$0xff]
    %v1883 = vld [vmem:[#allocation5 + $0x118] sm:$0xff]
    %v1884 = vld [vmem:[#allocation5 + $0x120] sm:$0xff]
    %v1885 = vld [vmem:[#allocation5 + $0x128] sm:$0xff]
    %v1886 = vld [vmem:[#allocation5 + $0x130] sm:$0xff]
    %v1887 = vld [vmem:[#allocation5 + $0x138] sm:$0xff]
    %v1888 = vld [vmem:[#allocation5 + $0x140] sm:$0xff]
    %v1889 = vld [vmem:[#allocation5 + $0x148] sm:$0xff]
    %v1890 = vld [vmem:[#allocation5 + $0x150] sm:$0xff]
    %v1891 = vld [vmem:[#allocation5 + $0x158] sm:$0xff]
    %v1892 = vld [vmem:[#allocation5 + $0x160] sm:$0xff]
    %v1893 = vld [vmem:[#allocation5 + $0x168] sm:$0xff]
    %v1894 = vld [vmem:[#allocation5 + $0x170] sm:$0xff]
    %v1895 = vld [vmem:[#allocation5 + $0x178] sm:$0xff]
    %v1896 = vld [vmem:[#allocation5 + $0x180] sm:$0xff]
    %v1897 = vld [vmem:[#allocation5 + $0x188] sm:$0xff]
    %v1898 = vld [vmem:[#allocation5 + $0x190] sm:$0xff]
    %v1899 = vld [vmem:[#allocation5 + $0x198] sm:$0xff]
    %v1900 = vld [vmem:[#allocation5 + $0x1a0] sm:$0xff]
    %v1901 = vld [vmem:[#allocation5 + $0x1a8] sm:$0xff]
    %v1902 = vld [vmem:[#allocation5 + $0x1b0] sm:$0xff]
    %v1903 = vld [vmem:[#allocation5 + $0x1b8] sm:$0xff]
    %v1904 = vld [vmem:[#allocation5 + $0x1c0] sm:$0xff]
    %v1905 = vld [vmem:[#allocation5 + $0x1c8] sm:$0xff]
    %v1906 = vld [vmem:[#allocation5 + $0x1d0] sm:$0xff]
    %v1907 = vld [vmem:[#allocation5 + $0x1d8] sm:$0xff]
    %v1908 = vld [vmem:[#allocation5 + $0x1e0] sm:$0xff]
    %v1909 = vld [vmem:[#allocation5 + $0x1e8] sm:$0xff]
    %v1910 = vld [vmem:[#allocation5 + $0x1f0] sm:$0xff]
    %v1911 = vld [vmem:[#allocation5 + $0x1f8] sm:$0xff]
    %v1912 = vld [vmem:[%s5] sm:$0x3]
    %v1914 = vlaneseq
    %v1915 = vshrl.u32 %v1914, 7
    %v1916 = vsub.s32 0, %v1915
    %v1917 = vrot.slane %v1912, %v1916
    %v1918 = vlaneseq
    %v1919 = vshrl.u32 %v1918, 7
    %v1920 = vsub.s32 1, %v1919
    %v1921 = vrot.slane %v1912, %v1920
    %v1988 = vunpack.c.l.b16 %v1848
    %v1989 = vunpack.c.h.b16 %v1848
    %v1990 = vunpack.c.l.b16 %v1849
    %v1991 = vunpack.c.h.b16 %v1849
    %v1992 = vunpack.c.l.b16 %v1850
    %v1993 = vunpack.c.h.b16 %v1850
    %v1994 = vunpack.c.l.b16 %v1851
    %v1995 = vunpack.c.h.b16 %v1851
    %v1996 = vunpack.c.l.b16 %v1852
    %v1997 = vunpack.c.h.b16 %v1852
    %v1998 = vunpack.c.l.b16 %v1853
    %v1999 = vunpack.c.h.b16 %v1853
    %v2000 = vunpack.c.l.b16 %v1854
    %v2001 = vunpack.c.h.b16 %v1854
    %v2002 = vunpack.c.l.b16 %v1855
    %v2003 = vunpack.c.h.b16 %v1855
    %v2004 = vunpack.c.l.b16 %v1856
    %v2005 = vunpack.c.h.b16 %v1856
    %v2006 = vunpack.c.l.b16 %v1857
    %v2007 = vunpack.c.h.b16 %v1857
    %v2008 = vunpack.c.l.b16 %v1858
    %v2009 = vunpack.c.h.b16 %v1858
    %v2010 = vunpack.c.l.b16 %v1859
    %v2011 = vunpack.c.h.b16 %v1859
    %v2012 = vunpack.c.l.b16 %v1860
    %v2013 = vunpack.c.h.b16 %v1860
    %v2014 = vunpack.c.l.b16 %v1861
    %v2015 = vunpack.c.h.b16 %v1861
    %v2016 = vunpack.c.l.b16 %v1862
    %v2017 = vunpack.c.h.b16 %v1862
    %v2018 = vunpack.c.l.b16 %v1863
    %v2019 = vunpack.c.h.b16 %v1863
    %v2020 = vunpack.c.l.b16 %v1864
    %v2021 = vunpack.c.h.b16 %v1864
    %v2022 = vunpack.c.l.b16 %v1865
    %v2023 = vunpack.c.h.b16 %v1865
    %v2024 = vunpack.c.l.b16 %v1866
    %v2025 = vunpack.c.h.b16 %v1866
    %v2026 = vunpack.c.l.b16 %v1867
    %v2027 = vunpack.c.h.b16 %v1867
    %v2028 = vunpack.c.l.b16 %v1868
    %v2029 = vunpack.c.h.b16 %v1868
    %v2030 = vunpack.c.l.b16 %v1869
    %v2031 = vunpack.c.h.b16 %v1869
    %v2032 = vunpack.c.l.b16 %v1870
    %v2033 = vunpack.c.h.b16 %v1870
    %v2034 = vunpack.c.l.b16 %v1871
    %v2035 = vunpack.c.h.b16 %v1871
    %v2036 = vunpack.c.l.b16 %v1872
    %v2037 = vunpack.c.h.b16 %v1872
    %v2038 = vunpack.c.l.b16 %v1873
    %v2039 = vunpack.c.h.b16 %v1873
    %v2040 = vunpack.c.l.b16 %v1874
    %v2041 = vunpack.c.h.b16 %v1874
    %v2042 = vunpack.c.l.b16 %v1875
    %v2043 = vunpack.c.h.b16 %v1875
    %v2044 = vunpack.c.l.b16 %v1876
    %v2045 = vunpack.c.h.b16 %v1876
    %v2046 = vunpack.c.l.b16 %v1877
    %v2047 = vunpack.c.h.b16 %v1877
    %v2048 = vunpack.c.l.b16 %v1878
    %v2049 = vunpack.c.h.b16 %v1878
    %v2050 = vunpack.c.l.b16 %v1879
    %v2051 = vunpack.c.h.b16 %v1879
    %v2052 = vunpack.c.l.b16 %v1880
    %v2053 = vunpack.c.h.b16 %v1880
    %v2054 = vunpack.c.l.b16 %v1881
    %v2055 = vunpack.c.h.b16 %v1881
    %v2056 = vunpack.c.l.b16 %v1882
    %v2057 = vunpack.c.h.b16 %v1882
    %v2058 = vunpack.c.l.b16 %v1883
    %v2059 = vunpack.c.h.b16 %v1883
    %v2060 = vunpack.c.l.b16 %v1884
    %v2061 = vunpack.c.h.b16 %v1884
    %v2062 = vunpack.c.l.b16 %v1885
    %v2063 = vunpack.c.h.b16 %v1885
    %v2064 = vunpack.c.l.b16 %v1886
    %v2065 = vunpack.c.h.b16 %v1886
    %v2066 = vunpack.c.l.b16 %v1887
    %v2067 = vunpack.c.h.b16 %v1887
    %v2068 = vunpack.c.l.b16 %v1888
    %v2069 = vunpack.c.h.b16 %v1888
    %v2070 = vunpack.c.l.b16 %v1889
    %v2071 = vunpack.c.h.b16 %v1889
    %v2072 = vunpack.c.l.b16 %v1890
    %v2073 = vunpack.c.h.b16 %v1890
    %v2074 = vunpack.c.l.b16 %v1891
    %v2075 = vunpack.c.h.b16 %v1891
    %v2076 = vunpack.c.l.b16 %v1892
    %v2077 = vunpack.c.h.b16 %v1892
    %v2078 = vunpack.c.l.b16 %v1893
    %v2079 = vunpack.c.h.b16 %v1893
    %v2080 = vunpack.c.l.b16 %v1894
    %v2081 = vunpack.c.h.b16 %v1894
    %v2082 = vunpack.c.l.b16 %v1895
    %v2083 = vunpack.c.h.b16 %v1895
    %v2084 = vunpack.c.l.b16 %v1896
    %v2085 = vunpack.c.h.b16 %v1896
    %v2086 = vunpack.c.l.b16 %v1897
    %v2087 = vunpack.c.h.b16 %v1897
    %v2088 = vunpack.c.l.b16 %v1898
    %v2089 = vunpack.c.h.b16 %v1898
    %v2090 = vunpack.c.l.b16 %v1899
    %v2091 = vunpack.c.h.b16 %v1899
    %v2092 = vunpack.c.l.b16 %v1900
    %v2093 = vunpack.c.h.b16 %v1900
    %v2094 = vunpack.c.l.b16 %v1901
    %v2095 = vunpack.c.h.b16 %v1901
    %v2096 = vunpack.c.l.b16 %v1902
    %v2097 = vunpack.c.h.b16 %v1902
    %v2098 = vunpack.c.l.b16 %v1903
    %v2099 = vunpack.c.h.b16 %v1903
    %v2100 = vunpack.c.l.b16 %v1904
    %v2101 = vunpack.c.h.b16 %v1904
    %v2102 = vunpack.c.l.b16 %v1905
    %v2103 = vunpack.c.h.b16 %v1905
    %v2104 = vunpack.c.l.b16 %v1906
    %v2105 = vunpack.c.h.b16 %v1906
    %v2106 = vunpack.c.l.b16 %v1907
    %v2107 = vunpack.c.h.b16 %v1907
    %v2108 = vunpack.c.l.b16 %v1908
    %v2109 = vunpack.c.h.b16 %v1908
    %v2110 = vunpack.c.l.b16 %v1909
    %v2111 = vunpack.c.h.b16 %v1909
    %v2112 = vunpack.c.l.b16 %v1910
    %v2113 = vunpack.c.h.b16 %v1910
    %v2114 = vunpack.c.l.b16 %v1911
    %v2115 = vunpack.c.h.b16 %v1911
    %v2116 = vpack.c.b16 %v1990, %v1988
    %v2117 = vpack.c.b16 %v1991, %v1989
    %v2118 = vpack.c.b16 %v1994, %v1992
    %v2119 = vpack.c.b16 %v1995, %v1993
    %v2120 = vpack.c.b16 %v1998, %v1996
    %v2121 = vpack.c.b16 %v1999, %v1997
    %v2122 = vpack.c.b16 %v2002, %v2000
    %v2123 = vpack.c.b16 %v2003, %v2001
    %v2124 = vpack.c.b16 %v2006, %v2004
    %v2125 = vpack.c.b16 %v2007, %v2005
    %v2126 = vpack.c.b16 %v2010, %v2008
    %v2127 = vpack.c.b16 %v2011, %v2009
    %v2128 = vpack.c.b16 %v2014, %v2012
    %v2129 = vpack.c.b16 %v2015, %v2013
    %v2130 = vpack.c.b16 %v2018, %v2016
    %v2131 = vpack.c.b16 %v2019, %v2017
    %v2132 = vpack.c.b16 %v2022, %v2020
    %v2133 = vpack.c.b16 %v2023, %v2021
    %v2134 = vpack.c.b16 %v2026, %v2024
    %v2135 = vpack.c.b16 %v2027, %v2025
    %v2136 = vpack.c.b16 %v2030, %v2028
    %v2137 = vpack.c.b16 %v2031, %v2029
    %v2138 = vpack.c.b16 %v2034, %v2032
    %v2139 = vpack.c.b16 %v2035, %v2033
    %v2140 = vpack.c.b16 %v2038, %v2036
    %v2141 = vpack.c.b16 %v2039, %v2037
    %v2142 = vpack.c.b16 %v2042, %v2040
    %v2143 = vpack.c.b16 %v2043, %v2041
    %v2144 = vpack.c.b16 %v2046, %v2044
    %v2145 = vpack.c.b16 %v2047, %v2045
    %v2146 = vpack.c.b16 %v2050, %v2048
    %v2147 = vpack.c.b16 %v2051, %v2049
    %v2148 = vpack.c.b16 %v2054, %v2052
    %v2149 = vpack.c.b16 %v2055, %v2053
    %v2150 = vpack.c.b16 %v2058, %v2056
    %v2151 = vpack.c.b16 %v2059, %v2057
    %v2152 = vpack.c.b16 %v2062, %v2060
    %v2153 = vpack.c.b16 %v2063, %v2061
    %v2154 = vpack.c.b16 %v2066, %v2064
    %v2155 = vpack.c.b16 %v2067, %v2065
    %v2156 = vpack.c.b16 %v2070, %v2068
    %v2157 = vpack.c.b16 %v2071, %v2069
    %v2158 = vpack.c.b16 %v2074, %v2072
    %v2159 = vpack.c.b16 %v2075, %v2073
    %v2160 = vpack.c.b16 %v2078, %v2076
    %v2161 = vpack.c.b16 %v2079, %v2077
    %v2162 = vpack.c.b16 %v2082, %v2080
    %v2163 = vpack.c.b16 %v2083, %v2081
    %v2164 = vpack.c.b16 %v2086, %v2084
    %v2165 = vpack.c.b16 %v2087, %v2085
    %v2166 = vpack.c.b16 %v2090, %v2088
    %v2167 = vpack.c.b16 %v2091, %v2089
    %v2168 = vpack.c.b16 %v2094, %v2092
    %v2169 = vpack.c.b16 %v2095, %v2093
    %v2170 = vpack.c.b16 %v2098, %v2096
    %v2171 = vpack.c.b16 %v2099, %v2097
    %v2172 = vpack.c.b16 %v2102, %v2100
    %v2173 = vpack.c.b16 %v2103, %v2101
    %v2174 = vpack.c.b16 %v2106, %v2104
    %v2175 = vpack.c.b16 %v2107, %v2105
    %v2176 = vpack.c.b16 %v2110, %v2108
    %v2177 = vpack.c.b16 %v2111, %v2109
    %v2178 = vpack.c.b16 %v2114, %v2112
    %v2179 = vpack.c.b16 %v2115, %v2113
    %2244 = vmatprep.subr.bf16.mxu0 %v2117
    %2245 = vmatpush1.bf16.msra.mxu0 %v2116
    %2246 = vmatprep.subr.bf16.mxu0 %v2119
    %2247 = vmatpush1.bf16.msra.mxu0 %v2118
    %2248 = vmatprep.subr.bf16.mxu0 %v2121
    %2249 = vmatpush1.bf16.msra.mxu0 %v2120
    %2250 = vmatprep.subr.bf16.mxu0 %v2123
    %2251 = vmatpush1.bf16.msra.mxu0 %v2122
    %2252 = vmatprep.subr.bf16.mxu0 %v2125
    %2253 = vmatpush1.bf16.msra.mxu0 %v2124
    %2254 = vmatprep.subr.bf16.mxu0 %v2127
    %2255 = vmatpush1.bf16.msra.mxu0 %v2126
    %2256 = vmatprep.subr.bf16.mxu0 %v2129
    %2257 = vmatpush1.bf16.msra.mxu0 %v2128
    %2258 = vmatprep.subr.bf16.mxu0 %v2131
    %2259 = vmatpush1.bf16.msra.mxu0 %v2130
    %2260 = vmatprep.subr.bf16.mxu0 %v2133
    %2261 = vmatpush1.bf16.msra.mxu0 %v2132
    %2262 = vmatprep.subr.bf16.mxu0 %v2135
    %2263 = vmatpush1.bf16.msra.mxu0 %v2134
    %2264 = vmatprep.subr.bf16.mxu0 %v2137
    %2265 = vmatpush1.bf16.msra.mxu0 %v2136
    %2266 = vmatprep.subr.bf16.mxu0 %v2139
    %2267 = vmatpush1.bf16.msra.mxu0 %v2138
    %2268 = vmatprep.subr.bf16.mxu0 %v2141
    %2269 = vmatpush1.bf16.msra.mxu0 %v2140
    %2270 = vmatprep.subr.bf16.mxu0 %v2143
    %2271 = vmatpush1.bf16.msra.mxu0 %v2142
    %2272 = vmatprep.subr.bf16.mxu0 %v2145
    %2273 = vmatpush1.bf16.msra.mxu0 %v2144
    %2274 = vmatprep.subr.bf16.mxu0 %v2147
    %2275 = vmatpush1.bf16.msra.mxu0 %v2146
    %2276 = vmatprep.mubr.bf16.mxu0 %v1845
    %2277 = vmatmul.mubr.bf16.gmra.mrb[0].mxu0 %v1844
    %v2278 = vpop.f32.mrb[0].mxu0
    %v2279 = vadd.f32 %v1917, %v2278
    %v2280 = vpop.f32.mrb[0].mxu0
    %v2281 = vadd.f32 %v1921, %v2280
    %v2282 = vpop.f32.mrb[0].mxu0
    %v2283 = vadd.f32 %v1917, %v2282
    %v2284 = vpop.f32.mrb[0].mxu0
    %v2285 = vadd.f32 %v1921, %v2284
    %2286 = vdwg.mxu0
    %2287 = vmatprep.subr.bf16.mxu0 %v2149
    %2288 = vmatpush1.bf16.msra.mxu0 %v2148
    %2289 = vmatprep.subr.bf16.mxu0 %v2151
    %2290 = vmatpush1.bf16.msra.mxu0 %v2150
    %2291 = vmatprep.subr.bf16.mxu0 %v2153
    %2292 = vmatpush1.bf16.msra.mxu0 %v2152
    %2293 = vmatprep.subr.bf16.mxu0 %v2155
    %2294 = vmatpush1.bf16.msra.mxu0 %v2154
    %2295 = vmatprep.subr.bf16.mxu0 %v2157
    %2296 = vmatpush1.bf16.msra.mxu0 %v2156
    %2297 = vmatprep.subr.bf16.mxu0 %v2159
    %2298 = vmatpush1.bf16.msra.mxu0 %v2158
    %2299 = vmatprep.subr.bf16.mxu0 %v2161
    %2300 = vmatpush1.bf16.msra.mxu0 %v2160
    %2301 = vmatprep.subr.bf16.mxu0 %v2163
    %2302 = vmatpush1.bf16.msra.mxu0 %v2162
    %2303 = vmatprep.subr.bf16.mxu0 %v2165
    %2304 = vmatpush1.bf16.msra.mxu0 %v2164
    %2305 = vmatprep.subr.bf16.mxu0 %v2167
    %2306 = vmatpush1.bf16.msra.mxu0 %v2166
    %2307 = vmatprep.subr.bf16.mxu0 %v2169
    %2308 = vmatpush1.bf16.msra.mxu0 %v2168
    %2309 = vmatprep.subr.bf16.mxu0 %v2171
    %2310 = vmatpush1.bf16.msra.mxu0 %v2170
    %2311 = vmatprep.subr.bf16.mxu0 %v2173
    %2312 = vmatpush1.bf16.msra.mxu0 %v2172
    %2313 = vmatprep.subr.bf16.mxu0 %v2175
    %2314 = vmatpush1.bf16.msra.mxu0 %v2174
    %2315 = vmatprep.subr.bf16.mxu0 %v2177
    %2316 = vmatpush1.bf16.msra.mxu0 %v2176
    %2317 = vmatprep.subr.bf16.mxu0 %v2179
    %2318 = vmatpush1.bf16.msra.mxu0 %v2178
    %2319 = vmatprep.mubr.bf16.mxu0 %v1847
    %2320 = vmatmul.mubr.bf16.gmra.mrb[0].mxu0 %v1846
    %v2321 = vpop.f32.mrb[0].mxu0
    %v2322 = vadd.f32 %v2279, %v2321
    %v2323 = vpop.f32.mrb[0].mxu0
    %v2324 = vadd.f32 %v2281, %v2323
    %v2325 = vpop.f32.mrb[0].mxu0
    %v2326 = vadd.f32 %v2283, %v2325
    %v2327 = vpop.f32.mrb[0].mxu0
    %v2328 = vadd.f32 %v2285, %v2327
    %2329 = vdwg.mxu0
    %v2330 = vld [vmem:[%s1] sm:$0xff]
    %v2331 = vld [vmem:[%s1 + $0x8] sm:$0xff]
    %v2332 = vmul.f32 %v2324, 0.5
    %v2333 = vmul.f32 %v2328, 0.5
    %v2334 = vmul.f32 %v2332, 1.442695
    %v2335 = vpow.pop %v2334
    %v2336 = vmul.f32 %v2333, 1.442695
    %v2337 = vpow.pop %v2336
    %v2338 = vmul.f32 %v2330, %v2335
    %v2339 = vmul.f32 %v2331, %v2337
    %v2340 = vadd.f32 %v2322, %v2338
    %v2341 = vadd.f32 %v2326, %v2339
    %v2342 = vpack.c.bf16 %v2341, %v2340
    %v2343 = vld [vmem:[%s6] sm:$0xff]
    %v2344 = vld [vmem:[%s6 + $0x8] sm:$0xff]
    %v2345 = vld [vmem:[%s6 + $0x10] sm:$0xff]
    %v2346 = vld [vmem:[%s6 + $0x18] sm:$0xff]
    %v2347 = vld [vmem:[%s6 + $0x20] sm:$0xff]
    %v2348 = vld [vmem:[%s6 + $0x28] sm:$0xff]
    %v2349 = vld [vmem:[%s6 + $0x30] sm:$0xff]
    %v2350 = vld [vmem:[%s6 + $0x38] sm:$0xff]
    %v2351 = vld [vmem:[%s6 + $0x40] sm:$0xff]
    %v2352 = vld [vmem:[%s6 + $0x48] sm:$0xff]
    %v2353 = vld [vmem:[%s6 + $0x50] sm:$0xff]
    %v2354 = vld [vmem:[%s6 + $0x58] sm:$0xff]
    %v2355 = vld [vmem:[%s6 + $0x60] sm:$0xff]
    %v2356 = vld [vmem:[%s6 + $0x68] sm:$0xff]
    %v2357 = vld [vmem:[%s6 + $0x70] sm:$0xff]
    %v2358 = vld [vmem:[%s6 + $0x78] sm:$0xff]
    %v2359 = vld [vmem:[%s6 + $0x80] sm:$0xff]
    %v2360 = vld [vmem:[%s6 + $0x88] sm:$0xff]
    %v2361 = vld [vmem:[%s6 + $0x90] sm:$0xff]
    %v2362 = vld [vmem:[%s6 + $0x98] sm:$0xff]
    %v2363 = vld [vmem:[%s6 + $0xa0] sm:$0xff]
    %v2364 = vld [vmem:[%s6 + $0xa8] sm:$0xff]
    %v2365 = vld [vmem:[%s6 + $0xb0] sm:$0xff]
    %v2366 = vld [vmem:[%s6 + $0xb8] sm:$0xff]
    %v2367 = vld [vmem:[%s6 + $0xc0] sm:$0xff]
    %v2368 = vld [vmem:[%s6 + $0xc8] sm:$0xff]
    %v2369 = vld [vmem:[%s6 + $0xd0] sm:$0xff]
    %v2370 = vld [vmem:[%s6 + $0xd8] sm:$0xff]
    %v2371 = vld [vmem:[%s6 + $0xe0] sm:$0xff]
    %v2372 = vld [vmem:[%s6 + $0xe8] sm:$0xff]
    %v2373 = vld [vmem:[%s6 + $0xf0] sm:$0xff]
    %v2374 = vld [vmem:[%s6 + $0xf8] sm:$0xff]
    %v2375 = vld [vmem:[%s7] sm:$0xf]
    %v2377 = vlaneseq
    %v2378 = vshrl.u32 %v2377, 7
    %v2379 = vsub.s32 0, %v2378
    %v2380 = vrot.slane %v2375, %v2379
    %v2381 = vlaneseq
    %v2382 = vshrl.u32 %v2381, 7
    %v2383 = vsub.s32 1, %v2382
    %v2384 = vrot.slane %v2375, %v2383
    %v2385 = vlaneseq
    %v2386 = vshrl.u32 %v2385, 7
    %v2387 = vsub.s32 2, %v2386
    %v2388 = vrot.slane %v2375, %v2387
    %v2389 = vlaneseq
    %v2390 = vshrl.u32 %v2389, 7
    %v2391 = vsub.s32 3, %v2390
    %v2392 = vrot.slane %v2375, %v2391
    %v2429 = vunpack.c.l.b16 %v2343
    %v2430 = vunpack.c.h.b16 %v2343
    %v2431 = vunpack.c.l.b16 %v2344
    %v2432 = vunpack.c.h.b16 %v2344
    %v2433 = vunpack.c.l.b16 %v2345
    %v2434 = vunpack.c.h.b16 %v2345
    %v2435 = vunpack.c.l.b16 %v2346
    %v2436 = vunpack.c.h.b16 %v2346
    %v2437 = vunpack.c.l.b16 %v2347
    %v2438 = vunpack.c.h.b16 %v2347
    %v2439 = vunpack.c.l.b16 %v2348
    %v2440 = vunpack.c.h.b16 %v2348
    %v2441 = vunpack.c.l.b16 %v2349
    %v2442 = vunpack.c.h.b16 %v2349
    %v2443 = vunpack.c.l.b16 %v2350
    %v2444 = vunpack.c.h.b16 %v2350
    %v2445 = vunpack.c.l.b16 %v2351
    %v2446 = vunpack.c.h.b16 %v2351
    %v2447 = vunpack.c.l.b16 %v2352
    %v2448 = vunpack.c.h.b16 %v2352
    %v2449 = vunpack.c.l.b16 %v2353
    %v2450 = vunpack.c.h.b16 %v2353
    %v2451 = vunpack.c.l.b16 %v2354
    %v2452 = vunpack.c.h.b16 %v2354
    %v2453 = vunpack.c.l.b16 %v2355
    %v2454 = vunpack.c.h.b16 %v2355
    %v2455 = vunpack.c.l.b16 %v2356
    %v2456 = vunpack.c.h.b16 %v2356
    %v2457 = vunpack.c.l.b16 %v2357
    %v2458 = vunpack.c.h.b16 %v2357
    %v2459 = vunpack.c.l.b16 %v2358
    %v2460 = vunpack.c.h.b16 %v2358
    %v2461 = vunpack.c.l.b16 %v2359
    %v2462 = vunpack.c.h.b16 %v2359
    %v2463 = vunpack.c.l.b16 %v2360
    %v2464 = vunpack.c.h.b16 %v2360
    %v2465 = vunpack.c.l.b16 %v2361
    %v2466 = vunpack.c.h.b16 %v2361
    %v2467 = vunpack.c.l.b16 %v2362
    %v2468 = vunpack.c.h.b16 %v2362
    %v2469 = vunpack.c.l.b16 %v2363
    %v2470 = vunpack.c.h.b16 %v2363
    %v2471 = vunpack.c.l.b16 %v2364
    %v2472 = vunpack.c.h.b16 %v2364
    %v2473 = vunpack.c.l.b16 %v2365
    %v2474 = vunpack.c.h.b16 %v2365
    %v2475 = vunpack.c.l.b16 %v2366
    %v2476 = vunpack.c.h.b16 %v2366
    %v2477 = vunpack.c.l.b16 %v2367
    %v2478 = vunpack.c.h.b16 %v2367
    %v2479 = vunpack.c.l.b16 %v2368
    %v2480 = vunpack.c.h.b16 %v2368
    %v2481 = vunpack.c.l.b16 %v2369
    %v2482 = vunpack.c.h.b16 %v2369
    %v2483 = vunpack.c.l.b16 %v2370
    %v2484 = vunpack.c.h.b16 %v2370
    %v2485 = vunpack.c.l.b16 %v2371
    %v2486 = vunpack.c.h.b16 %v2371
    %v2487 = vunpack.c.l.b16 %v2372
    %v2488 = vunpack.c.h.b16 %v2372
    %v2489 = vunpack.c.l.b16 %v2373
    %v2490 = vunpack.c.h.b16 %v2373
    %v2491 = vunpack.c.l.b16 %v2374
    %v2492 = vunpack.c.h.b16 %v2374
    %v2493 = vpack.c.b16 %v2433, %v2429
    %v2494 = vpack.c.b16 %v2434, %v2430
    %v2495 = vpack.c.b16 %v2435, %v2431
    %v2496 = vpack.c.b16 %v2436, %v2432
    %v2497 = vpack.c.b16 %v2441, %v2437
    %v2498 = vpack.c.b16 %v2442, %v2438
    %v2499 = vpack.c.b16 %v2443, %v2439
    %v2500 = vpack.c.b16 %v2444, %v2440
    %v2501 = vpack.c.b16 %v2449, %v2445
    %v2502 = vpack.c.b16 %v2450, %v2446
    %v2503 = vpack.c.b16 %v2451, %v2447
    %v2504 = vpack.c.b16 %v2452, %v2448
    %v2505 = vpack.c.b16 %v2457, %v2453
    %v2506 = vpack.c.b16 %v2458, %v2454
    %v2507 = vpack.c.b16 %v2459, %v2455
    %v2508 = vpack.c.b16 %v2460, %v2456
    %v2509 = vpack.c.b16 %v2465, %v2461
    %v2510 = vpack.c.b16 %v2466, %v2462
    %v2511 = vpack.c.b16 %v2467, %v2463
    %v2512 = vpack.c.b16 %v2468, %v2464
    %v2513 = vpack.c.b16 %v2473, %v2469
    %v2514 = vpack.c.b16 %v2474, %v2470
    %v2515 = vpack.c.b16 %v2475, %v2471
    %v2516 = vpack.c.b16 %v2476, %v2472
    %v2517 = vpack.c.b16 %v2481, %v2477
    %v2518 = vpack.c.b16 %v2482, %v2478
    %v2519 = vpack.c.b16 %v2483, %v2479
    %v2520 = vpack.c.b16 %v2484, %v2480
    %v2521 = vpack.c.b16 %v2489, %v2485
    %v2522 = vpack.c.b16 %v2490, %v2486
    %v2523 = vpack.c.b16 %v2491, %v2487
    %v2524 = vpack.c.b16 %v2492, %v2488
    %2557 = vmatprep.subr.bf16.mxu0 %v2494
    %2558 = vmatpush1.bf16.msra.mxu0 %v2493
    %2559 = vmatprep.subr.bf16.mxu0 %v2498
    %2560 = vmatpush1.bf16.msra.mxu0 %v2497
    %2561 = vmatprep.subr.bf16.mxu0 %v2502
    %2562 = vmatpush1.bf16.msra.mxu0 %v2501
    %2563 = vmatprep.subr.bf16.mxu0 %v2506
    %2564 = vmatpush1.bf16.msra.mxu0 %v2505
    %2565 = vmatprep.subr.bf16.mxu0 %v2510
    %2566 = vmatpush1.bf16.msra.mxu0 %v2509
    %2567 = vmatprep.subr.bf16.mxu0 %v2514
    %2568 = vmatpush1.bf16.msra.mxu0 %v2513
    %2569 = vmatprep.subr.bf16.mxu0 %v2518
    %2570 = vmatpush1.bf16.msra.mxu0 %v2517
    %2571 = vmatprep.subr.bf16.mxu0 %v2522
    %2572 = vmatpush1.bf16.msra.mxu0 %v2521
    %2573 = vmatprep.subr.bf16.mxu0 0
    %2574 = vmatpush1.bf16.msra.mxu0 0
    %2575 = vmatprep.subr.bf16.mxu0 0
    %2576 = vmatpush1.bf16.msra.mxu0 0
    %2577 = vmatprep.subr.bf16.mxu0 0
    %2578 = vmatpush1.bf16.msra.mxu0 0
    %2579 = vmatprep.subr.bf16.mxu0 0
    %2580 = vmatpush1.bf16.msra.mxu0 0
    %2581 = vmatprep.subr.bf16.mxu0 0
    %2582 = vmatpush1.bf16.msra.mxu0 0
    %2583 = vmatprep.subr.bf16.mxu0 0
    %2584 = vmatpush1.bf16.msra.mxu0 0
    %2585 = vmatprep.subr.bf16.mxu0 0
    %2586 = vmatpush1.bf16.msra.mxu0 0
    %2587 = vmatprep.subr.bf16.mxu0 0
    %2588 = vmatpush1.bf16.msra.mxu0 0
    %2589 = vmatprep.mubr.bf16.mxu0 0
    %2590 = vmatmul.mubr.bf16.gmra.mrb[0].mxu0 %v2342
    %v2591 = vpop.f32.mrb[0].mxu0
    %v2592 = vadd.f32 %v2380, %v2591
    %v2593 = vpop.f32.mrb[0].mxu0
    %v2594 = vadd.f32 %v2384, %v2593
    %v2595 = vpop.f32.mrb[0].mxu0
    %v2596 = vadd.f32 %v2380, %v2595
    %v2597 = vpop.f32.mrb[0].mxu0
    %v2598 = vadd.f32 %v2384, %v2597
    %2599 = vdwg.mxu0
    %2600 = vmatprep.subr.bf16.mxu0 %v2496
    %2601 = vmatpush1.bf16.msra.mxu0 %v2495
    %2602 = vmatprep.subr.bf16.mxu0 %v2500
    %2603 = vmatpush1.bf16.msra.mxu0 %v2499
    %2604 = vmatprep.subr.bf16.mxu0 %v2504
    %2605 = vmatpush1.bf16.msra.mxu0 %v2503
    %2606 = vmatprep.subr.bf16.mxu0 %v2508
    %2607 = vmatpush1.bf16.msra.mxu0 %v2507
    %2608 = vmatprep.subr.bf16.mxu0 %v2512
    %2609 = vmatpush1.bf16.msra.mxu0 %v2511
    %2610 = vmatprep.subr.bf16.mxu0 %v2516
    %2611 = vmatpush1.bf16.msra.mxu0 %v2515
    %2612 = vmatprep.subr.bf16.mxu0 %v2520
    %2613 = vmatpush1.bf16.msra.mxu0 %v2519
    %2614 = vmatprep.subr.bf16.mxu0 %v2524
    %2615 = vmatpush1.bf16.msra.mxu0 %v2523
    %2616 = vmatprep.subr.bf16.mxu0 0
    %2617 = vmatpush1.bf16.msra.mxu0 0
    %2618 = vmatprep.subr.bf16.mxu0 0
    %2619 = vmatpush1.bf16.msra.mxu0 0
    %2620 = vmatprep.subr.bf16.mxu0 0
    %2621 = vmatpush1.bf16.msra.mxu0 0
    %2622 = vmatprep.subr.bf16.mxu0 0
    %2623 = vmatpush1.bf16.msra.mxu0 0
    %2624 = vmatprep.subr.bf16.mxu0 0
    %2625 = vmatpush1.bf16.msra.mxu0 0
    %2626 = vmatprep.subr.bf16.mxu0 0
    %2627 = vmatpush1.bf16.msra.mxu0 0
    %2628 = vmatprep.subr.bf16.mxu0 0
    %2629 = vmatpush1.bf16.msra.mxu0 0
    %2630 = vmatprep.subr.bf16.mxu0 0
    %2631 = vmatpush1.bf16.msra.mxu0 0
    %2632 = vmatprep.mubr.bf16.mxu0 0
    %2633 = vmatmul.mubr.bf16.gmra.mrb[0].mxu0 %v2342
    %v2634 = vpop.f32.mrb[0].mxu0
    %v2635 = vadd.f32 %v2388, %v2634
    %v2636 = vpop.f32.mrb[0].mxu0
    %v2637 = vadd.f32 %v2392, %v2636
    %v2638 = vpop.f32.mrb[0].mxu0
    %v2639 = vadd.f32 %v2388, %v2638
    %v2640 = vpop.f32.mrb[0].mxu0
    %v2641 = vadd.f32 %v2392, %v2640
    %2642 = vdwg.mxu0
    %v2643 = vmax.f32 %v2592, 0.0
    %v2644 = vmax.f32 %v2594, 0.0
    %v2645 = vmax.f32 %v2635, 0.0
    %v2646 = vmax.f32 %v2637, 0.0
    %v2647 = vmax.f32 %v2596, 0.0
    %v2648 = vmax.f32 %v2598, 0.0
    %v2649 = vmax.f32 %v2639, 0.0
    %v2650 = vmax.f32 %v2641, 0.0
    %v2651 = vpack.c.bf16 %v2647, %v2643
    %v2652 = vpack.c.bf16 %v2648, %v2644
    %v2653 = vpack.c.bf16 %v2649, %v2645
    %v2654 = vpack.c.bf16 %v2650, %v2646
    %v2655 = vld [vmem:[#allocation7] sm:$0xff]
    %v2656 = vld [vmem:[#allocation7 + $0x8] sm:$0xff]
    %v2657 = vld [vmem:[#allocation7 + $0x10] sm:$0xff]
    %v2658 = vld [vmem:[#allocation7 + $0x18] sm:$0xf]
    %v2659 = vld [vmem:[#allocation7 + $0x1c] sm:$0xff]
    %v2660 = vld [vmem:[#allocation7 + $0x24] sm:$0xff]
    %v2661 = vld [vmem:[#allocation7 + $0x2c] sm:$0xff]
    %v2662 = vld [vmem:[#allocation7 + $0x34] sm:$0xf]
    %v2663 = vld [vmem:[#allocation7 + $0x38] sm:$0xff]
    %v2664 = vld [vmem:[#allocation7 + $0x40] sm:$0xff]
    %v2665 = vld [vmem:[#allocation7 + $0x48] sm:$0xff]
    %v2666 = vld [vmem:[#allocation7 + $0x50] sm:$0xf]
    %v2667 = vld [vmem:[#allocation7 + $0x54] sm:$0xff]
    %v2668 = vld [vmem:[#allocation7 + $0x5c] sm:$0xff]
    %v2669 = vld [vmem:[#allocation7 + $0x64] sm:$0xff]
    %v2670 = vld [vmem:[#allocation7 + $0x6c] sm:$0xf]
    %v2671 = vld [vmem:[#allocation7 + $0x70] sm:$0xff]
    %v2672 = vld [vmem:[#allocation7 + $0x78] sm:$0xff]
    %v2673 = vld [vmem:[#allocation7 + $0x80] sm:$0xff]
    %v2674 = vld [vmem:[#allocation7 + $0x88] sm:$0xf]
    %v2675 = vld [vmem:[#allocation7 + $0x8c] sm:$0xff]
    %v2676 = vld [vmem:[#allocation7 + $0x94] sm:$0xff]
    %v2677 = vld [vmem:[#allocation7 + $0x9c] sm:$0xff]
    %v2678 = vld [vmem:[#allocation7 + $0xa4] sm:$0xf]
    %v2679 = vld [vmem:[#allocation7 + $0xa8] sm:$0xff]
    %v2680 = vld [vmem:[#allocation7 + $0xb0] sm:$0xff]
    %v2681 = vld [vmem:[#allocation7 + $0xb8] sm:$0xff]
    %v2682 = vld [vmem:[#allocation7 + $0xc0] sm:$0xf]
    %v2683 = vld [vmem:[#allocation7 + $0xc4] sm:$0xff]
    %v2684 = vld [vmem:[#allocation7 + $0xcc] sm:$0xff]
    %v2685 = vld [vmem:[#allocation7 + $0xd4] sm:$0xff]
    %v2686 = vld [vmem:[#allocation7 + $0xdc] sm:$0xf]
    %v2687 = vld [vmem:[#allocation7 + $0xe0] sm:$0xff]
    %v2688 = vld [vmem:[#allocation7 + $0xe8] sm:$0xff]
    %v2689 = vld [vmem:[#allocation7 + $0xf0] sm:$0xff]
    %v2690 = vld [vmem:[#allocation7 + $0xf8] sm:$0xf]
    %v2691 = vld [vmem:[#allocation7 + $0xfc] sm:$0xff]
    %v2692 = vld [vmem:[#allocation7 + $0x104] sm:$0xff]
    %v2693 = vld [vmem:[#allocation7 + $0x10c] sm:$0xff]
    %v2694 = vld [vmem:[#allocation7 + $0x114] sm:$0xf]
    %v2695 = vld [vmem:[#allocation7 + $0x118] sm:$0xff]
    %v2696 = vld [vmem:[#allocation7 + $0x120] sm:$0xff]
    %v2697 = vld [vmem:[#allocation7 + $0x128] sm:$0xff]
    %v2698 = vld [vmem:[#allocation7 + $0x130] sm:$0xf]
    %v2699 = vld [vmem:[#allocation7 + $0x134] sm:$0xff]
    %v2700 = vld [vmem:[#allocation7 + $0x13c] sm:$0xff]
    %v2701 = vld [vmem:[#allocation7 + $0x144] sm:$0xff]
    %v2702 = vld [vmem:[#allocation7 + $0x14c] sm:$0xf]
    %v2703 = vld [vmem:[#allocation7 + $0x150] sm:$0xff]
    %v2704 = vld [vmem:[#allocation7 + $0x158] sm:$0xff]
    %v2705 = vld [vmem:[#allocation7 + $0x160] sm:$0xff]
    %v2706 = vld [vmem:[#allocation7 + $0x168] sm:$0xf]
    %v2707 = vld [vmem:[#allocation7 + $0x16c] sm:$0xff]
    %v2708 = vld [vmem:[#allocation7 + $0x174] sm:$0xff]
    %v2709 = vld [vmem:[#allocation7 + $0x17c] sm:$0xff]
    %v2710 = vld [vmem:[#allocation7 + $0x184] sm:$0xf]
    %v2711 = vld [vmem:[#allocation7 + $0x188] sm:$0xff]
    %v2712 = vld [vmem:[#allocation7 + $0x190] sm:$0xff]
    %v2713 = vld [vmem:[#allocation7 + $0x198] sm:$0xff]
    %v2714 = vld [vmem:[#allocation7 + $0x1a0] sm:$0xf]
    %v2715 = vld [vmem:[#allocation7 + $0x1a4] sm:$0xff]
    %v2716 = vld [vmem:[#allocation7 + $0x1ac] sm:$0xff]
    %v2717 = vld [vmem:[#allocation7 + $0x1b4] sm:$0xff]
    %v2718 = vld [vmem:[#allocation7 + $0x1bc] sm:$0xf]
    %v2719 = vld [vmem:[#allocation7 + $0x1c0] sm:$0xff]
    %v2720 = vld [vmem:[#allocation7 + $0x1c8] sm:$0xff]
    %v2721 = vld [vmem:[#allocation7 + $0x1d0] sm:$0xff]
    %v2722 = vld [vmem:[#allocation7 + $0x1d8] sm:$0xf]
    %v2723 = vld [vmem:[#allocation7 + $0x1dc] sm:$0xff]
    %v2724 = vld [vmem:[#allocation7 + $0x1e4] sm:$0xff]
    %v2725 = vld [vmem:[#allocation7 + $0x1ec] sm:$0xff]
    %v2726 = vld [vmem:[#allocation7 + $0x1f4] sm:$0xf]
    %v2727 = vld [vmem:[#allocation7 + $0x1f8] sm:$0xff]
    %v2728 = vld [vmem:[#allocation7 + $0x200] sm:$0xff]
    %v2729 = vld [vmem:[#allocation7 + $0x208] sm:$0xff]
    %v2730 = vld [vmem:[#allocation7 + $0x210] sm:$0xf]
    %v2731 = vld [vmem:[#allocation7 + $0x214] sm:$0xff]
    %v2732 = vld [vmem:[#allocation7 + $0x21c] sm:$0xff]
    %v2733 = vld [vmem:[#allocation7 + $0x224] sm:$0xff]
    %v2734 = vld [vmem:[#allocation7 + $0x22c] sm:$0xf]
    %v2735 = vld [vmem:[#allocation7 + $0x230] sm:$0xff]
    %v2736 = vld [vmem:[#allocation7 + $0x238] sm:$0xff]
    %v2737 = vld [vmem:[#allocation7 + $0x240] sm:$0xff]
    %v2738 = vld [vmem:[#allocation7 + $0x248] sm:$0xf]
    %v2739 = vld [vmem:[#allocation7 + $0x24c] sm:$0xff]
    %v2740 = vld [vmem:[#allocation7 + $0x254] sm:$0xff]
    %v2741 = vld [vmem:[#allocation7 + $0x25c] sm:$0xff]
    %v2742 = vld [vmem:[#allocation7 + $0x264] sm:$0xf]
    %v2743 = vld [vmem:[#allocation7 + $0x268] sm:$0xff]
    %v2744 = vld [vmem:[#allocation7 + $0x270] sm:$0xff]
    %v2745 = vld [vmem:[#allocation7 + $0x278] sm:$0xff]
    %v2746 = vld [vmem:[#allocation7 + $0x280] sm:$0xf]
    %v2747 = vld [vmem:[#allocation7 + $0x284] sm:$0xff]
    %v2748 = vld [vmem:[#allocation7 + $0x28c] sm:$0xff]
    %v2749 = vld [vmem:[#allocation7 + $0x294] sm:$0xff]
    %v2750 = vld [vmem:[#allocation7 + $0x29c] sm:$0xf]
    %v2751 = vld [vmem:[#allocation7 + $0x2a0] sm:$0xff]
    %v2752 = vld [vmem:[#allocation7 + $0x2a8] sm:$0xff]
    %v2753 = vld [vmem:[#allocation7 + $0x2b0] sm:$0xff]
    %v2754 = vld [vmem:[#allocation7 + $0x2b8] sm:$0xf]
    %v2755 = vld [vmem:[#allocation7 + $0x2bc] sm:$0xff]
    %v2756 = vld [vmem:[#allocation7 + $0x2c4] sm:$0xff]
    %v2757 = vld [vmem:[#allocation7 + $0x2cc] sm:$0xff]
    %v2758 = vld [vmem:[#allocation7 + $0x2d4] sm:$0xf]
    %v2759 = vld [vmem:[#allocation7 + $0x2d8] sm:$0xff]
    %v2760 = vld [vmem:[#allocation7 + $0x2e0] sm:$0xff]
    %v2761 = vld [vmem:[#allocation7 + $0x2e8] sm:$0xff]
    %v2762 = vld [vmem:[#allocation7 + $0x2f0] sm:$0xf]
    %v2763 = vld [vmem:[#allocation7 + $0x2f4] sm:$0xff]
    %v2764 = vld [vmem:[#allocation7 + $0x2fc] sm:$0xff]
    %v2765 = vld [vmem:[#allocation7 + $0x304] sm:$0xff]
    %v2766 = vld [vmem:[#allocation7 + $0x30c] sm:$0xf]
    %v2767 = vld [vmem:[#allocation7 + $0x310] sm:$0xff]
    %v2768 = vld [vmem:[#allocation7 + $0x318] sm:$0xff]
    %v2769 = vld [vmem:[#allocation7 + $0x320] sm:$0xff]
    %v2770 = vld [vmem:[#allocation7 + $0x328] sm:$0xf]
    %v2771 = vld [vmem:[#allocation7 + $0x32c] sm:$0xff]
    %v2772 = vld [vmem:[#allocation7 + $0x334] sm:$0xff]
    %v2773 = vld [vmem:[#allocation7 + $0x33c] sm:$0xff]
    %v2774 = vld [vmem:[#allocation7 + $0x344] sm:$0xf]
    %v2775 = vld [vmem:[#allocation7 + $0x348] sm:$0xff]
    %v2776 = vld [vmem:[#allocation7 + $0x350] sm:$0xff]
    %v2777 = vld [vmem:[#allocation7 + $0x358] sm:$0xff]
    %v2778 = vld [vmem:[#allocation7 + $0x360] sm:$0xf]
    %v2779 = vld [vmem:[#allocation7 + $0x364] sm:$0xff]
    %v2780 = vld [vmem:[#allocation7 + $0x36c] sm:$0xff]
    %v2781 = vld [vmem:[#allocation7 + $0x374] sm:$0xff]
    %v2782 = vld [vmem:[#allocation7 + $0x37c] sm:$0xf]
    %v2783 = vld [vmem:[#allocation7 + $0x380] sm:$0xff]
    %v2784 = vld [vmem:[#allocation7 + $0x388] sm:$0xff]
    %v2785 = vld [vmem:[#allocation7 + $0x390] sm:$0xff]
    %v2786 = vld [vmem:[#allocation7 + $0x398] sm:$0xf]
    %v2787 = vld [vmem:[#allocation7 + $0x39c] sm:$0xff]
    %v2788 = vld [vmem:[#allocation7 + $0x3a4] sm:$0xff]
    %v2789 = vld [vmem:[#allocation7 + $0x3ac] sm:$0xff]
    %v2790 = vld [vmem:[#allocation7 + $0x3b4] sm:$0xf]
    %v2791 = vld [vmem:[#allocation7 + $0x3b8] sm:$0xff]
    %v2792 = vld [vmem:[#allocation7 + $0x3c0] sm:$0xff]
    %v2793 = vld [vmem:[#allocation7 + $0x3c8] sm:$0xff]
    %v2794 = vld [vmem:[#allocation7 + $0x3d0] sm:$0xf]
    %v2795 = vld [vmem:[#allocation7 + $0x3d4] sm:$0xff]
    %v2796 = vld [vmem:[#allocation7 + $0x3dc] sm:$0xff]
    %v2797 = vld [vmem:[#allocation7 + $0x3e4] sm:$0xff]
    %v2798 = vld [vmem:[#allocation7 + $0x3ec] sm:$0xf]
    %v2799 = vld [vmem:[#allocation7 + $0x3f0] sm:$0xff]
    %v2800 = vld [vmem:[#allocation7 + $0x3f8] sm:$0xff]
    %v2801 = vld [vmem:[#allocation7 + $0x400] sm:$0xff]
    %v2802 = vld [vmem:[#allocation7 + $0x408] sm:$0xf]
    %v2803 = vld [vmem:[#allocation7 + $0x40c] sm:$0xff]
    %v2804 = vld [vmem:[#allocation7 + $0x414] sm:$0xff]
    %v2805 = vld [vmem:[#allocation7 + $0x41c] sm:$0xff]
    %v2806 = vld [vmem:[#allocation7 + $0x424] sm:$0xf]
    %v2807 = vld [vmem:[#allocation7 + $0x428] sm:$0xff]
    %v2808 = vld [vmem:[#allocation7 + $0x430] sm:$0xff]
    %v2809 = vld [vmem:[#allocation7 + $0x438] sm:$0xff]
    %v2810 = vld [vmem:[#allocation7 + $0x440] sm:$0xf]
    %v2811 = vld [vmem:[#allocation7 + $0x444] sm:$0xff]
    %v2812 = vld [vmem:[#allocation7 + $0x44c] sm:$0xff]
    %v2813 = vld [vmem:[#allocation7 + $0x454] sm:$0xff]
    %v2814 = vld [vmem:[#allocation7 + $0x45c] sm:$0xf]
    %v2815 = vld [vmem:[#allocation7 + $0x460] sm:$0xff]
    %v2816 = vld [vmem:[#allocation7 + $0x468] sm:$0xff]
    %v2817 = vld [vmem:[#allocation7 + $0x470] sm:$0xff]
    %v2818 = vld [vmem:[#allocation7 + $0x478] sm:$0xf]
    %v2819 = vld [vmem:[#allocation7 + $0x47c] sm:$0xff]
    %v2820 = vld [vmem:[#allocation7 + $0x484] sm:$0xff]
    %v2821 = vld [vmem:[#allocation7 + $0x48c] sm:$0xff]
    %v2822 = vld [vmem:[#allocation7 + $0x494] sm:$0xf]
    %v2823 = vld [vmem:[#allocation7 + $0x498] sm:$0xff]
    %v2824 = vld [vmem:[#allocation7 + $0x4a0] sm:$0xff]
    %v2825 = vld [vmem:[#allocation7 + $0x4a8] sm:$0xff]
    %v2826 = vld [vmem:[#allocation7 + $0x4b0] sm:$0xf]
    %v2827 = vld [vmem:[#allocation7 + $0x4b4] sm:$0xff]
    %v2828 = vld [vmem:[#allocation7 + $0x4bc] sm:$0xff]
    %v2829 = vld [vmem:[#allocation7 + $0x4c4] sm:$0xff]
    %v2830 = vld [vmem:[#allocation7 + $0x4cc] sm:$0xf]
    %v2831 = vld [vmem:[#allocation7 + $0x4d0] sm:$0xff]
    %v2832 = vld [vmem:[#allocation7 + $0x4d8] sm:$0xff]
    %v2833 = vld [vmem:[#allocation7 + $0x4e0] sm:$0xff]
    %v2834 = vld [vmem:[#allocation7 + $0x4e8] sm:$0xf]
    %v2835 = vld [vmem:[#allocation7 + $0x4ec] sm:$0xff]
    %v2836 = vld [vmem:[#allocation7 + $0x4f4] sm:$0xff]
    %v2837 = vld [vmem:[#allocation7 + $0x4fc] sm:$0xff]
    %v2838 = vld [vmem:[#allocation7 + $0x504] sm:$0xf]
    %v2839 = vld [vmem:[#allocation7 + $0x508] sm:$0xff]
    %v2840 = vld [vmem:[#allocation7 + $0x510] sm:$0xff]
    %v2841 = vld [vmem:[#allocation7 + $0x518] sm:$0xff]
    %v2842 = vld [vmem:[#allocation7 + $0x520] sm:$0xf]
    %v2843 = vld [vmem:[#allocation7 + $0x524] sm:$0xff]
    %v2844 = vld [vmem:[#allocation7 + $0x52c] sm:$0xff]
    %v2845 = vld [vmem:[#allocation7 + $0x534] sm:$0xff]
    %v2846 = vld [vmem:[#allocation7 + $0x53c] sm:$0xf]
    %v2847 = vld [vmem:[#allocation7 + $0x540] sm:$0xff]
    %v2848 = vld [vmem:[#allocation7 + $0x548] sm:$0xff]
    %v2849 = vld [vmem:[#allocation7 + $0x550] sm:$0xff]
    %v2850 = vld [vmem:[#allocation7 + $0x558] sm:$0xf]
    %v2851 = vld [vmem:[#allocation7 + $0x55c] sm:$0xff]
    %v2852 = vld [vmem:[#allocation7 + $0x564] sm:$0xff]
    %v2853 = vld [vmem:[#allocation7 + $0x56c] sm:$0xff]
    %v2854 = vld [vmem:[#allocation7 + $0x574] sm:$0xf]
    %v2855 = vld [vmem:[#allocation7 + $0x578] sm:$0xff]
    %v2856 = vld [vmem:[#allocation7 + $0x580] sm:$0xff]
    %v2857 = vld [vmem:[#allocation7 + $0x588] sm:$0xff]
    %v2858 = vld [vmem:[#allocation7 + $0x590] sm:$0xf]
    %v2859 = vld [vmem:[#allocation7 + $0x594] sm:$0xff]
    %v2860 = vld [vmem:[#allocation7 + $0x59c] sm:$0xff]
    %v2861 = vld [vmem:[#allocation7 + $0x5a4] sm:$0xff]
    %v2862 = vld [vmem:[#allocation7 + $0x5ac] sm:$0xf]
    %v2863 = vld [vmem:[#allocation7 + $0x5b0] sm:$0xff]
    %v2864 = vld [vmem:[#allocation7 + $0x5b8] sm:$0xff]
    %v2865 = vld [vmem:[#allocation7 + $0x5c0] sm:$0xff]
    %v2866 = vld [vmem:[#allocation7 + $0x5c8] sm:$0xf]
    %v2867 = vld [vmem:[#allocation7 + $0x5cc] sm:$0xff]
    %v2868 = vld [vmem:[#allocation7 + $0x5d4] sm:$0xff]
    %v2869 = vld [vmem:[#allocation7 + $0x5dc] sm:$0xff]
    %v2870 = vld [vmem:[#allocation7 + $0x5e4] sm:$0xf]
    %v2871 = vld [vmem:[#allocation7 + $0x5e8] sm:$0xff]
    %v2872 = vld [vmem:[#allocation7 + $0x5f0] sm:$0xff]
    %v2873 = vld [vmem:[#allocation7 + $0x5f8] sm:$0xff]
    %v2874 = vld [vmem:[#allocation7 + $0x600] sm:$0xf]
    %v2875 = vld [vmem:[#allocation7 + $0x604] sm:$0xff]
    %v2876 = vld [vmem:[#allocation7 + $0x60c] sm:$0xff]
    %v2877 = vld [vmem:[#allocation7 + $0x614] sm:$0xff]
    %v2878 = vld [vmem:[#allocation7 + $0x61c] sm:$0xf]
    %v2879 = vld [vmem:[#allocation7 + $0x620] sm:$0xff]
    %v2880 = vld [vmem:[#allocation7 + $0x628] sm:$0xff]
    %v2881 = vld [vmem:[#allocation7 + $0x630] sm:$0xff]
    %v2882 = vld [vmem:[#allocation7 + $0x638] sm:$0xf]
    %v2883 = vld [vmem:[#allocation7 + $0x63c] sm:$0xff]
    %v2884 = vld [vmem:[#allocation7 + $0x644] sm:$0xff]
    %v2885 = vld [vmem:[#allocation7 + $0x64c] sm:$0xff]
    %v2886 = vld [vmem:[#allocation7 + $0x654] sm:$0xf]
    %v2887 = vld [vmem:[#allocation7 + $0x658] sm:$0xff]
    %v2888 = vld [vmem:[#allocation7 + $0x660] sm:$0xff]
    %v2889 = vld [vmem:[#allocation7 + $0x668] sm:$0xff]
    %v2890 = vld [vmem:[#allocation7 + $0x670] sm:$0xf]
    %v2891 = vld [vmem:[#allocation7 + $0x674] sm:$0xff]
    %v2892 = vld [vmem:[#allocation7 + $0x67c] sm:$0xff]
    %v2893 = vld [vmem:[#allocation7 + $0x684] sm:$0xff]
    %v2894 = vld [vmem:[#allocation7 + $0x68c] sm:$0xf]
    %v2895 = vld [vmem:[#allocation7 + $0x690] sm:$0xff]
    %v2896 = vld [vmem:[#allocation7 + $0x698] sm:$0xff]
    %v2897 = vld [vmem:[#allocation7 + $0x6a0] sm:$0xff]
    %v2898 = vld [vmem:[#allocation7 + $0x6a8] sm:$0xf]
    %v2899 = vld [vmem:[#allocation7 + $0x6ac] sm:$0xff]
    %v2900 = vld [vmem:[#allocation7 + $0x6b4] sm:$0xff]
    %v2901 = vld [vmem:[#allocation7 + $0x6bc] sm:$0xff]
    %v2902 = vld [vmem:[#allocation7 + $0x6c4] sm:$0xf]
    %v2903 = vld [vmem:[#allocation7 + $0x6c8] sm:$0xff]
    %v2904 = vld [vmem:[#allocation7 + $0x6d0] sm:$0xff]
    %v2905 = vld [vmem:[#allocation7 + $0x6d8] sm:$0xff]
    %v2906 = vld [vmem:[#allocation7 + $0x6e0] sm:$0xf]
    %v2907 = vld [vmem:[#allocation7 + $0x6e4] sm:$0xff]
    %v2908 = vld [vmem:[#allocation7 + $0x6ec] sm:$0xff]
    %v2909 = vld [vmem:[#allocation7 + $0x6f4] sm:$0xff]
    %v2910 = vld [vmem:[#allocation7 + $0x6fc] sm:$0xf]
    %v2911 = vld [vmem:[%s9] sm:$0xff]
    %v2913 = vlaneseq
    %v2914 = vshrl.u32 %v2913, 7
    %v2915 = vsub.s32 0, %v2914
    %v2916 = vrot.slane %v2911, %v2915
    %v2917 = vlaneseq
    %v2918 = vshrl.u32 %v2917, 7
    %v2919 = vsub.s32 1, %v2918
    %v2920 = vrot.slane %v2911, %v2919
    %v2921 = vlaneseq
    %v2922 = vshrl.u32 %v2921, 7
    %v2923 = vsub.s32 2, %v2922
    %v2924 = vrot.slane %v2911, %v2923
    %v2925 = vlaneseq
    %v2926 = vshrl.u32 %v2925, 7
    %v2927 = vsub.s32 3, %v2926
    %v2928 = vrot.slane %v2911, %v2927
    %v2929 = vlaneseq
    %v2930 = vshrl.u32 %v2929, 7
    %v2931 = vsub.s32 4, %v2930
    %v2932 = vrot.slane %v2911, %v2931
    %v2933 = vlaneseq
    %v2934 = vshrl.u32 %v2933, 7
    %v2935 = vsub.s32 5, %v2934
    %v2936 = vrot.slane %v2911, %v2935
    %v2937 = vlaneseq
    %v2938 = vshrl.u32 %v2937, 7
    %v2939 = vsub.s32 6, %v2938
    %v2940 = vrot.slane %v2911, %v2939
    %v3204 = vunpack.c.l.b16 %v2655
    %v3205 = vunpack.c.h.b16 %v2655
    %v3206 = vunpack.c.l.b16 %v2656
    %v3207 = vunpack.c.h.b16 %v2656
    %v3208 = vunpack.c.l.b16 %v2657
    %v3209 = vunpack.c.h.b16 %v2657
    %v3210 = vunpack.c.l.b16 %v2658
    %v3211 = vunpack.c.l.b16 %v2659
    %v3212 = vunpack.c.h.b16 %v2659
    %v3213 = vunpack.c.l.b16 %v2660
    %v3214 = vunpack.c.h.b16 %v2660
    %v3215 = vunpack.c.l.b16 %v2661
    %v3216 = vunpack.c.h.b16 %v2661
    %v3217 = vunpack.c.l.b16 %v2662
    %v3218 = vunpack.c.l.b16 %v2663
    %v3219 = vunpack.c.h.b16 %v2663
    %v3220 = vunpack.c.l.b16 %v2664
    %v3221 = vunpack.c.h.b16 %v2664
    %v3222 = vunpack.c.l.b16 %v2665
    %v3223 = vunpack.c.h.b16 %v2665
    %v3224 = vunpack.c.l.b16 %v2666
    %v3225 = vunpack.c.l.b16 %v2667
    %v3226 = vunpack.c.h.b16 %v2667
    %v3227 = vunpack.c.l.b16 %v2668
    %v3228 = vunpack.c.h.b16 %v2668
    %v3229 = vunpack.c.l.b16 %v2669
    %v3230 = vunpack.c.h.b16 %v2669
    %v3231 = vunpack.c.l.b16 %v2670
    %v3232 = vunpack.c.l.b16 %v2671
    %v3233 = vunpack.c.h.b16 %v2671
    %v3234 = vunpack.c.l.b16 %v2672
    %v3235 = vunpack.c.h.b16 %v2672
    %v3236 = vunpack.c.l.b16 %v2673
    %v3237 = vunpack.c.h.b16 %v2673
    %v3238 = vunpack.c.l.b16 %v2674
    %v3239 = vunpack.c.l.b16 %v2675
    %v3240 = vunpack.c.h.b16 %v2675
    %v3241 = vunpack.c.l.b16 %v2676
    %v3242 = vunpack.c.h.b16 %v2676
    %v3243 = vunpack.c.l.b16 %v2677
    %v3244 = vunpack.c.h.b16 %v2677
    %v3245 = vunpack.c.l.b16 %v2678
    %v3246 = vunpack.c.l.b16 %v2679
    %v3247 = vunpack.c.h.b16 %v2679
    %v3248 = vunpack.c.l.b16 %v2680
    %v3249 = vunpack.c.h.b16 %v2680
    %v3250 = vunpack.c.l.b16 %v2681
    %v3251 = vunpack.c.h.b16 %v2681
    %v3252 = vunpack.c.l.b16 %v2682
    %v3253 = vunpack.c.l.b16 %v2683
    %v3254 = vunpack.c.h.b16 %v2683
    %v3255 = vunpack.c.l.b16 %v2684
    %v3256 = vunpack.c.h.b16 %v2684
    %v3257 = vunpack.c.l.b16 %v2685
    %v3258 = vunpack.c.h.b16 %v2685
    %v3259 = vunpack.c.l.b16 %v2686
    %v3260 = vunpack.c.l.b16 %v2687
    %v3261 = vunpack.c.h.b16 %v2687
    %v3262 = vunpack.c.l.b16 %v2688
    %v3263 = vunpack.c.h.b16 %v2688
    %v3264 = vunpack.c.l.b16 %v2689
    %v3265 = vunpack.c.h.b16 %v2689
    %v3266 = vunpack.c.l.b16 %v2690
    %v3267 = vunpack.c.l.b16 %v2691
    %v3268 = vunpack.c.h.b16 %v2691
    %v3269 = vunpack.c.l.b16 %v2692
    %v3270 = vunpack.c.h.b16 %v2692
    %v3271 = vunpack.c.l.b16 %v2693
    %v3272 = vunpack.c.h.b16 %v2693
    %v3273 = vunpack.c.l.b16 %v2694
    %v3274 = vunpack.c.l.b16 %v2695
    %v3275 = vunpack.c.h.b16 %v2695
    %v3276 = vunpack.c.l.b16 %v2696
    %v3277 = vunpack.c.h.b16 %v2696
    %v3278 = vunpack.c.l.b16 %v2697
    %v3279 = vunpack.c.h.b16 %v2697
    %v3280 = vunpack.c.l.b16 %v2698
    %v3281 = vunpack.c.l.b16 %v2699
    %v3282 = vunpack.c.h.b16 %v2699
    %v3283 = vunpack.c.l.b16 %v2700
    %v3284 = vunpack.c.h.b16 %v2700
    %v3285 = vunpack.c.l.b16 %v2701
    %v3286 = vunpack.c.h.b16 %v2701
    %v3287 = vunpack.c.l.b16 %v2702
    %v3288 = vunpack.c.l.b16 %v2703
    %v3289 = vunpack.c.h.b16 %v2703
    %v3290 = vunpack.c.l.b16 %v2704
    %v3291 = vunpack.c.h.b16 %v2704
    %v3292 = vunpack.c.l.b16 %v2705
    %v3293 = vunpack.c.h.b16 %v2705
    %v3294 = vunpack.c.l.b16 %v2706
    %v3295 = vunpack.c.l.b16 %v2707
    %v3296 = vunpack.c.h.b16 %v2707
    %v3297 = vunpack.c.l.b16 %v2708
    %v3298 = vunpack.c.h.b16 %v2708
    %v3299 = vunpack.c.l.b16 %v2709
    %v3300 = vunpack.c.h.b16 %v2709
    %v3301 = vunpack.c.l.b16 %v2710
    %v3302 = vunpack.c.l.b16 %v2711
    %v3303 = vunpack.c.h.b16 %v2711
    %v3304 = vunpack.c.l.b16 %v2712
    %v3305 = vunpack.c.h.b16 %v2712
    %v3306 = vunpack.c.l.b16 %v2713
    %v3307 = vunpack.c.h.b16 %v2713
    %v3308 = vunpack.c.l.b16 %v2714
    %v3309 = vunpack.c.l.b16 %v2715
    %v3310 = vunpack.c.h.b16 %v2715
    %v3311 = vunpack.c.l.b16 %v2716
    %v3312 = vunpack.c.h.b16 %v2716
    %v3313 = vunpack.c.l.b16 %v2717
    %v3314 = vunpack.c.h.b16 %v2717
    %v3315 = vunpack.c.l.b16 %v2718
    %v3316 = vunpack.c.l.b16 %v2719
    %v3317 = vunpack.c.h.b16 %v2719
    %v3318 = vunpack.c.l.b16 %v2720
    %v3319 = vunpack.c.h.b16 %v2720
    %v3320 = vunpack.c.l.b16 %v2721
    %v3321 = vunpack.c.h.b16 %v2721
    %v3322 = vunpack.c.l.b16 %v2722
    %v3323 = vunpack.c.l.b16 %v2723
    %v3324 = vunpack.c.h.b16 %v2723
    %v3325 = vunpack.c.l.b16 %v2724
    %v3326 = vunpack.c.h.b16 %v2724
    %v3327 = vunpack.c.l.b16 %v2725
    %v3328 = vunpack.c.h.b16 %v2725
    %v3329 = vunpack.c.l.b16 %v2726
    %v3330 = vunpack.c.l.b16 %v2727
    %v3331 = vunpack.c.h.b16 %v2727
    %v3332 = vunpack.c.l.b16 %v2728
    %v3333 = vunpack.c.h.b16 %v2728
    %v3334 = vunpack.c.l.b16 %v2729
    %v3335 = vunpack.c.h.b16 %v2729
    %v3336 = vunpack.c.l.b16 %v2730
    %v3337 = vunpack.c.l.b16 %v2731
    %v3338 = vunpack.c.h.b16 %v2731
    %v3339 = vunpack.c.l.b16 %v2732
    %v3340 = vunpack.c.h.b16 %v2732
    %v3341 = vunpack.c.l.b16 %v2733
    %v3342 = vunpack.c.h.b16 %v2733
    %v3343 = vunpack.c.l.b16 %v2734
    %v3344 = vunpack.c.l.b16 %v2735
    %v3345 = vunpack.c.h.b16 %v2735
    %v3346 = vunpack.c.l.b16 %v2736
    %v3347 = vunpack.c.h.b16 %v2736
    %v3348 = vunpack.c.l.b16 %v2737
    %v3349 = vunpack.c.h.b16 %v2737
    %v3350 = vunpack.c.l.b16 %v2738
    %v3351 = vunpack.c.l.b16 %v2739
    %v3352 = vunpack.c.h.b16 %v2739
    %v3353 = vunpack.c.l.b16 %v2740
    %v3354 = vunpack.c.h.b16 %v2740
    %v3355 = vunpack.c.l.b16 %v2741
    %v3356 = vunpack.c.h.b16 %v2741
    %v3357 = vunpack.c.l.b16 %v2742
    %v3358 = vunpack.c.l.b16 %v2743
    %v3359 = vunpack.c.h.b16 %v2743
    %v3360 = vunpack.c.l.b16 %v2744
    %v3361 = vunpack.c.h.b16 %v2744
    %v3362 = vunpack.c.l.b16 %v2745
    %v3363 = vunpack.c.h.b16 %v2745
    %v3364 = vunpack.c.l.b16 %v2746
    %v3365 = vunpack.c.l.b16 %v2747
    %v3366 = vunpack.c.h.b16 %v2747
    %v3367 = vunpack.c.l.b16 %v2748
    %v3368 = vunpack.c.h.b16 %v2748
    %v3369 = vunpack.c.l.b16 %v2749
    %v3370 = vunpack.c.h.b16 %v2749
    %v3371 = vunpack.c.l.b16 %v2750
    %v3372 = vunpack.c.l.b16 %v2751
    %v3373 = vunpack.c.h.b16 %v2751
    %v3374 = vunpack.c.l.b16 %v2752
    %v3375 = vunpack.c.h.b16 %v2752
    %v3376 = vunpack.c.l.b16 %v2753
    %v3377 = vunpack.c.h.b16 %v2753
    %v3378 = vunpack.c.l.b16 %v2754
    %v3379 = vunpack.c.l.b16 %v2755
    %v3380 = vunpack.c.h.b16 %v2755
    %v3381 = vunpack.c.l.b16 %v2756
    %v3382 = vunpack.c.h.b16 %v2756
    %v3383 = vunpack.c.l.b16 %v2757
    %v3384 = vunpack.c.h.b16 %v2757
    %v3385 = vunpack.c.l.b16 %v2758
    %v3386 = vunpack.c.l.b16 %v2759
    %v3387 = vunpack.c.h.b16 %v2759
    %v3388 = vunpack.c.l.b16 %v2760
    %v3389 = vunpack.c.h.b16 %v2760
    %v3390 = vunpack.c.l.b16 %v2761
    %v3391 = vunpack.c.h.b16 %v2761
    %v3392 = vunpack.c.l.b16 %v2762
    %v3393 = vunpack.c.l.b16 %v2763
    %v3394 = vunpack.c.h.b16 %v2763
    %v3395 = vunpack.c.l.b16 %v2764
    %v3396 = vunpack.c.h.b16 %v2764
    %v3397 = vunpack.c.l.b16 %v2765
    %v3398 = vunpack.c.h.b16 %v2765
    %v3399 = vunpack.c.l.b16 %v2766
    %v3400 = vunpack.c.l.b16 %v2767
    %v3401 = vunpack.c.h.b16 %v2767
    %v3402 = vunpack.c.l.b16 %v2768
    %v3403 = vunpack.c.h.b16 %v2768
    %v3404 = vunpack.c.l.b16 %v2769
    %v3405 = vunpack.c.h.b16 %v2769
    %v3406 = vunpack.c.l.b16 %v2770
    %v3407 = vunpack.c.l.b16 %v2771
    %v3408 = vunpack.c.h.b16 %v2771
    %v3409 = vunpack.c.l.b16 %v2772
    %v3410 = vunpack.c.h.b16 %v2772
    %v3411 = vunpack.c.l.b16 %v2773
    %v3412 = vunpack.c.h.b16 %v2773
    %v3413 = vunpack.c.l.b16 %v2774
    %v3414 = vunpack.c.l.b16 %v2775
    %v3415 = vunpack.c.h.b16 %v2775
    %v3416 = vunpack.c.l.b16 %v2776
    %v3417 = vunpack.c.h.b16 %v2776
    %v3418 = vunpack.c.l.b16 %v2777
    %v3419 = vunpack.c.h.b16 %v2777
    %v3420 = vunpack.c.l.b16 %v2778
    %v3421 = vunpack.c.l.b16 %v2779
    %v3422 = vunpack.c.h.b16 %v2779
    %v3423 = vunpack.c.l.b16 %v2780
    %v3424 = vunpack.c.h.b16 %v2780
    %v3425 = vunpack.c.l.b16 %v2781
    %v3426 = vunpack.c.h.b16 %v2781
    %v3427 = vunpack.c.l.b16 %v2782
    %v3428 = vunpack.c.l.b16 %v2783
    %v3429 = vunpack.c.h.b16 %v2783
    %v3430 = vunpack.c.l.b16 %v2784
    %v3431 = vunpack.c.h.b16 %v2784
    %v3432 = vunpack.c.l.b16 %v2785
    %v3433 = vunpack.c.h.b16 %v2785
    %v3434 = vunpack.c.l.b16 %v2786
    %v3435 = vunpack.c.l.b16 %v2787
    %v3436 = vunpack.c.h.b16 %v2787
    %v3437 = vunpack.c.l.b16 %v2788
    %v3438 = vunpack.c.h.b16 %v2788
    %v3439 = vunpack.c.l.b16 %v2789
    %v3440 = vunpack.c.h.b16 %v2789
    %v3441 = vunpack.c.l.b16 %v2790
    %v3442 = vunpack.c.l.b16 %v2791
    %v3443 = vunpack.c.h.b16 %v2791
    %v3444 = vunpack.c.l.b16 %v2792
    %v3445 = vunpack.c.h.b16 %v2792
    %v3446 = vunpack.c.l.b16 %v2793
    %v3447 = vunpack.c.h.b16 %v2793
    %v3448 = vunpack.c.l.b16 %v2794
    %v3449 = vunpack.c.l.b16 %v2795
    %v3450 = vunpack.c.h.b16 %v2795
    %v3451 = vunpack.c.l.b16 %v2796
    %v3452 = vunpack.c.h.b16 %v2796
    %v3453 = vunpack.c.l.b16 %v2797
    %v3454 = vunpack.c.h.b16 %v2797
    %v3455 = vunpack.c.l.b16 %v2798
    %v3456 = vunpack.c.l.b16 %v2799
    %v3457 = vunpack.c.h.b16 %v2799
    %v3458 = vunpack.c.l.b16 %v2800
    %v3459 = vunpack.c.h.b16 %v2800
    %v3460 = vunpack.c.l.b16 %v2801
    %v3461 = vunpack.c.h.b16 %v2801
    %v3462 = vunpack.c.l.b16 %v2802
    %v3463 = vunpack.c.l.b16 %v2803
    %v3464 = vunpack.c.h.b16 %v2803
    %v3465 = vunpack.c.l.b16 %v2804
    %v3466 = vunpack.c.h.b16 %v2804
    %v3467 = vunpack.c.l.b16 %v2805
    %v3468 = vunpack.c.h.b16 %v2805
    %v3469 = vunpack.c.l.b16 %v2806
    %v3470 = vunpack.c.l.b16 %v2807
    %v3471 = vunpack.c.h.b16 %v2807
    %v3472 = vunpack.c.l.b16 %v2808
    %v3473 = vunpack.c.h.b16 %v2808
    %v3474 = vunpack.c.l.b16 %v2809
    %v3475 = vunpack.c.h.b16 %v2809
    %v3476 = vunpack.c.l.b16 %v2810
    %v3477 = vunpack.c.l.b16 %v2811
    %v3478 = vunpack.c.h.b16 %v2811
    %v3479 = vunpack.c.l.b16 %v2812
    %v3480 = vunpack.c.h.b16 %v2812
    %v3481 = vunpack.c.l.b16 %v2813
    %v3482 = vunpack.c.h.b16 %v2813
    %v3483 = vunpack.c.l.b16 %v2814
    %v3484 = vunpack.c.l.b16 %v2815
    %v3485 = vunpack.c.h.b16 %v2815
    %v3486 = vunpack.c.l.b16 %v2816
    %v3487 = vunpack.c.h.b16 %v2816
    %v3488 = vunpack.c.l.b16 %v2817
    %v3489 = vunpack.c.h.b16 %v2817
    %v3490 = vunpack.c.l.b16 %v2818
    %v3491 = vunpack.c.l.b16 %v2819
    %v3492 = vunpack.c.h.b16 %v2819
    %v3493 = vunpack.c.l.b16 %v2820
    %v3494 = vunpack.c.h.b16 %v2820
    %v3495 = vunpack.c.l.b16 %v2821
    %v3496 = vunpack.c.h.b16 %v2821
    %v3497 = vunpack.c.l.b16 %v2822
    %v3498 = vunpack.c.l.b16 %v2823
    %v3499 = vunpack.c.h.b16 %v2823
    %v3500 = vunpack.c.l.b16 %v2824
    %v3501 = vunpack.c.h.b16 %v2824
    %v3502 = vunpack.c.l.b16 %v2825
    %v3503 = vunpack.c.h.b16 %v2825
    %v3504 = vunpack.c.l.b16 %v2826
    %v3505 = vunpack.c.l.b16 %v2827
    %v3506 = vunpack.c.h.b16 %v2827
    %v3507 = vunpack.c.l.b16 %v2828
    %v3508 = vunpack.c.h.b16 %v2828
    %v3509 = vunpack.c.l.b16 %v2829
    %v3510 = vunpack.c.h.b16 %v2829
    %v3511 = vunpack.c.l.b16 %v2830
    %v3512 = vunpack.c.l.b16 %v2831
    %v3513 = vunpack.c.h.b16 %v2831
    %v3514 = vunpack.c.l.b16 %v2832
    %v3515 = vunpack.c.h.b16 %v2832
    %v3516 = vunpack.c.l.b16 %v2833
    %v3517 = vunpack.c.h.b16 %v2833
    %v3518 = vunpack.c.l.b16 %v2834
    %v3519 = vunpack.c.l.b16 %v2835
    %v3520 = vunpack.c.h.b16 %v2835
    %v3521 = vunpack.c.l.b16 %v2836
    %v3522 = vunpack.c.h.b16 %v2836
    %v3523 = vunpack.c.l.b16 %v2837
    %v3524 = vunpack.c.h.b16 %v2837
    %v3525 = vunpack.c.l.b16 %v2838
    %v3526 = vunpack.c.l.b16 %v2839
    %v3527 = vunpack.c.h.b16 %v2839
    %v3528 = vunpack.c.l.b16 %v2840
    %v3529 = vunpack.c.h.b16 %v2840
    %v3530 = vunpack.c.l.b16 %v2841
    %v3531 = vunpack.c.h.b16 %v2841
    %v3532 = vunpack.c.l.b16 %v2842
    %v3533 = vunpack.c.l.b16 %v2843
    %v3534 = vunpack.c.h.b16 %v2843
    %v3535 = vunpack.c.l.b16 %v2844
    %v3536 = vunpack.c.h.b16 %v2844
    %v3537 = vunpack.c.l.b16 %v2845
    %v3538 = vunpack.c.h.b16 %v2845
    %v3539 = vunpack.c.l.b16 %v2846
    %v3540 = vunpack.c.l.b16 %v2847
    %v3541 = vunpack.c.h.b16 %v2847
    %v3542 = vunpack.c.l.b16 %v2848
    %v3543 = vunpack.c.h.b16 %v2848
    %v3544 = vunpack.c.l.b16 %v2849
    %v3545 = vunpack.c.h.b16 %v2849
    %v3546 = vunpack.c.l.b16 %v2850
    %v3547 = vunpack.c.l.b16 %v2851
    %v3548 = vunpack.c.h.b16 %v2851
    %v3549 = vunpack.c.l.b16 %v2852
    %v3550 = vunpack.c.h.b16 %v2852
    %v3551 = vunpack.c.l.b16 %v2853
    %v3552 = vunpack.c.h.b16 %v2853
    %v3553 = vunpack.c.l.b16 %v2854
    %v3554 = vunpack.c.l.b16 %v2855
    %v3555 = vunpack.c.h.b16 %v2855
    %v3556 = vunpack.c.l.b16 %v2856
    %v3557 = vunpack.c.h.b16 %v2856
    %v3558 = vunpack.c.l.b16 %v2857
    %v3559 = vunpack.c.h.b16 %v2857
    %v3560 = vunpack.c.l.b16 %v2858
    %v3561 = vunpack.c.l.b16 %v2859
    %v3562 = vunpack.c.h.b16 %v2859
    %v3563 = vunpack.c.l.b16 %v2860
    %v3564 = vunpack.c.h.b16 %v2860
    %v3565 = vunpack.c.l.b16 %v2861
    %v3566 = vunpack.c.h.b16 %v2861
    %v3567 = vunpack.c.l.b16 %v2862
    %v3568 = vunpack.c.l.b16 %v2863
    %v3569 = vunpack.c.h.b16 %v2863
    %v3570 = vunpack.c.l.b16 %v2864
    %v3571 = vunpack.c.h.b16 %v2864
    %v3572 = vunpack.c.l.b16 %v2865
    %v3573 = vunpack.c.h.b16 %v2865
    %v3574 = vunpack.c.l.b16 %v2866
    %v3575 = vunpack.c.l.b16 %v2867
    %v3576 = vunpack.c.h.b16 %v2867
    %v3577 = vunpack.c.l.b16 %v2868
    %v3578 = vunpack.c.h.b16 %v2868
    %v3579 = vunpack.c.l.b16 %v2869
    %v3580 = vunpack.c.h.b16 %v2869
    %v3581 = vunpack.c.l.b16 %v2870
    %v3582 = vunpack.c.l.b16 %v2871
    %v3583 = vunpack.c.h.b16 %v2871
    %v3584 = vunpack.c.l.b16 %v2872
    %v3585 = vunpack.c.h.b16 %v2872
    %v3586 = vunpack.c.l.b16 %v2873
    %v3587 = vunpack.c.h.b16 %v2873
    %v3588 = vunpack.c.l.b16 %v2874
    %v3589 = vunpack.c.l.b16 %v2875
    %v3590 = vunpack.c.h.b16 %v2875
    %v3591 = vunpack.c.l.b16 %v2876
    %v3592 = vunpack.c.h.b16 %v2876
    %v3593 = vunpack.c.l.b16 %v2877
    %v3594 = vunpack.c.h.b16 %v2877
    %v3595 = vunpack.c.l.b16 %v2878
    %v3596 = vunpack.c.l.b16 %v2879
    %v3597 = vunpack.c.h.b16 %v2879
    %v3598 = vunpack.c.l.b16 %v2880
    %v3599 = vunpack.c.h.b16 %v2880
    %v3600 = vunpack.c.l.b16 %v2881
    %v3601 = vunpack.c.h.b16 %v2881
    %v3602 = vunpack.c.l.b16 %v2882
    %v3603 = vunpack.c.l.b16 %v2883
    %v3604 = vunpack.c.h.b16 %v2883
    %v3605 = vunpack.c.l.b16 %v2884
    %v3606 = vunpack.c.h.b16 %v2884
    %v3607 = vunpack.c.l.b16 %v2885
    %v3608 = vunpack.c.h.b16 %v2885
    %v3609 = vunpack.c.l.b16 %v2886
    %v3610 = vunpack.c.l.b16 %v2887
    %v3611 = vunpack.c.h.b16 %v2887
    %v3612 = vunpack.c.l.b16 %v2888
    %v3613 = vunpack.c.h.b16 %v2888
    %v3614 = vunpack.c.l.b16 %v2889
    %v3615 = vunpack.c.h.b16 %v2889
    %v3616 = vunpack.c.l.b16 %v2890
    %v3617 = vunpack.c.l.b16 %v2891
    %v3618 = vunpack.c.h.b16 %v2891
    %v3619 = vunpack.c.l.b16 %v2892
    %v3620 = vunpack.c.h.b16 %v2892
    %v3621 = vunpack.c.l.b16 %v2893
    %v3622 = vunpack.c.h.b16 %v2893
    %v3623 = vunpack.c.l.b16 %v2894
    %v3624 = vunpack.c.l.b16 %v2895
    %v3625 = vunpack.c.h.b16 %v2895
    %v3626 = vunpack.c.l.b16 %v2896
    %v3627 = vunpack.c.h.b16 %v2896
    %v3628 = vunpack.c.l.b16 %v2897
    %v3629 = vunpack.c.h.b16 %v2897
    %v3630 = vunpack.c.l.b16 %v2898
    %v3631 = vunpack.c.l.b16 %v2899
    %v3632 = vunpack.c.h.b16 %v2899
    %v3633 = vunpack.c.l.b16 %v2900
    %v3634 = vunpack.c.h.b16 %v2900
    %v3635 = vunpack.c.l.b16 %v2901
    %v3636 = vunpack.c.h.b16 %v2901
    %v3637 = vunpack.c.l.b16 %v2902
    %v3638 = vunpack.c.l.b16 %v2903
    %v3639 = vunpack.c.h.b16 %v2903
    %v3640 = vunpack.c.l.b16 %v2904
    %v3641 = vunpack.c.h.b16 %v2904
    %v3642 = vunpack.c.l.b16 %v2905
    %v3643 = vunpack.c.h.b16 %v2905
    %v3644 = vunpack.c.l.b16 %v2906
    %v3645 = vunpack.c.l.b16 %v2907
    %v3646 = vunpack.c.h.b16 %v2907
    %v3647 = vunpack.c.l.b16 %v2908
    %v3648 = vunpack.c.h.b16 %v2908
    %v3649 = vunpack.c.l.b16 %v2909
    %v3650 = vunpack.c.h.b16 %v2909
    %v3651 = vunpack.c.l.b16 %v2910
    %v3652 = vpack.c.b16 %v3211, %v3204
    %v3653 = vpack.c.b16 %v3212, %v3205
    %v3654 = vpack.c.b16 %v3213, %v3206
    %v3655 = vpack.c.b16 %v3214, %v3207
    %v3656 = vpack.c.b16 %v3215, %v3208
    %v3657 = vpack.c.b16 %v3216, %v3209
    %v3658 = vpack.c.b16 %v3217, %v3210
    %v3659 = vpack.c.b16 %v3225, %v3218
    %v3660 = vpack.c.b16 %v3226, %v3219
    %v3661 = vpack.c.b16 %v3227, %v3220
    %v3662 = vpack.c.b16 %v3228, %v3221
    %v3663 = vpack.c.b16 %v3229, %v3222
    %v3664 = vpack.c.b16 %v3230, %v3223
    %v3665 = vpack.c.b16 %v3231, %v3224
    %v3666 = vpack.c.b16 %v3239, %v3232
    %v3667 = vpack.c.b16 %v3240, %v3233
    %v3668 = vpack.c.b16 %v3241, %v3234
    %v3669 = vpack.c.b16 %v3242, %v3235
    %v3670 = vpack.c.b16 %v3243, %v3236
    %v3671 = vpack.c.b16 %v3244, %v3237
    %v3672 = vpack.c.b16 %v3245, %v3238
    %v3673 = vpack.c.b16 %v3253, %v3246
    %v3674 = vpack.c.b16 %v3254, %v3247
    %v3675 = vpack.c.b16 %v3255, %v3248
    %v3676 = vpack.c.b16 %v3256, %v3249
    %v3677 = vpack.c.b16 %v3257, %v3250
    %v3678 = vpack.c.b16 %v3258, %v3251
    %v3679 = vpack.c.b16 %v3259, %v3252
    %v3680 = vpack.c.b16 %v3267, %v3260
    %v3681 = vpack.c.b16 %v3268, %v3261
    %v3682 = vpack.c.b16 %v3269, %v3262
    %v3683 = vpack.c.b16 %v3270, %v3263
    %v3684 = vpack.c.b16 %v3271, %v3264
    %v3685 = vpack.c.b16 %v3272, %v3265
    %v3686 = vpack.c.b16 %v3273, %v3266
    %v3687 = vpack.c.b16 %v3281, %v3274
    %v3688 = vpack.c.b16 %v3282, %v3275
    %v3689 = vpack.c.b16 %v3283, %v3276
    %v3690 = vpack.c.b16 %v3284, %v3277
    %v3691 = vpack.c.b16 %v3285, %v3278
    %v3692 = vpack.c.b16 %v3286, %v3279
    %v3693 = vpack.c.b16 %v3287, %v3280
    %v3694 = vpack.c.b16 %v3295, %v3288
    %v3695 = vpack.c.b16 %v3296, %v3289
    %v3696 = vpack.c.b16 %v3297, %v3290
    %v3697 = vpack.c.b16 %v3298, %v3291
    %v3698 = vpack.c.b16 %v3299, %v3292
    %v3699 = vpack.c.b16 %v3300, %v3293
    %v3700 = vpack.c.b16 %v3301, %v3294
    %v3701 = vpack.c.b16 %v3309, %v3302
    %v3702 = vpack.c.b16 %v3310, %v3303
    %v3703 = vpack.c.b16 %v3311, %v3304
    %v3704 = vpack.c.b16 %v3312, %v3305
    %v3705 = vpack.c.b16 %v3313, %v3306
    %v3706 = vpack.c.b16 %v3314, %v3307
    %v3707 = vpack.c.b16 %v3315, %v3308
    %v3708 = vpack.c.b16 %v3323, %v3316
    %v3709 = vpack.c.b16 %v3324, %v3317
    %v3710 = vpack.c.b16 %v3325, %v3318
    %v3711 = vpack.c.b16 %v3326, %v3319
    %v3712 = vpack.c.b16 %v3327, %v3320
    %v3713 = vpack.c.b16 %v3328, %v3321
    %v3714 = vpack.c.b16 %v3329, %v3322
    %v3715 = vpack.c.b16 %v3337, %v3330
    %v3716 = vpack.c.b16 %v3338, %v3331
    %v3717 = vpack.c.b16 %v3339, %v3332
    %v3718 = vpack.c.b16 %v3340, %v3333
    %v3719 = vpack.c.b16 %v3341, %v3334
    %v3720 = vpack.c.b16 %v3342, %v3335
    %v3721 = vpack.c.b16 %v3343, %v3336
    %v3722 = vpack.c.b16 %v3351, %v3344
    %v3723 = vpack.c.b16 %v3352, %v3345
    %v3724 = vpack.c.b16 %v3353, %v3346
    %v3725 = vpack.c.b16 %v3354, %v3347
    %v3726 = vpack.c.b16 %v3355, %v3348
    %v3727 = vpack.c.b16 %v3356, %v3349
    %v3728 = vpack.c.b16 %v3357, %v3350
    %v3729 = vpack.c.b16 %v3365, %v3358
    %v3730 = vpack.c.b16 %v3366, %v3359
    %v3731 = vpack.c.b16 %v3367, %v3360
    %v3732 = vpack.c.b16 %v3368, %v3361
    %v3733 = vpack.c.b16 %v3369, %v3362
    %v3734 = vpack.c.b16 %v3370, %v3363
    %v3735 = vpack.c.b16 %v3371, %v3364
    %v3736 = vpack.c.b16 %v3379, %v3372
    %v3737 = vpack.c.b16 %v3380, %v3373
    %v3738 = vpack.c.b16 %v3381, %v3374
    %v3739 = vpack.c.b16 %v3382, %v3375
    %v3740 = vpack.c.b16 %v3383, %v3376
    %v3741 = vpack.c.b16 %v3384, %v3377
    %v3742 = vpack.c.b16 %v3385, %v3378
    %v3743 = vpack.c.b16 %v3393, %v3386
    %v3744 = vpack.c.b16 %v3394, %v3387
    %v3745 = vpack.c.b16 %v3395, %v3388
    %v3746 = vpack.c.b16 %v3396, %v3389
    %v3747 = vpack.c.b16 %v3397, %v3390
    %v3748 = vpack.c.b16 %v3398, %v3391
    %v3749 = vpack.c.b16 %v3399, %v3392
    %v3750 = vpack.c.b16 %v3407, %v3400
    %v3751 = vpack.c.b16 %v3408, %v3401
    %v3752 = vpack.c.b16 %v3409, %v3402
    %v3753 = vpack.c.b16 %v3410, %v3403
    %v3754 = vpack.c.b16 %v3411, %v3404
    %v3755 = vpack.c.b16 %v3412, %v3405
    %v3756 = vpack.c.b16 %v3413, %v3406
    %v3757 = vpack.c.b16 %v3421, %v3414
    %v3758 = vpack.c.b16 %v3422, %v3415
    %v3759 = vpack.c.b16 %v3423, %v3416
    %v3760 = vpack.c.b16 %v3424, %v3417
    %v3761 = vpack.c.b16 %v3425, %v3418
    %v3762 = vpack.c.b16 %v3426, %v3419
    %v3763 = vpack.c.b16 %v3427, %v3420
    %v3764 = vpack.c.b16 %v3435, %v3428
    %v3765 = vpack.c.b16 %v3436, %v3429
    %v3766 = vpack.c.b16 %v3437, %v3430
    %v3767 = vpack.c.b16 %v3438, %v3431
    %v3768 = vpack.c.b16 %v3439, %v3432
    %v3769 = vpack.c.b16 %v3440, %v3433
    %v3770 = vpack.c.b16 %v3441, %v3434
    %v3771 = vpack.c.b16 %v3449, %v3442
    %v3772 = vpack.c.b16 %v3450, %v3443
    %v3773 = vpack.c.b16 %v3451, %v3444
    %v3774 = vpack.c.b16 %v3452, %v3445
    %v3775 = vpack.c.b16 %v3453, %v3446
    %v3776 = vpack.c.b16 %v3454, %v3447
    %v3777 = vpack.c.b16 %v3455, %v3448
    %v3778 = vpack.c.b16 %v3463, %v3456
    %v3779 = vpack.c.b16 %v3464, %v3457
    %v3780 = vpack.c.b16 %v3465, %v3458
    %v3781 = vpack.c.b16 %v3466, %v3459
    %v3782 = vpack.c.b16 %v3467, %v3460
    %v3783 = vpack.c.b16 %v3468, %v3461
    %v3784 = vpack.c.b16 %v3469, %v3462
    %v3785 = vpack.c.b16 %v3477, %v3470
    %v3786 = vpack.c.b16 %v3478, %v3471
    %v3787 = vpack.c.b16 %v3479, %v3472
    %v3788 = vpack.c.b16 %v3480, %v3473
    %v3789 = vpack.c.b16 %v3481, %v3474
    %v3790 = vpack.c.b16 %v3482, %v3475
    %v3791 = vpack.c.b16 %v3483, %v3476
    %v3792 = vpack.c.b16 %v3491, %v3484
    %v3793 = vpack.c.b16 %v3492, %v3485
    %v3794 = vpack.c.b16 %v3493, %v3486
    %v3795 = vpack.c.b16 %v3494, %v3487
    %v3796 = vpack.c.b16 %v3495, %v3488
    %v3797 = vpack.c.b16 %v3496, %v3489
    %v3798 = vpack.c.b16 %v3497, %v3490
    %v3799 = vpack.c.b16 %v3505, %v3498
    %v3800 = vpack.c.b16 %v3506, %v3499
    %v3801 = vpack.c.b16 %v3507, %v3500
    %v3802 = vpack.c.b16 %v3508, %v3501
    %v3803 = vpack.c.b16 %v3509, %v3502
    %v3804 = vpack.c.b16 %v3510, %v3503
    %v3805 = vpack.c.b16 %v3511, %v3504
    %v3806 = vpack.c.b16 %v3519, %v3512
    %v3807 = vpack.c.b16 %v3520, %v3513
    %v3808 = vpack.c.b16 %v3521, %v3514
    %v3809 = vpack.c.b16 %v3522, %v3515
    %v3810 = vpack.c.b16 %v3523, %v3516
    %v3811 = vpack.c.b16 %v3524, %v3517
    %v3812 = vpack.c.b16 %v3525, %v3518
    %v3813 = vpack.c.b16 %v3533, %v3526
    %v3814 = vpack.c.b16 %v3534, %v3527
    %v3815 = vpack.c.b16 %v3535, %v3528
    %v3816 = vpack.c.b16 %v3536, %v3529
    %v3817 = vpack.c.b16 %v3537, %v3530
    %v3818 = vpack.c.b16 %v3538, %v3531
    %v3819 = vpack.c.b16 %v3539, %v3532
    %v3820 = vpack.c.b16 %v3547, %v3540
    %v3821 = vpack.c.b16 %v3548, %v3541
    %v3822 = vpack.c.b16 %v3549, %v3542
    %v3823 = vpack.c.b16 %v3550, %v3543
    %v3824 = vpack.c.b16 %v3551, %v3544
    %v3825 = vpack.c.b16 %v3552, %v3545
    %v3826 = vpack.c.b16 %v3553, %v3546
    %v3827 = vpack.c.b16 %v3561, %v3554
    %v3828 = vpack.c.b16 %v3562, %v3555
    %v3829 = vpack.c.b16 %v3563, %v3556
    %v3830 = vpack.c.b16 %v3564, %v3557
    %v3831 = vpack.c.b16 %v3565, %v3558
    %v3832 = vpack.c.b16 %v3566, %v3559
    %v3833 = vpack.c.b16 %v3567, %v3560
    %v3834 = vpack.c.b16 %v3575, %v3568
    %v3835 = vpack.c.b16 %v3576, %v3569
    %v3836 = vpack.c.b16 %v3577, %v3570
    %v3837 = vpack.c.b16 %v3578, %v3571
    %v3838 = vpack.c.b16 %v3579, %v3572
    %v3839 = vpack.c.b16 %v3580, %v3573
    %v3840 = vpack.c.b16 %v3581, %v3574
    %v3841 = vpack.c.b16 %v3589, %v3582
    %v3842 = vpack.c.b16 %v3590, %v3583
    %v3843 = vpack.c.b16 %v3591, %v3584
    %v3844 = vpack.c.b16 %v3592, %v3585
    %v3845 = vpack.c.b16 %v3593, %v3586
    %v3846 = vpack.c.b16 %v3594, %v3587
    %v3847 = vpack.c.b16 %v3595, %v3588
    %v3848 = vpack.c.b16 %v3603, %v3596
    %v3849 = vpack.c.b16 %v3604, %v3597
    %v3850 = vpack.c.b16 %v3605, %v3598
    %v3851 = vpack.c.b16 %v3606, %v3599
    %v3852 = vpack.c.b16 %v3607, %v3600
    %v3853 = vpack.c.b16 %v3608, %v3601
    %v3854 = vpack.c.b16 %v3609, %v3602
    %v3855 = vpack.c.b16 %v3617, %v3610
    %v3856 = vpack.c.b16 %v3618, %v3611
    %v3857 = vpack.c.b16 %v3619, %v3612
    %v3858 = vpack.c.b16 %v3620, %v3613
    %v3859 = vpack.c.b16 %v3621, %v3614
    %v3860 = vpack.c.b16 %v3622, %v3615
    %v3861 = vpack.c.b16 %v3623, %v3616
    %v3862 = vpack.c.b16 %v3631, %v3624
    %v3863 = vpack.c.b16 %v3632, %v3625
    %v3864 = vpack.c.b16 %v3633, %v3626
    %v3865 = vpack.c.b16 %v3634, %v3627
    %v3866 = vpack.c.b16 %v3635, %v3628
    %v3867 = vpack.c.b16 %v3636, %v3629
    %v3868 = vpack.c.b16 %v3637, %v3630
    %v3869 = vpack.c.b16 %v3645, %v3638
    %v3870 = vpack.c.b16 %v3646, %v3639
    %v3871 = vpack.c.b16 %v3647, %v3640
    %v3872 = vpack.c.b16 %v3648, %v3641
    %v3873 = vpack.c.b16 %v3649, %v3642
    %v3874 = vpack.c.b16 %v3650, %v3643
    %v3875 = vpack.c.b16 %v3651, %v3644
    %4100 = vmatprep.subr.bf16.mxu0 %v3653
    %4101 = vmatpush1.bf16.msra.mxu0 %v3652
    %4102 = vmatprep.subr.bf16.mxu0 %v3660
    %4103 = vmatpush1.bf16.msra.mxu0 %v3659
    %4104 = vmatprep.subr.bf16.mxu0 %v3667
    %4105 = vmatpush1.bf16.msra.mxu0 %v3666
    %4106 = vmatprep.subr.bf16.mxu0 %v3674
    %4107 = vmatpush1.bf16.msra.mxu0 %v3673
    %4108 = vmatprep.subr.bf16.mxu0 %v3681
    %4109 = vmatpush1.bf16.msra.mxu0 %v3680
    %4110 = vmatprep.subr.bf16.mxu0 %v3688
    %4111 = vmatpush1.bf16.msra.mxu0 %v3687
    %4112 = vmatprep.subr.bf16.mxu0 %v3695
    %4113 = vmatpush1.bf16.msra.mxu0 %v3694
    %4114 = vmatprep.subr.bf16.mxu0 %v3702
    %4115 = vmatpush1.bf16.msra.mxu0 %v3701
    %4116 = vmatprep.subr.bf16.mxu0 %v3709
    %4117 = vmatpush1.bf16.msra.mxu0 %v3708
    %4118 = vmatprep.subr.bf16.mxu0 %v3716
    %4119 = vmatpush1.bf16.msra.mxu0 %v3715
    %4120 = vmatprep.subr.bf16.mxu0 %v3723
    %4121 = vmatpush1.bf16.msra.mxu0 %v3722
    %4122 = vmatprep.subr.bf16.mxu0 %v3730
    %4123 = vmatpush1.bf16.msra.mxu0 %v3729
    %4124 = vmatprep.subr.bf16.mxu0 %v3737
    %4125 = vmatpush1.bf16.msra.mxu0 %v3736
    %4126 = vmatprep.subr.bf16.mxu0 %v3744
    %4127 = vmatpush1.bf16.msra.mxu0 %v3743
    %4128 = vmatprep.subr.bf16.mxu0 %v3751
    %4129 = vmatpush1.bf16.msra.mxu0 %v3750
    %4130 = vmatprep.subr.bf16.mxu0 %v3758
    %4131 = vmatpush1.bf16.msra.mxu0 %v3757
    %4132 = vmatprep.mubr.bf16.mxu0 %v2652
    %4133 = vmatmul.mubr.bf16.gmra.mrb[0].mxu0 %v2651
    %v4134 = vpop.f32.mrb[0].mxu0
    %v4135 = vadd.f32 %v2916, %v4134
    %v4136 = vpop.f32.mrb[0].mxu0
    %v4137 = vadd.f32 %v2920, %v4136
    %v4138 = vpop.f32.mrb[0].mxu0
    %v4139 = vadd.f32 %v2916, %v4138
    %v4140 = vpop.f32.mrb[0].mxu0
    %v4141 = vadd.f32 %v2920, %v4140
    %4142 = vdwg.mxu0
    %4143 = vmatprep.subr.bf16.mxu0 %v3765
    %4144 = vmatpush1.bf16.msra.mxu0 %v3764
    %4145 = vmatprep.subr.bf16.mxu0 %v3772
    %4146 = vmatpush1.bf16.msra.mxu0 %v3771
    %4147 = vmatprep.subr.bf16.mxu0 %v3779
    %4148 = vmatpush1.bf16.msra.mxu0 %v3778
    %4149 = vmatprep.subr.bf16.mxu0 %v3786
    %4150 = vmatpush1.bf16.msra.mxu0 %v3785
    %4151 = vmatprep.subr.bf16.mxu0 %v3793
    %4152 = vmatpush1.bf16.msra.mxu0 %v3792
    %4153 = vmatprep.subr.bf16.mxu0 %v3800
    %4154 = vmatpush1.bf16.msra.mxu0 %v3799
    %4155 = vmatprep.subr.bf16.mxu0 %v3807
    %4156 = vmatpush1.bf16.msra.mxu0 %v3806
    %4157 = vmatprep.subr.bf16.mxu0 %v3814
    %4158 = vmatpush1.bf16.msra.mxu0 %v3813
    %4159 = vmatprep.subr.bf16.mxu0 %v3821
    %4160 = vmatpush1.bf16.msra.mxu0 %v3820
    %4161 = vmatprep.subr.bf16.mxu0 %v3828
    %4162 = vmatpush1.bf16.msra.mxu0 %v3827
    %4163 = vmatprep.subr.bf16.mxu0 %v3835
    %4164 = vmatpush1.bf16.msra.mxu0 %v3834
    %4165 = vmatprep.subr.bf16.mxu0 %v3842
    %4166 = vmatpush1.bf16.msra.mxu0 %v3841
    %4167 = vmatprep.subr.bf16.mxu0 %v3849
    %4168 = vmatpush1.bf16.msra.mxu0 %v3848
    %4169 = vmatprep.subr.bf16.mxu0 %v3856
    %4170 = vmatpush1.bf16.msra.mxu0 %v3855
    %4171 = vmatprep.subr.bf16.mxu0 %v3863
    %4172 = vmatpush1.bf16.msra.mxu0 %v3862
    %4173 = vmatprep.subr.bf16.mxu0 %v3870
    %4174 = vmatpush1.bf16.msra.mxu0 %v3869
    %4175 = vmatprep.mubr.bf16.mxu0 %v2654
    %4176 = vmatmul.mubr.bf16.gmra.mrb[0].mxu0 %v2653
    %v4177 = vpop.f32.mrb[0].mxu0
    %v4178 = vadd.f32 %v4135, %v4177
    %v4179 = vpop.f32.mrb[0].mxu0
    %v4180 = vadd.f32 %v4137, %v4179
    %v4181 = vpop.f32.mrb[0].mxu0
    %v4182 = vadd.f32 %v4139, %v4181
    %v4183 = vpop.f32.mrb[0].mxu0
    %v4184 = vadd.f32 %v4141, %v4183
    %4185 = vdwg.mxu0
    %4186 = vmatprep.subr.bf16.mxu0 %v3655
    %4187 = vmatpush1.bf16.msra.mxu0 %v3654
    %4188 = vmatprep.subr.bf16.mxu0 %v3662
    %4189 = vmatpush1.bf16.msra.mxu0 %v3661
    %4190 = vmatprep.subr.bf16.mxu0 %v3669
    %4191 = vmatpush1.bf16.msra.mxu0 %v3668
    %4192 = vmatprep.subr.bf16.mxu0 %v3676
    %4193 = vmatpush1.bf16.msra.mxu0 %v3675
    %4194 = vmatprep.subr.bf16.mxu0 %v3683
    %4195 = vmatpush1.bf16.msra.mxu0 %v3682
    %4196 = vmatprep.subr.bf16.mxu0 %v3690
    %4197 = vmatpush1.bf16.msra.mxu0 %v3689
    %4198 = vmatprep.subr.bf16.mxu0 %v3697
    %4199 = vmatpush1.bf16.msra.mxu0 %v3696
    %4200 = vmatprep.subr.bf16.mxu0 %v3704
    %4201 = vmatpush1.bf16.msra.mxu0 %v3703
    %4202 = vmatprep.subr.bf16.mxu0 %v3711
    %4203 = vmatpush1.bf16.msra.mxu0 %v3710
    %4204 = vmatprep.subr.bf16.mxu0 %v3718
    %4205 = vmatpush1.bf16.msra.mxu0 %v3717
    %4206 = vmatprep.subr.bf16.mxu0 %v3725
    %4207 = vmatpush1.bf16.msra.mxu0 %v3724
    %4208 = vmatprep.subr.bf16.mxu0 %v3732
    %4209 = vmatpush1.bf16.msra.mxu0 %v3731
    %4210 = vmatprep.subr.bf16.mxu0 %v3739
    %4211 = vmatpush1.bf16.msra.mxu0 %v3738
    %4212 = vmatprep.subr.bf16.mxu0 %v3746
    %4213 = vmatpush1.bf16.msra.mxu0 %v3745
    %4214 = vmatprep.subr.bf16.mxu0 %v3753
    %4215 = vmatpush1.bf16.msra.mxu0 %v3752
    %4216 = vmatprep.subr.bf16.mxu0 %v3760
    %4217 = vmatpush1.bf16.msra.mxu0 %v3759
    %4218 = vmatprep.mubr.bf16.mxu0 %v2652
    %4219 = vmatmul.mubr.bf16.gmra.mrb[0].mxu0 %v2651
    %v4220 = vpop.f32.mrb[0].mxu0
    %v4221 = vadd.f32 %v2924, %v4220
    %v4222 = vpop.f32.mrb[0].mxu0
    %v4223 = vadd.f32 %v2928, %v4222
    %v4224 = vpop.f32.mrb[0].mxu0
    %v4225 = vadd.f32 %v2924, %v4224
    %v4226 = vpop.f32.mrb[0].mxu0
    %v4227 = vadd.f32 %v2928, %v4226
    %4228 = vdwg.mxu0
    %4229 = vmatprep.subr.bf16.mxu0 %v3767
    %4230 = vmatpush1.bf16.msra.mxu0 %v3766
    %4231 = vmatprep.subr.bf16.mxu0 %v3774
    %4232 = vmatpush1.bf16.msra.mxu0 %v3773
    %4233 = vmatprep.subr.bf16.mxu0 %v3781
    %4234 = vmatpush1.bf16.msra.mxu0 %v3780
    %4235 = vmatprep.subr.bf16.mxu0 %v3788
    %4236 = vmatpush1.bf16.msra.mxu0 %v3787
    %4237 = vmatprep.subr.bf16.mxu0 %v3795
    %4238 = vmatpush1.bf16.msra.mxu0 %v3794
    %4239 = vmatprep.subr.bf16.mxu0 %v3802
    %4240 = vmatpush1.bf16.msra.mxu0 %v3801
    %4241 = vmatprep.subr.bf16.mxu0 %v3809
    %4242 = vmatpush1.bf16.msra.mxu0 %v3808
    %4243 = vmatprep.subr.bf16.mxu0 %v3816
    %4244 = vmatpush1.bf16.msra.mxu0 %v3815
    %4245 = vmatprep.subr.bf16.mxu0 %v3823
    %4246 = vmatpush1.bf16.msra.mxu0 %v3822
    %4247 = vmatprep.subr.bf16.mxu0 %v3830
    %4248 = vmatpush1.bf16.msra.mxu0 %v3829
    %4249 = vmatprep.subr.bf16.mxu0 %v3837
    %4250 = vmatpush1.bf16.msra.mxu0 %v3836
    %4251 = vmatprep.subr.bf16.mxu0 %v3844
    %4252 = vmatpush1.bf16.msra.mxu0 %v3843
    %4253 = vmatprep.subr.bf16.mxu0 %v3851
    %4254 = vmatpush1.bf16.msra.mxu0 %v3850
    %4255 = vmatprep.subr.bf16.mxu0 %v3858
    %4256 = vmatpush1.bf16.msra.mxu0 %v3857
    %4257 = vmatprep.subr.bf16.mxu0 %v3865
    %4258 = vmatpush1.bf16.msra.mxu0 %v3864
    %4259 = vmatprep.subr.bf16.mxu0 %v3872
    %4260 = vmatpush1.bf16.msra.mxu0 %v3871
    %4261 = vmatprep.mubr.bf16.mxu0 %v2654
    %4262 = vmatmul.mubr.bf16.gmra.mrb[0].mxu0 %v2653
    %v4263 = vpop.f32.mrb[0].mxu0
    %v4264 = vadd.f32 %v4221, %v4263
    %v4265 = vpop.f32.mrb[0].mxu0
    %v4266 = vadd.f32 %v4223, %v4265
    %v4267 = vpop.f32.mrb[0].mxu0
    %v4268 = vadd.f32 %v4225, %v4267
    %v4269 = vpop.f32.mrb[0].mxu0
    %v4270 = vadd.f32 %v4227, %v4269
    %4271 = vdwg.mxu0
    %4272 = vmatprep.subr.bf16.mxu0 %v3657
    %4273 = vmatpush1.bf16.msra.mxu0 %v3656
    %4274 = vmatprep.subr.bf16.mxu0 %v3664
    %4275 = vmatpush1.bf16.msra.mxu0 %v3663
    %4276 = vmatprep.subr.bf16.mxu0 %v3671
    %4277 = vmatpush1.bf16.msra.mxu0 %v3670
    %4278 = vmatprep.subr.bf16.mxu0 %v3678
    %4279 = vmatpush1.bf16.msra.mxu0 %v3677
    %4280 = vmatprep.subr.bf16.mxu0 %v3685
    %4281 = vmatpush1.bf16.msra.mxu0 %v3684
    %4282 = vmatprep.subr.bf16.mxu0 %v3692
    %4283 = vmatpush1.bf16.msra.mxu0 %v3691
    %4284 = vmatprep.subr.bf16.mxu0 %v3699
    %4285 = vmatpush1.bf16.msra.mxu0 %v3698
    %4286 = vmatprep.subr.bf16.mxu0 %v3706
    %4287 = vmatpush1.bf16.msra.mxu0 %v3705
    %4288 = vmatprep.subr.bf16.mxu0 %v3713
    %4289 = vmatpush1.bf16.msra.mxu0 %v3712
    %4290 = vmatprep.subr.bf16.mxu0 %v3720
    %4291 = vmatpush1.bf16.msra.mxu0 %v3719
    %4292 = vmatprep.subr.bf16.mxu0 %v3727
    %4293 = vmatpush1.bf16.msra.mxu0 %v3726
    %4294 = vmatprep.subr.bf16.mxu0 %v3734
    %4295 = vmatpush1.bf16.msra.mxu0 %v3733
    %4296 = vmatprep.subr.bf16.mxu0 %v3741
    %4297 = vmatpush1.bf16.msra.mxu0 %v3740
    %4298 = vmatprep.subr.bf16.mxu0 %v3748
    %4299 = vmatpush1.bf16.msra.mxu0 %v3747
    %4300 = vmatprep.subr.bf16.mxu0 %v3755
    %4301 = vmatpush1.bf16.msra.mxu0 %v3754
    %4302 = vmatprep.subr.bf16.mxu0 %v3762
    %4303 = vmatpush1.bf16.msra.mxu0 %v3761
    %4304 = vmatprep.mubr.bf16.mxu0 %v2652
    %4305 = vmatmul.mubr.bf16.gmra.mrb[0].mxu0 %v2651
    %v4306 = vpop.f32.mrb[0].mxu0
    %v4307 = vadd.f32 %v2932, %v4306
    %v4308 = vpop.f32.mrb[0].mxu0
    %v4309 = vadd.f32 %v2936, %v4308
    %v4310 = vpop.f32.mrb[0].mxu0
    %v4311 = vadd.f32 %v2932, %v4310
    %v4312 = vpop.f32.mrb[0].mxu0
    %v4313 = vadd.f32 %v2936, %v4312
    %4314 = vdwg.mxu0
    %4315 = vmatprep.subr.bf16.mxu0 %v3769
    %4316 = vmatpush1.bf16.msra.mxu0 %v3768
    %4317 = vmatprep.subr.bf16.mxu0 %v3776
    %4318 = vmatpush1.bf16.msra.mxu0 %v3775
    %4319 = vmatprep.subr.bf16.mxu0 %v3783
    %4320 = vmatpush1.bf16.msra.mxu0 %v3782
    %4321 = vmatprep.subr.bf16.mxu0 %v3790
    %4322 = vmatpush1.bf16.msra.mxu0 %v3789
    %4323 = vmatprep.subr.bf16.mxu0 %v3797
    %4324 = vmatpush1.bf16.msra.mxu0 %v3796
    %4325 = vmatprep.subr.bf16.mxu0 %v3804
    %4326 = vmatpush1.bf16.msra.mxu0 %v3803
    %4327 = vmatprep.subr.bf16.mxu0 %v3811
    %4328 = vmatpush1.bf16.msra.mxu0 %v3810
    %4329 = vmatprep.subr.bf16.mxu0 %v3818
    %4330 = vmatpush1.bf16.msra.mxu0 %v3817
    %4331 = vmatprep.subr.bf16.mxu0 %v3825
    %4332 = vmatpush1.bf16.msra.mxu0 %v3824
    %4333 = vmatprep.subr.bf16.mxu0 %v3832
    %4334 = vmatpush1.bf16.msra.mxu0 %v3831
    %4335 = vmatprep.subr.bf16.mxu0 %v3839
    %4336 = vmatpush1.bf16.msra.mxu0 %v3838
    %4337 = vmatprep.subr.bf16.mxu0 %v3846
    %4338 = vmatpush1.bf16.msra.mxu0 %v3845
    %4339 = vmatprep.subr.bf16.mxu0 %v3853
    %4340 = vmatpush1.bf16.msra.mxu0 %v3852
    %4341 = vmatprep.subr.bf16.mxu0 %v3860
    %4342 = vmatpush1.bf16.msra.mxu0 %v3859
    %4343 = vmatprep.subr.bf16.mxu0 %v3867
    %4344 = vmatpush1.bf16.msra.mxu0 %v3866
    %4345 = vmatprep.subr.bf16.mxu0 %v3874
    %4346 = vmatpush1.bf16.msra.mxu0 %v3873
    %4347 = vmatprep.mubr.bf16.mxu0 %v2654
    %4348 = vmatmul.mubr.bf16.gmra.mrb[0].mxu0 %v2653
    %v4349 = vpop.f32.mrb[0].mxu0
    %v4350 = vadd.f32 %v4307, %v4349
    %v4351 = vpop.f32.mrb[0].mxu0
    %v4352 = vadd.f32 %v4309, %v4351
    %v4353 = vpop.f32.mrb[0].mxu0
    %v4354 = vadd.f32 %v4311, %v4353
    %v4355 = vpop.f32.mrb[0].mxu0
    %v4356 = vadd.f32 %v4313, %v4355
    %4357 = vdwg.mxu0
    %4358 = vmatprep.subr.bf16.mxu0 0
    %4359 = vmatpush1.bf16.msra.mxu0 %v3658
    %4360 = vmatprep.subr.bf16.mxu0 0
    %4361 = vmatpush1.bf16.msra.mxu0 %v3665
    %4362 = vmatprep.subr.bf16.mxu0 0
    %4363 = vmatpush1.bf16.msra.mxu0 %v3672
    %4364 = vmatprep.subr.bf16.mxu0 0
    %4365 = vmatpush1.bf16.msra.mxu0 %v3679
    %4366 = vmatprep.subr.bf16.mxu0 0
    %4367 = vmatpush1.bf16.msra.mxu0 %v3686
    %4368 = vmatprep.subr.bf16.mxu0 0
    %4369 = vmatpush1.bf16.msra.mxu0 %v3693
    %4370 = vmatprep.subr.bf16.mxu0 0
    %4371 = vmatpush1.bf16.msra.mxu0 %v3700
    %4372 = vmatprep.subr.bf16.mxu0 0
    %4373 = vmatpush1.bf16.msra.mxu0 %v3707
    %4374 = vmatprep.subr.bf16.mxu0 0
    %4375 = vmatpush1.bf16.msra.mxu0 %v3714
    %4376 = vmatprep.subr.bf16.mxu0 0
    %4377 = vmatpush1.bf16.msra.mxu0 %v3721
    %4378 = vmatprep.subr.bf16.mxu0 0
    %4379 = vmatpush1.bf16.msra.mxu0 %v3728
    %4380 = vmatprep.subr.bf16.mxu0 0
    %4381 = vmatpush1.bf16.msra.mxu0 %v3735
    %4382 = vmatprep.subr.bf16.mxu0 0
    %4383 = vmatpush1.bf16.msra.mxu0 %v3742
    %4384 = vmatprep.subr.bf16.mxu0 0
    %4385 = vmatpush1.bf16.msra.mxu0 %v3749
    %4386 = vmatprep.subr.bf16.mxu0 0
    %4387 = vmatpush1.bf16.msra.mxu0 %v3756
    %4388 = vmatprep.subr.bf16.mxu0 0
    %4389 = vmatpush1.bf16.msra.mxu0 %v3763
    %4390 = vmatprep.mubr.bf16.mxu0 %v2652
    %4391 = vmatmul.mubr.bf16.gmra.mrb[0].mxu0 %v2651
    %v4392 = vpop.f32.mrb[0].mxu0
    %v4393 = vadd.f32 %v2940, %v4392
    %v4394 = vpop.f32.mrb[0].mxu0
    %v4395 = vpop.f32.mrb[0].mxu0
    %v4396 = vadd.f32 %v2940, %v4395
    %v4397 = vpop.f32.mrb[0].mxu0
    %4398 = vdwg.mxu0
    %4399 = vmatprep.subr.bf16.mxu0 0
    %4400 = vmatpush1.bf16.msra.mxu0 %v3770
    %4401 = vmatprep.subr.bf16.mxu0 0
    %4402 = vmatpush1.bf16.msra.mxu0 %v3777
    %4403 = vmatprep.subr.bf16.mxu0 0
    %4404 = vmatpush1.bf16.msra.mxu0 %v3784
    %4405 = vmatprep.subr.bf16.mxu0 0
    %4406 = vmatpush1.bf16.msra.mxu0 %v3791
    %4407 = vmatprep.subr.bf16.mxu0 0
    %4408 = vmatpush1.bf16.msra.mxu0 %v3798
    %4409 = vmatprep.subr.bf16.mxu0 0
    %4410 = vmatpush1.bf16.msra.mxu0 %v3805
    %4411 = vmatprep.subr.bf16.mxu0 0
    %4412 = vmatpush1.bf16.msra.mxu0 %v3812
    %4413 = vmatprep.subr.bf16.mxu0 0
    %4414 = vmatpush1.bf16.msra.mxu0 %v3819
    %4415 = vmatprep.subr.bf16.mxu0 0
    %4416 = vmatpush1.bf16.msra.mxu0 %v3826
    %4417 = vmatprep.subr.bf16.mxu0 0
    %4418 = vmatpush1.bf16.msra.mxu0 %v3833
    %4419 = vmatprep.subr.bf16.mxu0 0
    %4420 = vmatpush1.bf16.msra.mxu0 %v3840
    %4421 = vmatprep.subr.bf16.mxu0 0
    %4422 = vmatpush1.bf16.msra.mxu0 %v3847
    %4423 = vmatprep.subr.bf16.mxu0 0
    %4424 = vmatpush1.bf16.msra.mxu0 %v3854
    %4425 = vmatprep.subr.bf16.mxu0 0
    %4426 = vmatpush1.bf16.msra.mxu0 %v3861
    %4427 = vmatprep.subr.bf16.mxu0 0
    %4428 = vmatpush1.bf16.msra.mxu0 %v3868
    %4429 = vmatprep.subr.bf16.mxu0 0
    %4430 = vmatpush1.bf16.msra.mxu0 %v3875
    %4431 = vmatprep.mubr.bf16.mxu0 %v2654
    %4432 = vmatmul.mubr.bf16.gmra.mrb[0].mxu0 %v2653
    %v4433 = vpop.f32.mrb[0].mxu0
    %v4434 = vadd.f32 %v4393, %v4433
    %v4435 = vpop.f32.mrb[0].mxu0
    %v4436 = vpop.f32.mrb[0].mxu0
    %v4437 = vadd.f32 %v4396, %v4436
    %v4438 = vpop.f32.mrb[0].mxu0
    %4439 = vdwg.mxu0
    %v4440 = vsub.f32 0.0, %v4178
    %v4441 = vsub.f32 0.0, %v4180
    %v4442 = vsub.f32 0.0, %v4264
    %v4443 = vsub.f32 0.0, %v4266
    %v4444 = vsub.f32 0.0, %v4350
    %v4445 = vsub.f32 0.0, %v4352
    %v4446 = vsub.f32 0.0, %v4434
    %v4447 = vsub.f32 0.0, %v4182
    %v4448 = vsub.f32 0.0, %v4184
    %v4449 = vsub.f32 0.0, %v4268
    %v4450 = vsub.f32 0.0, %v4270
    %v4451 = vsub.f32 0.0, %v4354
    %v4452 = vsub.f32 0.0, %v4356
    %v4453 = vsub.f32 0.0, %v4437
    %v4454 = vmul.f32 %v4440, 1.442695
    %v4455 = vpow.pop %v4454
    %v4456 = vmul.f32 %v4441, 1.442695
    %v4457 = vpow.pop %v4456
    %v4458 = vmul.f32 %v4442, 1.442695
    %v4459 = vpow.pop %v4458
    %v4460 = vmul.f32 %v4443, 1.442695
    %v4461 = vpow.pop %v4460
    %v4462 = vmul.f32 %v4444, 1.442695
    %v4463 = vpow.pop %v4462
    %v4464 = vmul.f32 %v4445, 1.442695
    %v4465 = vpow.pop %v4464
    %v4466 = vmul.f32 %v4446, 1.442695
    %v4467 = vpow.pop %v4466
    %v4468 = vmul.f32 %v4447, 1.442695
    %v4469 = vpow.pop %v4468
    %v4470 = vmul.f32 %v4448, 1.442695
    %v4471 = vpow.pop %v4470
    %v4472 = vmul.f32 %v4449, 1.442695
    %v4473 = vpow.pop %v4472
    %v4474 = vmul.f32 %v4450, 1.442695
    %v4475 = vpow.pop %v4474
    %v4476 = vmul.f32 %v4451, 1.442695
    %v4477 = vpow.pop %v4476
    %v4478 = vmul.f32 %v4452, 1.442695
    %v4479 = vpow.pop %v4478
    %v4480 = vmul.f32 %v4453, 1.442695
    %v4481 = vpow.pop %v4480
    %v4482 = vadd.f32 %v4455, 1.0
    %v4483 = vadd.f32 %v4457, 1.0
    %v4484 = vadd.f32 %v4459, 1.0
    %v4485 = vadd.f32 %v4461, 1.0
    %v4486 = vadd.f32 %v4463, 1.0
    %v4487 = vadd.f32 %v4465, 1.0
    %v4488 = vadd.f32 %v4467, 1.0
    %v4489 = vadd.f32 %v4469, 1.0
    %v4490 = vadd.f32 %v4471, 1.0
    %v4491 = vadd.f32 %v4473, 1.0
    %v4492 = vadd.f32 %v4475, 1.0
    %v4493 = vadd.f32 %v4477, 1.0
    %v4494 = vadd.f32 %v4479, 1.0
    %v4495 = vadd.f32 %v4481, 1.0
    %v4496 = vrcp.pop %v4482
    %v4497 = vrcp.pop %v4483
    %v4498 = vrcp.pop %v4484
    %v4499 = vrcp.pop %v4485
    %v4500 = vrcp.pop %v4486
    %v4501 = vrcp.pop %v4487
    %v4502 = vrcp.pop %v4488
    %v4503 = vrcp.pop %v4489
    %v4504 = vrcp.pop %v4490
    %v4505 = vrcp.pop %v4491
    %v4506 = vrcp.pop %v4492
    %v4507 = vrcp.pop %v4493
    %v4508 = vrcp.pop %v4494
    %v4509 = vrcp.pop %v4495
    %v4510 = vpack.c.bf16 %v4503, %v4496
    %v4511 = vpack.c.bf16 %v4504, %v4497
    %v4512 = vpack.c.bf16 %v4505, %v4498
    %v4513 = vpack.c.bf16 %v4506, %v4499
    %v4514 = vpack.c.bf16 %v4507, %v4500
    %v4515 = vpack.c.bf16 %v4508, %v4501
    %v4516 = vpack.c.bf16 %v4509, %v4502
    %v4524 = vunpack.c.l.b16 %v4510
    %v4525 = vunpack.c.l.b16 %v4511
    %v4526 = vunpack.c.l.b16 %v4512
    %v4527 = vunpack.c.l.b16 %v4513
    %v4528 = vunpack.c.l.b16 %v4514
    %v4529 = vunpack.c.l.b16 %v4515
    %v4530 = vunpack.c.l.b16 %v4516
    %v4531 = vunpack.c.h.b16 %v4510
    %v4532 = vunpack.c.h.b16 %v4511
    %v4533 = vunpack.c.h.b16 %v4512
    %v4534 = vunpack.c.h.b16 %v4513
    %v4535 = vunpack.c.h.b16 %v4514
    %v4536 = vunpack.c.h.b16 %v4515
    %v4537 = vunpack.c.h.b16 %v4516
    %v4538 = vpack.c.b16 %v4525, %v4524
    %v4539 = vpack.c.b16 %v4527, %v4526
    %v4540 = vpack.c.b16 %v4529, %v4528
    %v4541 = vpack.c.b16 %v4530, %v4530
    %v4542 = vpack.c.b16 %v4532, %v4531
    %v4543 = vpack.c.b16 %v4534, %v4533
    %v4544 = vpack.c.b16 %v4536, %v4535
    %v4545 = vpack.c.b16 %v4537, %v4537
    %4554 = vst [vmem:[%s10] sm:$0xff] %v4538
    %4555 = vst [vmem:[%s10 + $0x8] sm:$0xff] %v4539
    %4556 = vst [vmem:[%s10 + $0x10] sm:$0xff] %v4540
    %4557 = vst [vmem:[%s10 + $0x18] sm:$0xf] %v4541
    %4558 = vst [vmem:[%s10 + $0x1c] sm:$0xff] %v4542
    %4559 = vst [vmem:[%s10 + $0x24] sm:$0xff] %v4543
    %4560 = vst [vmem:[%s10 + $0x2c] sm:$0xff] %v4544
    %4561 = vst [vmem:[%s10 + $0x34] sm:$0xf] %v4545
    %4562 = vst [vmem:[#allocation8] sm:$0xff] %v2322
    %4563 = vst [vmem:[#allocation8 + $0x8] sm:$0xff] %v2326
    %4564 = vst [vmem:[#allocation9] sm:$0xff] %v2324
    %4565 = vst [vmem:[#allocation9 + $0x8] sm:$0xff] %v2328
    // Predicated region
    $region54: #{vae_forward.1} parent=1 // pred_check
      _
    $region55: #{vae_forward.1} parent=1 // pred_check_branch
      %4567 = sbr.rel (0) target = $region57
    $region56: #{vae_forward.1} parent=1 // pred_region
      _
    $region57: #{vae_forward.1} parent=1 // pred_fallthru
      _
    // Predicated region
    $region58: #{vae_forward.1} parent=1 // pred_check
      _
    $region59: #{vae_forward.1} parent=1 // pred_check_branch
      %4569 = sbr.rel (0) target = $region61
    $region60: #{vae_forward.1} parent=1 // pred_region
      %s4571 = ssub.s32 256, 256
      %4572 = vsyncadd [#allocation4], %s4571
      %s4573 = sshll.u32 [#allocation8], 4
      %s4574 = int_to_ptr.vmem [resolvable:$true] %s4573
      %4579 = dma.vmem_to_hbm [thread:$0]  %s4574, 256, %s11, [#allocation4], 128, 128, 8
    $region61: #{vae_forward.1} parent=1 // pred_fallthru
      _
    // Predicated region
    $region62: #{vae_forward.1} parent=1 // pred_check
      _
    $region63: #{vae_forward.1} parent=1 // pred_check_branch
      %4581 = sbr.rel (0) target = $region65
    $region64: #{vae_forward.1} parent=1 // pred_region
      %s4583 = ssub.s32 256, 256
      %4584 = vsyncadd [#allocation10], %s4583
      %s4585 = sshll.u32 [#allocation9], 4
      %s4586 = int_to_ptr.vmem [resolvable:$true] %s4585
      %4591 = dma.vmem_to_hbm [thread:$0]  %s4586, 256, %s12, [#allocation10], 128, 128, 8
    $region65: #{vae_forward.1} parent=1 // pred_fallthru
      _
    // Predicated region
    $region66: #{vae_forward.1} parent=1 // pred_check
      _
    $region67: #{vae_forward.1} parent=1 // pred_check_branch
      %4593 = sbr.rel (0) target = $region69
    $region68: #{vae_forward.1} parent=1 // pred_region
      _
    $region69: #{vae_forward.1} parent=1 // pred_fallthru
      _
    // Predicated region
    $region70: #{vae_forward.1} parent=1 // pred_check
      _
    $region71: #{vae_forward.1} parent=1 // pred_check_branch
      %4595 = sbr.rel (0) target = $region73
    $region72: #{vae_forward.1} parent=1 // pred_region
      %4596 = dma.done [#allocation4], 256
    $region73: #{vae_forward.1} parent=1 // pred_fallthru
      _
    // Predicated region
    $region74: #{vae_forward.1} parent=1 // pred_check
      _
    $region75: #{vae_forward.1} parent=1 // pred_check_branch
      %4598 = sbr.rel (0) target = $region77
    $region76: #{vae_forward.1} parent=1 // pred_region
      %4599 = dma.done [#allocation10], 256
    $region77: #{vae_forward.1} parent=1 // pred_fallthru
      _
    %4600 = vsyncpa [#allocation3], 1
    %4601 = vsyncpa [#allocation6], 1
    %4602 = vsyncpa [#allocation4], 1
    %4603 = vsyncpa [#allocation10], 1

</llo_original>
